<compile_context>
chip_gen: v7x
topology: tpu7x:2x2x1
jax: 0.10.0
libtpu: 0.0.40
codegen_flags: <defaults>
</compile_context>

<pallas_src>
import functools

import jax
import jax.numpy as jnp
from jax.experimental import pallas as pl
from jax.experimental.pallas import tpu as pltpu


def _round_up(x, m):
    return ((x + m - 1) // m) * m


# ----------------------------- Pallas kernel ------------------------------ #
def _conv_bn_relu_kernel(x_ref, w_ref, shift_ref, out_ref, *, Wp):
    # x_ref:     (Ct, Mp)       bf16/f32  zero-padded, flattened (Hp*Wp) spatial
    # w_ref:     (9, Cp, Ct)    f32       per-tap weights, BN scale folded in
    # shift_ref: (Cp, 1)        f32       folded BN shift
    # out_ref:   (Cp, Mp)       f32       lane-dense output (spatial in lanes)
    Cp, Mp = out_ref.shape

    # Upcast once in-register; all shifts / epilogue math stay in f32.
    x = x_ref[...].astype(jnp.float32)                      # (Ct, Mp)

    acc = jnp.zeros((Cp, Mp), jnp.float32)
    for kh in range(3):
        for kw in range(3):
            # Flat offset of this tap relative to the (padded-grid) center.
            d = (kh - 1) * Wp + (kw - 1)
            # rolled[q] == x[q + d]  (wrap only touches discarded border cols)
            xs = x if d == 0 else pltpu.roll(x, shift=(-d) % Mp, axis=1)
            acc = acc + jnp.dot(w_ref[3 * kh + kw], xs,
                                preferred_element_type=jnp.float32)

    y = acc + shift_ref[...]                                 # folded BatchNorm shift
    out_ref[...] = jnp.maximum(y, 0.0)                       # ReLU (relu∘relu == relu)


def conv_bn_relu_pallas(xflat, w_taps, shift, Wp):
    N, Ct, Mp = xflat.shape
    n_taps, Cp, _ = w_taps.shape

    kernel = functools.partial(_conv_bn_relu_kernel, Wp=Wp)

    flops = 2 * N * Mp * Ct * Cp * n_taps
    bytes_accessed = (xflat.size * xflat.dtype.itemsize
                      + w_taps.size * 4 + shift.size * 4
                      + N * Cp * Mp * 4)

    return pl.pallas_call(
        kernel,
        out_shape=jax.ShapeDtypeStruct((N, Cp, Mp), jnp.float32),
        grid_spec=pltpu.PrefetchScalarGridSpec(
            num_scalar_prefetch=0,
            grid=(N,),
            in_specs=[
                pl.BlockSpec((None, Ct, Mp), lambda n: (n, 0, 0)),
                pl.BlockSpec((n_taps, Cp, Ct), lambda n: (0, 0, 0)),
                pl.BlockSpec((Cp, 1), lambda n: (0, 0)),
            ],
            out_specs=pl.BlockSpec((None, Cp, Mp), lambda n: (n, 0, 0)),
        ),
        compiler_params=pltpu.CompilerParams(
            dimension_semantics=("parallel",),
            vmem_limit_bytes=32 * 1024 * 1024,
        ),
        cost_estimate=pl.CostEstimate(
            flops=flops, transcendentals=0, bytes_accessed=bytes_accessed),
    )(xflat, w_taps, shift)


# ------------------------------ JAX wrapper ------------------------------- #
def up_forward(x, x_skip, conv_w, gamma, beta, run_mean, run_var, eps=1e-5,
               compute_dtype=jnp.bfloat16):
    """Up.forward(X, X_connection).  x: (N,Cin,H,W), x_skip: (N,Cin//2,2H,2W)."""
    N, Cin, H, W = x.shape
    Cout, Ct = conv_w.shape[0], conv_w.shape[1]
    Hs, Ws = 2 * H, 2 * W
    Hp, Wp = Hs + 2, Ws + 2

    # --- XLA-side layout glue (cheap relative to the removed 9x im2col) ---
    x_up = jnp.repeat(jnp.repeat(x, 2, axis=2), 2, axis=3)       # (N,Cin,Hs,Ws)
    xcat = jnp.concatenate([x_up, x_skip], axis=1)               # (N,Ct, Hs,Ws)
    xpad = jnp.pad(xcat, ((0, 0), (0, 0), (1, 1), (1, 1)))       # (N,Ct, Hp,Wp)

    M = Hp * Wp
    Mp = _round_up(M, 128)                                       # lane-dense flat spatial
    xflat = xpad.reshape(N, Ct, M)
    if Mp > M:
        xflat = jnp.pad(xflat, ((0, 0), (0, 0), (0, Mp - M)))
    xflat = xflat.astype(compute_dtype)                          # bf16 storage in HBM/VMEM

    # --- fold eval-mode BatchNorm into weights (scale) + per-channel shift ---
    inv_std = (gamma / jnp.sqrt(run_var + eps)).astype(jnp.float32)
    shift = (beta - run_mean * inv_std).astype(jnp.float32)

    Cp = max(8, _round_up(Cout, 8))                              # sublane-pad Cout
    w_folded = conv_w.astype(jnp.float32) * inv_std[:, None, None, None]  # (Cout,Ct,3,3)
    w_taps = jnp.transpose(w_folded, (2, 3, 0, 1)).reshape(9, Cout, Ct)   # (9,Cout,Ct)
    if Cp > Cout:
        w_taps = jnp.pad(w_taps, ((0, 0), (0, Cp - Cout), (0, 0)))
        shift = jnp.pad(shift, (0, Cp - Cout))
    shift = shift.reshape(Cp, 1)

    y = conv_bn_relu_pallas(xflat, w_taps, shift, Wp)            # (N, Cp, Mp) f32
    y = y[:, :Cout, :M].reshape(N, Cout, Hp, Wp)                 # drop pad channels / lanes
    return y[:, :, 1:1 + Hs, 1:1 + Ws]                           # NCHW, no transpose needed


# ------------------------ pure-JAX reference (check) ----------------------- #
def up_reference(x, x_skip, conv_w, gamma, beta, run_mean, run_var, eps=1e-5,
                 quant_dtype=None):
    if quant_dtype is not None:   # mirror the kernel's bf16 input quantization
        x = x.astype(quant_dtype).astype(jnp.float32)
        x_skip = x_skip.astype(quant_dtype).astype(jnp.float32)
    x_up = jnp.repeat(jnp.repeat(x, 2, axis=2), 2, axis=3)
    xcat = jnp.concatenate([x_up, x_skip], axis=1)
    y = jax.lax.conv_general_dilated(
        xcat, conv_w, window_strides=(1, 1), padding="SAME",
        dimension_numbers=("NCHW", "OIHW", "NCHW"))
    s = gamma / jnp.sqrt(run_var + eps)
    y = y * s[None, :, None, None] + (beta - run_mean * s)[None, :, None, None]
    return jnp.maximum(jnp.maximum(y, 0.0), 0.0)


# --------------------------------- main ----------------------------------- #
if __name__ == "__main__":
    key = jax.random.PRNGKey(0)
    N, Cin, H, W = 2, 4, 16, 16          # Up(in_channels=4, out_channels=4)
    Cout = 4
    Ct = Cin + Cin // 2                  # 6 channels after concat

    k1, k2, k3, k4, k5, k6, k7 = jax.random.split(key, 7)
    x = jax.random.normal(k1, (N, Cin, H, W), dtype=jnp.float32)
    x_skip = jax.random.normal(k2, (N, Cin // 2, 2 * H, 2 * W), dtype=jnp.float32)

    conv_w = 0.1 * jax.random.normal(k3, (Cout, Ct, 3, 3), dtype=jnp.float32)
    # Non-trivial eval-mode BatchNorm parameters (exercise the folding path).
    gamma = 0.5 + jax.random.uniform(k4, (Cout,), dtype=jnp.float32)
    beta = 0.1 * jax.random.normal(k5, (Cout,), dtype=jnp.float32)
    run_mean = 0.1 * jax.random.normal(k6, (Cout,), dtype=jnp.float32)
    run_var = 0.5 + jax.random.uniform(k7, (Cout,), dtype=jnp.float32)

    out = jax.block_until_ready(
        up_forward(x, x_skip, conv_w, gamma, beta, run_mean, run_var))
    ref = jax.block_until_ready(
        up_reference(x, x_skip, conv_w, gamma, beta, run_mean, run_var,
                     quant_dtype=jnp.bfloat16))

    assert out.shape == (N, Cout, 2 * H, 2 * W), out.shape
    max_err = float(jnp.max(jnp.abs(out - ref)))
    assert jnp.allclose(out, ref, rtol=1e-4, atol=1e-4), max_err

    print("KERNEL_OK")
</pallas_src>

<mosaic_0001>
module attributes {stable_mosaic.version = 11 : i64} {
  func.func @_conv_bn_relu_kernel(%arg0: i32, %arg1: memref<1x6x1280xbf16, #tpu.memory_space<vmem>>, %arg2: memref<9x8x6xf32, #tpu.memory_space<vmem>>, %arg3: memref<8x1xf32, #tpu.memory_space<vmem>>, %arg4: memref<1x8x1280xf32, #tpu.memory_space<vmem>>) attributes {dimension_semantics = [#tpu.dimension_semantics<parallel>], iteration_bounds = array<i64: 2>, scalar_prefetch = 0 : i64, scratch_operands = 0 : i64, tpu.core_type = #tpu.core_type<tc>, window_params = [{transform_indices = @transform_0, window_bounds = array<i64: 1, 6, 1280>}, {pipeline_mode = #tpu.pipeline_mode<synchronous>, transform_indices = @transform_1, window_bounds = array<i64: 9, 8, 6>}, {pipeline_mode = #tpu.pipeline_mode<synchronous>, transform_indices = @transform_2, window_bounds = array<i64: 8, 1>}, {transform_indices = @transform_3, window_bounds = array<i64: 1, 8, 1280>}]} {
    %c0 = arith.constant 0 : index
    %c0_0 = arith.constant 0 : index
    %c0_1 = arith.constant 0 : index
    %0 = vector.load %arg1[%c0, %c0_0, %c0_1] : memref<1x6x1280xbf16, #tpu.memory_space<vmem>>, vector<1x6x1280xbf16>
    %1 = vector.shape_cast %0 : vector<1x6x1280xbf16> to vector<6x1280xbf16>
    %2 = arith.extf %1 : vector<6x1280xbf16> to vector<6x1280xf32>
    %cst = arith.constant 0.000000e+00 : f32
    %3 = vector.broadcast %cst : f32 to vector<8x1280xf32>
    %c35_i32 = arith.constant 35 : i32
    %4 = tpu.dynamic_rotate %2 by %c35_i32 dim 1 : vector<6x1280xf32>, i32 -> vector<6x1280xf32>
    %c0_2 = arith.constant 0 : index
    %c0_3 = arith.constant 0 : index
    %c0_4 = arith.constant 0 : index
    %5 = vector.load %arg2[%c0_2, %c0_3, %c0_4] : memref<9x8x6xf32, #tpu.memory_space<vmem>>, vector<1x8x6xf32>
    %6 = vector.shape_cast %5 : vector<1x8x6xf32> to vector<8x6xf32>
    %cst_5 = arith.constant dense<0.000000e+00> : vector<8x1280xf32>
    %7 = tpu.matmul %6, %4, %cst_5 {dimension_numbers = #tpu.dot_dimension_numbers<[1], [0], [0], [1], [0, 0, 1, 1], [], []>} : vector<8x6xf32>, vector<6x1280xf32>, vector<8x1280xf32> -> vector<8x1280xf32>
    %8 = arith.addf %3, %7 : vector<8x1280xf32>
    %c34_i32 = arith.constant 34 : i32
    %9 = tpu.dynamic_rotate %2 by %c34_i32 dim 1 : vector<6x1280xf32>, i32 -> vector<6x1280xf32>
    %c1 = arith.constant 1 : index
    %c0_6 = arith.constant 0 : index
    %c0_7 = arith.constant 0 : index
    %10 = vector.load %arg2[%c1, %c0_6, %c0_7] : memref<9x8x6xf32, #tpu.memory_space<vmem>>, vector<1x8x6xf32>
    %11 = vector.shape_cast %10 : vector<1x8x6xf32> to vector<8x6xf32>
    %cst_8 = arith.constant dense<0.000000e+00> : vector<8x1280xf32>
    %12 = tpu.matmul %11, %9, %cst_8 {dimension_numbers = #tpu.dot_dimension_numbers<[1], [0], [0], [1], [0, 0, 1, 1], [], []>} : vector<8x6xf32>, vector<6x1280xf32>, vector<8x1280xf32> -> vector<8x1280xf32>
    %13 = arith.addf %8, %12 : vector<8x1280xf32>
    %c33_i32 = arith.constant 33 : i32
    %14 = tpu.dynamic_rotate %2 by %c33_i32 dim 1 : vector<6x1280xf32>, i32 -> vector<6x1280xf32>
    %c2 = arith.constant 2 : index
    %c0_9 = arith.constant 0 : index
    %c0_10 = arith.constant 0 : index
    %15 = vector.load %arg2[%c2, %c0_9, %c0_10] : memref<9x8x6xf32, #tpu.memory_space<vmem>>, vector<1x8x6xf32>
    %16 = vector.shape_cast %15 : vector<1x8x6xf32> to vector<8x6xf32>
    %cst_11 = arith.constant dense<0.000000e+00> : vector<8x1280xf32>
    %17 = tpu.matmul %16, %14, %cst_11 {dimension_numbers = #tpu.dot_dimension_numbers<[1], [0], [0], [1], [0, 0, 1, 1], [], []>} : vector<8x6xf32>, vector<6x1280xf32>, vector<8x1280xf32> -> vector<8x1280xf32>
    %18 = arith.addf %13, %17 : vector<8x1280xf32>
    %c1_i32 = arith.constant 1 : i32
    %19 = tpu.dynamic_rotate %2 by %c1_i32 dim 1 : vector<6x1280xf32>, i32 -> vector<6x1280xf32>
    %c3 = arith.constant 3 : index
    %c0_12 = arith.constant 0 : index
    %c0_13 = arith.constant 0 : index
    %20 = vector.load %arg2[%c3, %c0_12, %c0_13] : memref<9x8x6xf32, #tpu.memory_space<vmem>>, vector<1x8x6xf32>
    %21 = vector.shape_cast %20 : vector<1x8x6xf32> to vector<8x6xf32>
    %cst_14 = arith.constant dense<0.000000e+00> : vector<8x1280xf32>
    %22 = tpu.matmul %21, %19, %cst_14 {dimension_numbers = #tpu.dot_dimension_numbers<[1], [0], [0], [1], [0, 0, 1, 1], [], []>} : vector<8x6xf32>, vector<6x1280xf32>, vector<8x1280xf32> -> vector<8x1280xf32>
    %23 = arith.addf %18, %22 : vector<8x1280xf32>
    %c4 = arith.constant 4 : index
    %c0_15 = arith.constant 0 : index
    %c0_16 = arith.constant 0 : index
    %24 = vector.load %arg2[%c4, %c0_15, %c0_16] : memref<9x8x6xf32, #tpu.memory_space<vmem>>, vector<1x8x6xf32>
    %25 = vector.shape_cast %24 : vector<1x8x6xf32> to vector<8x6xf32>
    %cst_17 = arith.constant dense<0.000000e+00> : vector<8x1280xf32>
    %26 = tpu.matmul %25, %2, %cst_17 {dimension_numbers = #tpu.dot_dimension_numbers<[1], [0], [0], [1], [0, 0, 1, 1], [], []>} : vector<8x6xf32>, vector<6x1280xf32>, vector<8x1280xf32> -> vector<8x1280xf32>
    %27 = arith.addf %23, %26 : vector<8x1280xf32>
    %c1279_i32 = arith.constant 1279 : i32
    %28 = tpu.dynamic_rotate %2 by %c1279_i32 dim 1 : vector<6x1280xf32>, i32 -> vector<6x1280xf32>
    %c5 = arith.constant 5 : index
    %c0_18 = arith.constant 0 : index
    %c0_19 = arith.constant 0 : index
    %29 = vector.load %arg2[%c5, %c0_18, %c0_19] : memref<9x8x6xf32, #tpu.memory_space<vmem>>, vector<1x8x6xf32>
    %30 = vector.shape_cast %29 : vector<1x8x6xf32> to vector<8x6xf32>
    %cst_20 = arith.constant dense<0.000000e+00> : vector<8x1280xf32>
    %31 = tpu.matmul %30, %28, %cst_20 {dimension_numbers = #tpu.dot_dimension_numbers<[1], [0], [0], [1], [0, 0, 1, 1], [], []>} : vector<8x6xf32>, vector<6x1280xf32>, vector<8x1280xf32> -> vector<8x1280xf32>
    %32 = arith.addf %27, %31 : vector<8x1280xf32>
    %c1247_i32 = arith.constant 1247 : i32
    %33 = tpu.dynamic_rotate %2 by %c1247_i32 dim 1 : vector<6x1280xf32>, i32 -> vector<6x1280xf32>
    %c6 = arith.constant 6 : index
    %c0_21 = arith.constant 0 : index
    %c0_22 = arith.constant 0 : index
    %34 = vector.load %arg2[%c6, %c0_21, %c0_22] : memref<9x8x6xf32, #tpu.memory_space<vmem>>, vector<1x8x6xf32>
    %35 = vector.shape_cast %34 : vector<1x8x6xf32> to vector<8x6xf32>
    %cst_23 = arith.constant dense<0.000000e+00> : vector<8x1280xf32>
    %36 = tpu.matmul %35, %33, %cst_23 {dimension_numbers = #tpu.dot_dimension_numbers<[1], [0], [0], [1], [0, 0, 1, 1], [], []>} : vector<8x6xf32>, vector<6x1280xf32>, vector<8x1280xf32> -> vector<8x1280xf32>
    %37 = arith.addf %32, %36 : vector<8x1280xf32>
    %c1246_i32 = arith.constant 1246 : i32
    %38 = tpu.dynamic_rotate %2 by %c1246_i32 dim 1 : vector<6x1280xf32>, i32 -> vector<6x1280xf32>
    %c7 = arith.constant 7 : index
    %c0_24 = arith.constant 0 : index
    %c0_25 = arith.constant 0 : index
    %39 = vector.load %arg2[%c7, %c0_24, %c0_25] : memref<9x8x6xf32, #tpu.memory_space<vmem>>, vector<1x8x6xf32>
    %40 = vector.shape_cast %39 : vector<1x8x6xf32> to vector<8x6xf32>
    %cst_26 = arith.constant dense<0.000000e+00> : vector<8x1280xf32>
    %41 = tpu.matmul %40, %38, %cst_26 {dimension_numbers = #tpu.dot_dimension_numbers<[1], [0], [0], [1], [0, 0, 1, 1], [], []>} : vector<8x6xf32>, vector<6x1280xf32>, vector<8x1280xf32> -> vector<8x1280xf32>
    %42 = arith.addf %37, %41 : vector<8x1280xf32>
    %c1245_i32 = arith.constant 1245 : i32
    %43 = tpu.dynamic_rotate %2 by %c1245_i32 dim 1 : vector<6x1280xf32>, i32 -> vector<6x1280xf32>
    %c8 = arith.constant 8 : index
    %c0_27 = arith.constant 0 : index
    %c0_28 = arith.constant 0 : index
    %44 = vector.load %arg2[%c8, %c0_27, %c0_28] : memref<9x8x6xf32, #tpu.memory_space<vmem>>, vector<1x8x6xf32>
    %45 = vector.shape_cast %44 : vector<1x8x6xf32> to vector<8x6xf32>
    %cst_29 = arith.constant dense<0.000000e+00> : vector<8x1280xf32>
    %46 = tpu.matmul %45, %43, %cst_29 {dimension_numbers = #tpu.dot_dimension_numbers<[1], [0], [0], [1], [0, 0, 1, 1], [], []>} : vector<8x6xf32>, vector<6x1280xf32>, vector<8x1280xf32> -> vector<8x1280xf32>
    %47 = arith.addf %42, %46 : vector<8x1280xf32>
    %c0_30 = arith.constant 0 : index
    %c0_31 = arith.constant 0 : index
    %48 = vector.load %arg3[%c0_30, %c0_31] : memref<8x1xf32, #tpu.memory_space<vmem>>, vector<8x1xf32>
    %49 = vector.broadcast %48 : vector<8x1xf32> to vector<8x1280xf32>
    %50 = arith.addf %47, %49 : vector<8x1280xf32>
    %cst_32 = arith.constant 0.000000e+00 : f32
    %51 = vector.broadcast %cst_32 : f32 to vector<8x1280xf32>
    %52 = arith.maximumf %50, %51 : vector<8x1280xf32>
    %c0_33 = arith.constant 0 : index
    %c0_34 = arith.constant 0 : index
    %c0_35 = arith.constant 0 : index
    %53 = vector.load %arg4[%c0_33, %c0_34, %c0_35] : memref<1x8x1280xf32, #tpu.memory_space<vmem>>, vector<1x8x1280xf32>
    %54 = vector.shape_cast %53 : vector<1x8x1280xf32> to vector<8x1280xf32>
    %55 = vector.shape_cast %52 : vector<8x1280xf32> to vector<1x8x1280xf32>
    tpu.vector_store %arg4[%c0_33, %c0_34, %c0_35], %55 {strides = array<i32>} : memref<1x8x1280xf32, #tpu.memory_space<vmem>>, vector<1x8x1280xf32>,
    return
  }
  func.func @transform_0(%arg0: i32) -> (i32, i32, i32) {
    %c0_i32 = arith.constant 0 : i32
    %c0_i32_0 = arith.constant 0 : i32
    %c0_i32_1 = arith.constant 0 : i32
    return %arg0, %c0_i32, %c0_i32_0 : i32, i32, i32
  }
  func.func @transform_1(%arg0: i32) -> (i32, i32, i32) {
    %c0_i32 = arith.constant 0 : i32
    %c0_i32_0 = arith.constant 0 : i32
    %c0_i32_1 = arith.constant 0 : i32
    %c0_i32_2 = arith.constant 0 : i32
    return %c0_i32, %c0_i32_0, %c0_i32_1 : i32, i32, i32
  }
  func.func @transform_2(%arg0: i32) -> (i32, i32) {
    %c0_i32 = arith.constant 0 : i32
    %c0_i32_0 = arith.constant 0 : i32
    %c0_i32_1 = arith.constant 0 : i32
    return %c0_i32, %c0_i32_0 : i32, i32
  }
  func.func @transform_3(%arg0: i32) -> (i32, i32, i32) {
    %c0_i32 = arith.constant 0 : i32
    %c0_i32_0 = arith.constant 0 : i32
    %c0_i32_1 = arith.constant 0 : i32
    return %arg0, %c0_i32, %c0_i32_0 : i32, i32, i32
  }
}

</mosaic_0001>

<llo_original>
// kernel: tpu_custom_call.1
$region0: #{tpu_custom_call.1}
  #allocation0 [shape = 'u32[]', space=smem, size = 0x4, offset = 0x4, fixed_abs, tag = 'smem constant byte address 0x4 - core index']
  #allocation1 [shape = 'u32[144,128]{1,0:T(1,128)}', space=vmem, size = 0x12000, scoped, tag = 'internal scratch']
  %s0 = inlined_call_operand.vmem [shape: bf16[2,6,1280], index: 0, kind: input, shape index: {}]
  %s1 = inlined_call_operand.vmem [shape: f32[9,8,6], index: 1, kind: input, shape index: {}]
  %s2 = inlined_call_operand.vmem [shape: f32[8,1], index: 2, kind: input, shape index: {}]
  %s3 = inlined_call_operand.hbm [shape: f32[2,8,1280], index: 3, kind: output, shape index: {}]
  %s4 = sld [smem:[#allocation0]]
  $region45: #{tpu_custom_call.1} parent=0
    _
  %s6 = ssub.s32 1, %s4
  %s7 = scalar_select 0, %s6, %s4
  $region1: #{tpu_custom_call.1} parent=0
    #allocation2 [shape = 'u8[81920]{0}', space=vmem, size = 0x14000, scoped, tag = 'output window, operand 0']
    #allocation3 [shape = 's32[2]{0}', space=sflag, size = 0x8, scoped, tag = 'scoped memory for tpu_custom_call.1']
    %8 = vsyncpa [#allocation3], 0
    %s9 = scalar_lea.sflag [#allocation3], 1
    %10 = vsyncpa %s9, 0
    loop: start=0, step=1, limit=4
    $region2: #{tpu_custom_call.1} parent=1 // loop_pre_header
      _
    $region3: #{tpu_custom_call.1} parent=1 // loop_header
      %s12 = sphi 0, %s16
      %p13 = scmp.ge.s32.totalorder %s12, 4
      %s22 = sphi 0, %s24
      %s25 = sphi 0, %s22
      %s26 = sphi 0, %s25
      %s42 = sphi 0, %s26
      %s46 = sphi 0, %s46
      %s48 = sphi 0, %s46
      %s49 = sphi 0, %s48
      %s63 = sphi 0, %s49
      %s67 = sphi 0, %s67
      %s69 = sphi 0, %s67
      %s70 = sphi 0, %s69
      %s84 = sphi 0, %s70
      %s90 = sphi 0, %s92
      %s93 = sphi 0, %s90
      %s94 = sphi 0, %s93
      %s110 = sphi 0, %s94
    $region4: #{tpu_custom_call.1} parent=1 // loop_header_branch
      %15 = sbr.rel (%p13) target = $region8
    $region5: #{tpu_custom_call.1} parent=1 // loop_body
      %s17 = ssub.s32 %s12, 1
      %s18 = ssub.s32 %s12, 2
      %s19 = sadd.s32 %s12, 1
      %s20 = ssub.s32 %s12, %s19
      %p21 = scmp.eq.s32.totalorder %s20, 0
      %s23 = sadd.s32 %s22, 1
      %s24 = scalar_select %p21, %s22, %s23
      %p27 = pneg %p21
      %p28 = scmp.eq.s32.totalorder %s12, 1
      %p29 = por %p27, %p28
      %p30 = scmp.ne.s32.totalorder %s22, %s25
      %p31 = scmp.eq.s32.totalorder %s12, 0
      %p32 = por %p30, %p31
      %p33 = scmp.ne.s32.totalorder %s22, %s25
      %p34 = scmp.eq.s32.totalorder %s17, 1
      %p35 = por %p33, %p34
      %p36 = scmp.ne.s32.totalorder %s25, %s26
      %p37 = scmp.eq.s32.totalorder %s17, 0
      %p38 = por %p36, %p37
      %p39 = scmp.ne.s32.totalorder %s25, %s26
      %p40 = scmp.eq.s32.totalorder %s18, 1
      %p41 = por %p39, %p40
      %p43 = scmp.ne.s32.totalorder %s26, %s42
      %p44 = scmp.eq.s32.totalorder %s18, 0
      %p45 = por %p43, %p44
      %s47 = sadd.s32 %s46, 1
      %p50 = scmp.eq.s32.totalorder %s12, 1
      %p51 = scmp.ne.s32.totalorder %s46, %s48
      %p52 = scmp.eq.s32.totalorder %s12, 0
      %p53 = por %p51, %p52
      %p54 = scmp.ne.s32.totalorder %s46, %s48
      %p55 = scmp.eq.s32.totalorder %s17, 1
      %p56 = por %p54, %p55
      %p57 = scmp.ne.s32.totalorder %s48, %s49
      %p58 = scmp.eq.s32.totalorder %s17, 0
      %p59 = por %p57, %p58
      %p60 = scmp.ne.s32.totalorder %s48, %s49
      %p61 = scmp.eq.s32.totalorder %s18, 1
      %p62 = por %p60, %p61
      %p64 = scmp.ne.s32.totalorder %s49, %s63
      %p65 = scmp.eq.s32.totalorder %s18, 0
      %p66 = por %p64, %p65
      %s68 = sadd.s32 %s67, 1
      %p71 = scmp.eq.s32.totalorder %s12, 1
      %p72 = scmp.ne.s32.totalorder %s67, %s69
      %p73 = scmp.eq.s32.totalorder %s12, 0
      %p74 = por %p72, %p73
      %p75 = scmp.ne.s32.totalorder %s67, %s69
      %p76 = scmp.eq.s32.totalorder %s17, 1
      %p77 = por %p75, %p76
      %p78 = scmp.ne.s32.totalorder %s69, %s70
      %p79 = scmp.eq.s32.totalorder %s17, 0
      %p80 = por %p78, %p79
      %p81 = scmp.ne.s32.totalorder %s69, %s70
      %p82 = scmp.eq.s32.totalorder %s18, 1
      %p83 = por %p81, %p82
      %p85 = scmp.ne.s32.totalorder %s70, %s84
      %p86 = scmp.eq.s32.totalorder %s18, 0
      %p87 = por %p85, %p86
      %s88 = ssub.s32 %s12, %s19
      %p89 = scmp.eq.s32.totalorder %s88, 0
      %s91 = sadd.s32 %s90, 1
      %s92 = scalar_select %p89, %s90, %s91
      %p95 = pneg %p89
      %p96 = scmp.eq.s32.totalorder %s12, 1
      %p97 = por %p95, %p96
      %p98 = scmp.ne.s32.totalorder %s90, %s93
      %p99 = scmp.eq.s32.totalorder %s12, 0
      %p100 = por %p98, %p99
      %p101 = scmp.ne.s32.totalorder %s90, %s93
      %p102 = scmp.eq.s32.totalorder %s17, 1
      %p103 = por %p101, %p102
      %p104 = scmp.ne.s32.totalorder %s93, %s94
      %p105 = scmp.eq.s32.totalorder %s17, 0
      %p106 = por %p104, %p105
      %p107 = scmp.ne.s32.totalorder %s93, %s94
      %p108 = scmp.eq.s32.totalorder %s18, 1
      %p109 = por %p107, %p108
      %p111 = scmp.ne.s32.totalorder %s94, %s110
      %p112 = scmp.eq.s32.totalorder %s18, 0
      %p113 = por %p111, %p112
      %p114 = scmp.le.s32.totalorder 1, %s12
      %p115 = scmp.lt.s32.totalorder %s12, 3
      %p116 = pnand %p114, %p115
      %p117 = pneg %p116
      // Predicated region
      $region9: #{tpu_custom_call.1} parent=5 // pred_check
        _
      $region10: #{tpu_custom_call.1} parent=5 // pred_check_branch
        %119 = sbr.rel (%p116) target = $region12
      $region11: #{tpu_custom_call.1} parent=5 // pred_region
        %s120 = ssub.s32 %s12, 1
        // Predicated region
        $region13: #{tpu_custom_call.1} parent=11 // pred_check
          %p121 = pneg %p59
        $region14: #{tpu_custom_call.1} parent=11 // pred_check_branch
          %123 = sbr.rel (%p121) target = $region16
        $region15: #{tpu_custom_call.1} parent=11 // pred_region
          _
        $region16: #{tpu_custom_call.1} parent=11 // pred_fallthru
          _
        // Predicated region
        $region17: #{tpu_custom_call.1} parent=11 // pred_check
          %p124 = pneg %p80
        $region18: #{tpu_custom_call.1} parent=11 // pred_check_branch
          %126 = sbr.rel (%p124) target = $region20
        $region19: #{tpu_custom_call.1} parent=11 // pred_region
          _
        $region20: #{tpu_custom_call.1} parent=11 // pred_fallthru
          _
      $region12: #{tpu_custom_call.1} parent=5 // pred_fallthru
        _
      %p127 = scmp.lt.s32.totalorder %s12, 2
      // Predicated region
      $region21: #{tpu_custom_call.1} parent=5 // pred_check
        %p128 = pneg %p127
      $region22: #{tpu_custom_call.1} parent=5 // pred_check_branch
        %130 = sbr.rel (%p128) target = $region24
      $region23: #{tpu_custom_call.1} parent=5 // pred_region
        // Predicated region
        $region25: #{tpu_custom_call.1} parent=23 // pred_check
          %p131 = pneg %p32
        $region26: #{tpu_custom_call.1} parent=23 // pred_check_branch
          %133 = sbr.rel (%p131) target = $region28
        $region27: #{tpu_custom_call.1} parent=23 // pred_region
          %p134 = scmp.lt.s32.totalorder %s12, 1
          %s135 = scalar_select %p134, %s12, 1
          %s136 = smul.addr %s135, 10
          %s137 = smul.addr %s136, 4
          %s138 = scalar_lea.vmem %s0, %s137
        $region28: #{tpu_custom_call.1} parent=23 // pred_fallthru
          _
      $region24: #{tpu_custom_call.1} parent=5 // pred_fallthru
        _
      %p139 = scmp.le.s32.totalorder 1, %s12
      %p140 = scmp.lt.s32.totalorder %s12, 3
      %p141 = pnand %p139, %p140
      %p142 = pneg %p141
      // Predicated region
      $region29: #{tpu_custom_call.1} parent=5 // pred_check
        _
      $region30: #{tpu_custom_call.1} parent=5 // pred_check_branch
        %144 = sbr.rel (%p141) target = $region32
      $region31: #{tpu_custom_call.1} parent=5 // pred_region
        %s145 = ssub.s32 %s12, 1
        %p146 = scmp.lt.s32.totalorder %s17, 1
        %s147 = scalar_select %p146, %s17, 1
        %s148 = smul.addr %s147, 10
        %s149 = smul.addr %s148, 4
        %s150 = scalar_lea.vmem %s0, %s149
        %p151 = pneg %p38
        %p152 = pneg %p35
        %p153 = pneg %p59
        %p154 = pneg %p56
        %p155 = pneg %p80
        %p156 = pneg %p77
        %p157 = pneg %p106
        %p158 = pneg %p103
        %s159 = sand.u32 %s93, 1
        %s160 = scalar_lea.sflag [#allocation3], %s159
        %s161 = sand.u32 %s93, 1
        %s162 = smul.addr %s161, 80
        %s163 = scalar_lea.vmem [#allocation2], %s162
        %p164 = scmp.lt.s32.totalorder %s17, 1
        %s165 = scalar_select %p164, %s17, 1
        %s166 = smul.addr %s165, 10
        %s167 = smul.addr %s166, 4
        %s168 = scalar_lea.vmem %s0, %s167
        %v169 = vld [vmem:[%s168] sm:$0x77]
        %v170 = vld [vmem:[%s168 + $0x8] sm:$0x77]
        %v171 = vld [vmem:[%s168 + $0x10] sm:$0x77]
        %v172 = vld [vmem:[%s168 + $0x18] sm:$0x77]
        %v173 = vld [vmem:[%s168 + $0x20] sm:$0x77]
        %v174 = vunpack.c.l.bf16 %v169
        %v175 = vunpack.c.h.bf16 %v169
        %v176 = vunpack.c.l.bf16 %v170
        %v177 = vunpack.c.h.bf16 %v170
        %v178 = vunpack.c.l.bf16 %v171
        %v179 = vunpack.c.h.bf16 %v171
        %v180 = vunpack.c.l.bf16 %v172
        %v181 = vunpack.c.h.bf16 %v172
        %v182 = vunpack.c.l.bf16 %v173
        %v183 = vunpack.c.h.bf16 %v173
        %184 = vrot.lane.b32.xlu0 %v174, 35
        %v185 = vpop.permute.xlu0 %184
        %186 = vrot.lane.b32.xlu0 %v175, 35
        %v187 = vpop.permute.xlu0 %186
        %188 = vrot.lane.b32.xlu0 %v176, 35
        %v189 = vpop.permute.xlu0 %188
        %190 = vrot.lane.b32.xlu0 %v177, 35
        %v191 = vpop.permute.xlu0 %190
        %192 = vrot.lane.b32.xlu0 %v178, 35
        %v193 = vpop.permute.xlu0 %192
        %194 = vrot.lane.b32.xlu0 %v179, 35
        %v195 = vpop.permute.xlu0 %194
        %196 = vrot.lane.b32.xlu0 %v180, 35
        %v197 = vpop.permute.xlu0 %196
        %198 = vrot.lane.b32.xlu0 %v181, 35
        %v199 = vpop.permute.xlu0 %198
        %200 = vrot.lane.b32.xlu0 %v182, 35
        %v201 = vpop.permute.xlu0 %200
        %202 = vrot.lane.b32.xlu0 %v183, 35
        %v203 = vpop.permute.xlu0 %202
        %v204 = vlaneseq
        %v205 = vand.u32 %v204, 127
        %vm206 = vcmp.lt.s32.totalorder %v205, 35
        %v207 = vsel %vm206, %v201, %v203
        %v208 = vsel %vm206, %v199, %v201
        %v209 = vsel %vm206, %v197, %v199
        %v210 = vsel %vm206, %v195, %v197
        %v211 = vsel %vm206, %v193, %v195
        %v212 = vsel %vm206, %v191, %v193
        %v213 = vsel %vm206, %v189, %v191
        %v214 = vsel %vm206, %v187, %v189
        %v215 = vsel %vm206, %v185, %v187
        %v216 = vsel %vm206, %v203, %v185
        %v217 = vld [vmem:[%s1] sm:$0xff]
        %218 = vrot.lane.b32.xlu0 %v174, 34
        %v219 = vpop.permute.xlu0 %218
        %220 = vrot.lane.b32.xlu0 %v175, 34
        %v221 = vpop.permute.xlu0 %220
        %222 = vrot.lane.b32.xlu0 %v176, 34
        %v223 = vpop.permute.xlu0 %222
        %224 = vrot.lane.b32.xlu0 %v177, 34
        %v225 = vpop.permute.xlu0 %224
        %226 = vrot.lane.b32.xlu0 %v178, 34
        %v227 = vpop.permute.xlu0 %226
        %228 = vrot.lane.b32.xlu0 %v179, 34
        %v229 = vpop.permute.xlu0 %228
        %230 = vrot.lane.b32.xlu0 %v180, 34
        %v231 = vpop.permute.xlu0 %230
        %232 = vrot.lane.b32.xlu0 %v181, 34
        %v233 = vpop.permute.xlu0 %232
        %234 = vrot.lane.b32.xlu0 %v182, 34
        %v235 = vpop.permute.xlu0 %234
        %236 = vrot.lane.b32.xlu0 %v183, 34
        %v237 = vpop.permute.xlu0 %236
        %vm238 = vcmp.lt.s32.totalorder %v205, 34
        %v239 = vsel %vm238, %v235, %v237
        %v240 = vsel %vm238, %v233, %v235
        %v241 = vsel %vm238, %v231, %v233
        %v242 = vsel %vm238, %v229, %v231
        %v243 = vsel %vm238, %v227, %v229
        %v244 = vsel %vm238, %v225, %v227
        %v245 = vsel %vm238, %v223, %v225
        %v246 = vsel %vm238, %v221, %v223
        %v247 = vsel %vm238, %v219, %v221
        %v248 = vsel %vm238, %v237, %v219
        %s249 = scalar_lea.vmem %s1, 8
        %v250 = vld [vmem:[%s249] sm:$0xff]
        %vm251 = vcmask 48128
        %v253 = vsel %vm251, %v250, 0
        %vm255 = vcmask 1045504
        %v257 = vsel %vm255, %v248, 0
        %v260 = vsel %vm255, %v247, 0
        %v263 = vsel %vm255, %v246, 0
        %v266 = vsel %vm255, %v245, 0
        %v269 = vsel %vm255, %v244, 0
        %v272 = vsel %vm255, %v243, 0
        %v275 = vsel %vm255, %v242, 0
        %v278 = vsel %vm255, %v241, 0
        %v281 = vsel %vm255, %v240, 0
        %v284 = vsel %vm255, %v239, 0
        %286 = vmatprep.subr.mxu0 %v260
        %287 = vmatpush1.msra.mxu0 %v257
        %288 = vmatprep.subr.mxu0 0.0
        %289 = vmatpush1.msra.mxu0 0.0
        %290 = vmatprep.subr.mxu0 0.0
        %291 = vmatpush1.msra.mxu0 0.0
        %292 = vmatprep.subr.mxu0 0.0
        %293 = vmatpush1.msra.mxu0 0.0
        %294 = vmatprep.subr.mxu0 0.0
        %295 = vmatpush1.msra.mxu0 0.0
        %296 = vmatprep.subr.mxu0 0.0
        %297 = vmatpush1.msra.mxu0 0.0
        %298 = vmatprep.subr.mxu0 0.0
        %299 = vmatpush1.msra.mxu0 0.0
        %300 = vmatprep.subr.mxu0 0.0
        %301 = vmatpush1.msra.mxu0 0.0
        %302 = vmatprep.subr.mxu0 0.0
        %303 = vmatpush1.msra.mxu0 0.0
        %304 = vmatprep.subr.mxu0 0.0
        %305 = vmatpush1.msra.mxu0 0.0
        %306 = vmatprep.subr.mxu0 0.0
        %307 = vmatpush1.msra.mxu0 0.0
        %308 = vmatprep.subr.mxu0 0.0
        %309 = vmatpush1.msra.mxu0 0.0
        %310 = vmatprep.subr.mxu0 0.0
        %311 = vmatpush1.msra.mxu0 0.0
        %312 = vmatprep.subr.mxu0 0.0
        %313 = vmatpush1.msra.mxu0 0.0
        %314 = vmatprep.subr.mxu0 0.0
        %315 = vmatpush1.msra.mxu0 0.0
        %316 = vmatprep.subr.mxu0 0.0
        %317 = vmatpush1.msra.mxu0 0.0
        %318 = vmatprep.subr.mxu0 0.0
        %319 = vmatpush1.msra.mxu0 0.0
        %320 = vmatprep.subr.mxu0 0.0
        %321 = vmatpush1.msra.mxu0 0.0
        %322 = vmatprep.subr.mxu0 0.0
        %323 = vmatpush1.msra.mxu0 0.0
        %324 = vmatprep.subr.mxu0 0.0
        %325 = vmatpush1.msra.mxu0 0.0
        %326 = vmatprep.subr.mxu0 0.0
        %327 = vmatpush1.msra.mxu0 0.0
        %328 = vmatprep.subr.mxu0 0.0
        %329 = vmatpush1.msra.mxu0 0.0
        %330 = vmatprep.subr.mxu0 0.0
        %331 = vmatpush1.msra.mxu0 0.0
        %332 = vmatprep.subr.mxu0 0.0
        %333 = vmatpush1.msra.mxu0 0.0
        %334 = vmatprep.subr.mxu0 0.0
        %335 = vmatpush1.msra.mxu0 0.0
        %336 = vmatprep.subr.mxu0 0.0
        %337 = vmatpush1.msra.mxu0 0.0
        %338 = vmatprep.subr.mxu0 0.0
        %339 = vmatpush1.msra.mxu0 0.0
        %340 = vmatprep.subr.mxu0 0.0
        %341 = vmatpush1.msra.mxu0 0.0
        %342 = vmatprep.subr.mxu0 0.0
        %343 = vmatpush1.msra.mxu0 0.0
        %344 = vmatprep.subr.mxu0 0.0
        %345 = vmatpush1.msra.mxu0 0.0
        %346 = vmatprep.subr.mxu0 0.0
        %347 = vmatpush1.msra.mxu0 0.0
        %348 = vmatprep.subr.mxu0 0.0
        %349 = vmatpush1.msra.mxu0 0.0
        %350 = vmatprep.mubr.f32.mxu0 0.0
        %351 = vmatmul.mubr.f32.gmra.mrb[0].mxu0 %v253
        %v352 = vpop.f32.mrb[0].mxu0
        %v353 = vadd.f32 0.0, %v352
        %v354 = vpop.f32.mrb[0].mxu0
        %v355 = vadd.f32 0.0, %v354
        %356 = vdwg.mxu0
        %357 = vmatprep.subr.mxu0 %v266
        %358 = vmatpush1.msra.mxu0 %v263
        %359 = vmatprep.subr.mxu0 0.0
        %360 = vmatpush1.msra.mxu0 0.0
        %361 = vmatprep.subr.mxu0 0.0
        %362 = vmatpush1.msra.mxu0 0.0
        %363 = vmatprep.subr.mxu0 0.0
        %364 = vmatpush1.msra.mxu0 0.0
        %365 = vmatprep.subr.mxu0 0.0
        %366 = vmatpush1.msra.mxu0 0.0
        %367 = vmatprep.subr.mxu0 0.0
        %368 = vmatpush1.msra.mxu0 0.0
        %369 = vmatprep.subr.mxu0 0.0
        %370 = vmatpush1.msra.mxu0 0.0
        %371 = vmatprep.subr.mxu0 0.0
        %372 = vmatpush1.msra.mxu0 0.0
        %373 = vmatprep.subr.mxu0 0.0
        %374 = vmatpush1.msra.mxu0 0.0
        %375 = vmatprep.subr.mxu0 0.0
        %376 = vmatpush1.msra.mxu0 0.0
        %377 = vmatprep.subr.mxu0 0.0
        %378 = vmatpush1.msra.mxu0 0.0
        %379 = vmatprep.subr.mxu0 0.0
        %380 = vmatpush1.msra.mxu0 0.0
        %381 = vmatprep.subr.mxu0 0.0
        %382 = vmatpush1.msra.mxu0 0.0
        %383 = vmatprep.subr.mxu0 0.0
        %384 = vmatpush1.msra.mxu0 0.0
        %385 = vmatprep.subr.mxu0 0.0
        %386 = vmatpush1.msra.mxu0 0.0
        %387 = vmatprep.subr.mxu0 0.0
        %388 = vmatpush1.msra.mxu0 0.0
        %389 = vmatprep.subr.mxu0 0.0
        %390 = vmatpush1.msra.mxu0 0.0
        %391 = vmatprep.subr.mxu0 0.0
        %392 = vmatpush1.msra.mxu0 0.0
        %393 = vmatprep.subr.mxu0 0.0
        %394 = vmatpush1.msra.mxu0 0.0
        %395 = vmatprep.subr.mxu0 0.0
        %396 = vmatpush1.msra.mxu0 0.0
        %397 = vmatprep.subr.mxu0 0.0
        %398 = vmatpush1.msra.mxu0 0.0
        %399 = vmatprep.subr.mxu0 0.0
        %400 = vmatpush1.msra.mxu0 0.0
        %401 = vmatprep.subr.mxu0 0.0
        %402 = vmatpush1.msra.mxu0 0.0
        %403 = vmatprep.subr.mxu0 0.0
        %404 = vmatpush1.msra.mxu0 0.0
        %405 = vmatprep.subr.mxu0 0.0
        %406 = vmatpush1.msra.mxu0 0.0
        %407 = vmatprep.subr.mxu0 0.0
        %408 = vmatpush1.msra.mxu0 0.0
        %409 = vmatprep.subr.mxu0 0.0
        %410 = vmatpush1.msra.mxu0 0.0
        %411 = vmatprep.subr.mxu0 0.0
        %412 = vmatpush1.msra.mxu0 0.0
        %413 = vmatprep.subr.mxu0 0.0
        %414 = vmatpush1.msra.mxu0 0.0
        %415 = vmatprep.subr.mxu0 0.0
        %416 = vmatpush1.msra.mxu0 0.0
        %417 = vmatprep.subr.mxu0 0.0
        %418 = vmatpush1.msra.mxu0 0.0
        %419 = vmatprep.subr.mxu0 0.0
        %420 = vmatpush1.msra.mxu0 0.0
        %421 = vmatprep.mubr.f32.mxu0 0.0
        %422 = vmatmul.mubr.f32.gmra.mrb[0].mxu0 %v253
        %v423 = vpop.f32.mrb[0].mxu0
        %v424 = vadd.f32 0.0, %v423
        %v425 = vpop.f32.mrb[0].mxu0
        %v426 = vadd.f32 0.0, %v425
        %427 = vdwg.mxu0
        %428 = vmatprep.subr.mxu0 %v272
        %429 = vmatpush1.msra.mxu0 %v269
        %430 = vmatprep.subr.mxu0 0.0
        %431 = vmatpush1.msra.mxu0 0.0
        %432 = vmatprep.subr.mxu0 0.0
        %433 = vmatpush1.msra.mxu0 0.0
        %434 = vmatprep.subr.mxu0 0.0
        %435 = vmatpush1.msra.mxu0 0.0
        %436 = vmatprep.subr.mxu0 0.0
        %437 = vmatpush1.msra.mxu0 0.0
        %438 = vmatprep.subr.mxu0 0.0
        %439 = vmatpush1.msra.mxu0 0.0
        %440 = vmatprep.subr.mxu0 0.0
        %441 = vmatpush1.msra.mxu0 0.0
        %442 = vmatprep.subr.mxu0 0.0
        %443 = vmatpush1.msra.mxu0 0.0
        %444 = vmatprep.subr.mxu0 0.0
        %445 = vmatpush1.msra.mxu0 0.0
        %446 = vmatprep.subr.mxu0 0.0
        %447 = vmatpush1.msra.mxu0 0.0
        %448 = vmatprep.subr.mxu0 0.0
        %449 = vmatpush1.msra.mxu0 0.0
        %450 = vmatprep.subr.mxu0 0.0
        %451 = vmatpush1.msra.mxu0 0.0
        %452 = vmatprep.subr.mxu0 0.0
        %453 = vmatpush1.msra.mxu0 0.0
        %454 = vmatprep.subr.mxu0 0.0
        %455 = vmatpush1.msra.mxu0 0.0
        %456 = vmatprep.subr.mxu0 0.0
        %457 = vmatpush1.msra.mxu0 0.0
        %458 = vmatprep.subr.mxu0 0.0
        %459 = vmatpush1.msra.mxu0 0.0
        %460 = vmatprep.subr.mxu0 0.0
        %461 = vmatpush1.msra.mxu0 0.0
        %462 = vmatprep.subr.mxu0 0.0
        %463 = vmatpush1.msra.mxu0 0.0
        %464 = vmatprep.subr.mxu0 0.0
        %465 = vmatpush1.msra.mxu0 0.0
        %466 = vmatprep.subr.mxu0 0.0
        %467 = vmatpush1.msra.mxu0 0.0
        %468 = vmatprep.subr.mxu0 0.0
        %469 = vmatpush1.msra.mxu0 0.0
        %470 = vmatprep.subr.mxu0 0.0
        %471 = vmatpush1.msra.mxu0 0.0
        %472 = vmatprep.subr.mxu0 0.0
        %473 = vmatpush1.msra.mxu0 0.0
        %474 = vmatprep.subr.mxu0 0.0
        %475 = vmatpush1.msra.mxu0 0.0
        %476 = vmatprep.subr.mxu0 0.0
        %477 = vmatpush1.msra.mxu0 0.0
        %478 = vmatprep.subr.mxu0 0.0
        %479 = vmatpush1.msra.mxu0 0.0
        %480 = vmatprep.subr.mxu0 0.0
        %481 = vmatpush1.msra.mxu0 0.0
        %482 = vmatprep.subr.mxu0 0.0
        %483 = vmatpush1.msra.mxu0 0.0
        %484 = vmatprep.subr.mxu0 0.0
        %485 = vmatpush1.msra.mxu0 0.0
        %486 = vmatprep.subr.mxu0 0.0
        %487 = vmatpush1.msra.mxu0 0.0
        %488 = vmatprep.subr.mxu0 0.0
        %489 = vmatpush1.msra.mxu0 0.0
        %490 = vmatprep.subr.mxu0 0.0
        %491 = vmatpush1.msra.mxu0 0.0
        %492 = vmatprep.mubr.f32.mxu0 0.0
        %493 = vmatmul.mubr.f32.gmra.mrb[0].mxu0 %v253
        %v494 = vpop.f32.mrb[0].mxu0
        %v495 = vadd.f32 0.0, %v494
        %v496 = vpop.f32.mrb[0].mxu0
        %v497 = vadd.f32 0.0, %v496
        %498 = vdwg.mxu0
        %499 = vmatprep.subr.mxu0 %v278
        %500 = vmatpush1.msra.mxu0 %v275
        %501 = vmatprep.subr.mxu0 0.0
        %502 = vmatpush1.msra.mxu0 0.0
        %503 = vmatprep.subr.mxu0 0.0
        %504 = vmatpush1.msra.mxu0 0.0
        %505 = vmatprep.subr.mxu0 0.0
        %506 = vmatpush1.msra.mxu0 0.0
        %507 = vmatprep.subr.mxu0 0.0
        %508 = vmatpush1.msra.mxu0 0.0
        %509 = vmatprep.subr.mxu0 0.0
        %510 = vmatpush1.msra.mxu0 0.0
        %511 = vmatprep.subr.mxu0 0.0
        %512 = vmatpush1.msra.mxu0 0.0
        %513 = vmatprep.subr.mxu0 0.0
        %514 = vmatpush1.msra.mxu0 0.0
        %515 = vmatprep.subr.mxu0 0.0
        %516 = vmatpush1.msra.mxu0 0.0
        %517 = vmatprep.subr.mxu0 0.0
        %518 = vmatpush1.msra.mxu0 0.0
        %519 = vmatprep.subr.mxu0 0.0
        %520 = vmatpush1.msra.mxu0 0.0
        %521 = vmatprep.subr.mxu0 0.0
        %522 = vmatpush1.msra.mxu0 0.0
        %523 = vmatprep.subr.mxu0 0.0
        %524 = vmatpush1.msra.mxu0 0.0
        %525 = vmatprep.subr.mxu0 0.0
        %526 = vmatpush1.msra.mxu0 0.0
        %527 = vmatprep.subr.mxu0 0.0
        %528 = vmatpush1.msra.mxu0 0.0
        %529 = vmatprep.subr.mxu0 0.0
        %530 = vmatpush1.msra.mxu0 0.0
        %531 = vmatprep.subr.mxu0 0.0
        %532 = vmatpush1.msra.mxu0 0.0
        %533 = vmatprep.subr.mxu0 0.0
        %534 = vmatpush1.msra.mxu0 0.0
        %535 = vmatprep.subr.mxu0 0.0
        %536 = vmatpush1.msra.mxu0 0.0
        %537 = vmatprep.subr.mxu0 0.0
        %538 = vmatpush1.msra.mxu0 0.0
        %539 = vmatprep.subr.mxu0 0.0
        %540 = vmatpush1.msra.mxu0 0.0
        %541 = vmatprep.subr.mxu0 0.0
        %542 = vmatpush1.msra.mxu0 0.0
        %543 = vmatprep.subr.mxu0 0.0
        %544 = vmatpush1.msra.mxu0 0.0
        %545 = vmatprep.subr.mxu0 0.0
        %546 = vmatpush1.msra.mxu0 0.0
        %547 = vmatprep.subr.mxu0 0.0
        %548 = vmatpush1.msra.mxu0 0.0
        %549 = vmatprep.subr.mxu0 0.0
        %550 = vmatpush1.msra.mxu0 0.0
        %551 = vmatprep.subr.mxu0 0.0
        %552 = vmatpush1.msra.mxu0 0.0
        %553 = vmatprep.subr.mxu0 0.0
        %554 = vmatpush1.msra.mxu0 0.0
        %555 = vmatprep.subr.mxu0 0.0
        %556 = vmatpush1.msra.mxu0 0.0
        %557 = vmatprep.subr.mxu0 0.0
        %558 = vmatpush1.msra.mxu0 0.0
        %559 = vmatprep.subr.mxu0 0.0
        %560 = vmatpush1.msra.mxu0 0.0
        %561 = vmatprep.subr.mxu0 0.0
        %562 = vmatpush1.msra.mxu0 0.0
        %563 = vmatprep.mubr.f32.mxu0 0.0
        %564 = vmatmul.mubr.f32.gmra.mrb[0].mxu0 %v253
        %v565 = vpop.f32.mrb[0].mxu0
        %v566 = vadd.f32 0.0, %v565
        %v567 = vpop.f32.mrb[0].mxu0
        %v568 = vadd.f32 0.0, %v567
        %569 = vdwg.mxu0
        %570 = vmatprep.subr.mxu0 %v284
        %571 = vmatpush1.msra.mxu0 %v281
        %572 = vmatprep.subr.mxu0 0.0
        %573 = vmatpush1.msra.mxu0 0.0
        %574 = vmatprep.subr.mxu0 0.0
        %575 = vmatpush1.msra.mxu0 0.0
        %576 = vmatprep.subr.mxu0 0.0
        %577 = vmatpush1.msra.mxu0 0.0
        %578 = vmatprep.subr.mxu0 0.0
        %579 = vmatpush1.msra.mxu0 0.0
        %580 = vmatprep.subr.mxu0 0.0
        %581 = vmatpush1.msra.mxu0 0.0
        %582 = vmatprep.subr.mxu0 0.0
        %583 = vmatpush1.msra.mxu0 0.0
        %584 = vmatprep.subr.mxu0 0.0
        %585 = vmatpush1.msra.mxu0 0.0
        %586 = vmatprep.subr.mxu0 0.0
        %587 = vmatpush1.msra.mxu0 0.0
        %588 = vmatprep.subr.mxu0 0.0
        %589 = vmatpush1.msra.mxu0 0.0
        %590 = vmatprep.subr.mxu0 0.0
        %591 = vmatpush1.msra.mxu0 0.0
        %592 = vmatprep.subr.mxu0 0.0
        %593 = vmatpush1.msra.mxu0 0.0
        %594 = vmatprep.subr.mxu0 0.0
        %595 = vmatpush1.msra.mxu0 0.0
        %596 = vmatprep.subr.mxu0 0.0
        %597 = vmatpush1.msra.mxu0 0.0
        %598 = vmatprep.subr.mxu0 0.0
        %599 = vmatpush1.msra.mxu0 0.0
        %600 = vmatprep.subr.mxu0 0.0
        %601 = vmatpush1.msra.mxu0 0.0
        %602 = vmatprep.subr.mxu0 0.0
        %603 = vmatpush1.msra.mxu0 0.0
        %604 = vmatprep.subr.mxu0 0.0
        %605 = vmatpush1.msra.mxu0 0.0
        %606 = vmatprep.subr.mxu0 0.0
        %607 = vmatpush1.msra.mxu0 0.0
        %608 = vmatprep.subr.mxu0 0.0
        %609 = vmatpush1.msra.mxu0 0.0
        %610 = vmatprep.subr.mxu0 0.0
        %611 = vmatpush1.msra.mxu0 0.0
        %612 = vmatprep.subr.mxu0 0.0
        %613 = vmatpush1.msra.mxu0 0.0
        %614 = vmatprep.subr.mxu0 0.0
        %615 = vmatpush1.msra.mxu0 0.0
        %616 = vmatprep.subr.mxu0 0.0
        %617 = vmatpush1.msra.mxu0 0.0
        %618 = vmatprep.subr.mxu0 0.0
        %619 = vmatpush1.msra.mxu0 0.0
        %620 = vmatprep.subr.mxu0 0.0
        %621 = vmatpush1.msra.mxu0 0.0
        %622 = vmatprep.subr.mxu0 0.0
        %623 = vmatpush1.msra.mxu0 0.0
        %624 = vmatprep.subr.mxu0 0.0
        %625 = vmatpush1.msra.mxu0 0.0
        %626 = vmatprep.subr.mxu0 0.0
        %627 = vmatpush1.msra.mxu0 0.0
        %628 = vmatprep.subr.mxu0 0.0
        %629 = vmatpush1.msra.mxu0 0.0
        %630 = vmatprep.subr.mxu0 0.0
        %631 = vmatpush1.msra.mxu0 0.0
        %632 = vmatprep.subr.mxu0 0.0
        %633 = vmatpush1.msra.mxu0 0.0
        %634 = vmatprep.mubr.f32.mxu0 0.0
        %635 = vmatmul.mubr.f32.gmra.mrb[0].mxu0 %v253
        %v636 = vpop.f32.mrb[0].mxu0
        %v637 = vadd.f32 0.0, %v636
        %v638 = vpop.f32.mrb[0].mxu0
        %v639 = vadd.f32 0.0, %v638
        %640 = vdwg.mxu0
        %v642 = vsel %vm251, %v217, 0
        %v645 = vsel %vm255, %v216, 0
        %v648 = vsel %vm255, %v215, 0
        %v651 = vsel %vm255, %v214, 0
        %v654 = vsel %vm255, %v213, 0
        %v657 = vsel %vm255, %v212, 0
        %v660 = vsel %vm255, %v211, 0
        %v663 = vsel %vm255, %v210, 0
        %v666 = vsel %vm255, %v209, 0
        %v669 = vsel %vm255, %v208, 0
        %v672 = vsel %vm255, %v207, 0
        %674 = vmatprep.subr.mxu0 %v648
        %675 = vmatpush1.msra.mxu0 %v645
        %676 = vmatprep.subr.mxu0 0.0
        %677 = vmatpush1.msra.mxu0 0.0
        %678 = vmatprep.subr.mxu0 0.0
        %679 = vmatpush1.msra.mxu0 0.0
        %680 = vmatprep.subr.mxu0 0.0
        %681 = vmatpush1.msra.mxu0 0.0
        %682 = vmatprep.subr.mxu0 0.0
        %683 = vmatpush1.msra.mxu0 0.0
        %684 = vmatprep.subr.mxu0 0.0
        %685 = vmatpush1.msra.mxu0 0.0
        %686 = vmatprep.subr.mxu0 0.0
        %687 = vmatpush1.msra.mxu0 0.0
        %688 = vmatprep.subr.mxu0 0.0
        %689 = vmatpush1.msra.mxu0 0.0
        %690 = vmatprep.subr.mxu0 0.0
        %691 = vmatpush1.msra.mxu0 0.0
        %692 = vmatprep.subr.mxu0 0.0
        %693 = vmatpush1.msra.mxu0 0.0
        %694 = vmatprep.subr.mxu0 0.0
        %695 = vmatpush1.msra.mxu0 0.0
        %696 = vmatprep.subr.mxu0 0.0
        %697 = vmatpush1.msra.mxu0 0.0
        %698 = vmatprep.subr.mxu0 0.0
        %699 = vmatpush1.msra.mxu0 0.0
        %700 = vmatprep.subr.mxu0 0.0
        %701 = vmatpush1.msra.mxu0 0.0
        %702 = vmatprep.subr.mxu0 0.0
        %703 = vmatpush1.msra.mxu0 0.0
        %704 = vmatprep.subr.mxu0 0.0
        %705 = vmatpush1.msra.mxu0 0.0
        %706 = vmatprep.subr.mxu0 0.0
        %707 = vmatpush1.msra.mxu0 0.0
        %708 = vmatprep.subr.mxu0 0.0
        %709 = vmatpush1.msra.mxu0 0.0
        %710 = vmatprep.subr.mxu0 0.0
        %711 = vmatpush1.msra.mxu0 0.0
        %712 = vmatprep.subr.mxu0 0.0
        %713 = vmatpush1.msra.mxu0 0.0
        %714 = vmatprep.subr.mxu0 0.0
        %715 = vmatpush1.msra.mxu0 0.0
        %716 = vmatprep.subr.mxu0 0.0
        %717 = vmatpush1.msra.mxu0 0.0
        %718 = vmatprep.subr.mxu0 0.0
        %719 = vmatpush1.msra.mxu0 0.0
        %720 = vmatprep.subr.mxu0 0.0
        %721 = vmatpush1.msra.mxu0 0.0
        %722 = vmatprep.subr.mxu0 0.0
        %723 = vmatpush1.msra.mxu0 0.0
        %724 = vmatprep.subr.mxu0 0.0
        %725 = vmatpush1.msra.mxu0 0.0
        %726 = vmatprep.subr.mxu0 0.0
        %727 = vmatpush1.msra.mxu0 0.0
        %728 = vmatprep.subr.mxu0 0.0
        %729 = vmatpush1.msra.mxu0 0.0
        %730 = vmatprep.subr.mxu0 0.0
        %731 = vmatpush1.msra.mxu0 0.0
        %732 = vmatprep.subr.mxu0 0.0
        %733 = vmatpush1.msra.mxu0 0.0
        %734 = vmatprep.subr.mxu0 0.0
        %735 = vmatpush1.msra.mxu0 0.0
        %736 = vmatprep.subr.mxu0 0.0
        %737 = vmatpush1.msra.mxu0 0.0
        %738 = vmatprep.mubr.f32.mxu0 0.0
        %739 = vmatmul.mubr.f32.gmra.mrb[0].mxu0 %v642
        %v740 = vpop.f32.mrb[0].mxu0
        %v741 = vadd.f32 %v353, %v740
        %v742 = vpop.f32.mrb[0].mxu0
        %v743 = vadd.f32 %v355, %v742
        %744 = vdwg.mxu0
        %745 = vmatprep.subr.mxu0 %v654
        %746 = vmatpush1.msra.mxu0 %v651
        %747 = vmatprep.subr.mxu0 0.0
        %748 = vmatpush1.msra.mxu0 0.0
        %749 = vmatprep.subr.mxu0 0.0
        %750 = vmatpush1.msra.mxu0 0.0
        %751 = vmatprep.subr.mxu0 0.0
        %752 = vmatpush1.msra.mxu0 0.0
        %753 = vmatprep.subr.mxu0 0.0
        %754 = vmatpush1.msra.mxu0 0.0
        %755 = vmatprep.subr.mxu0 0.0
        %756 = vmatpush1.msra.mxu0 0.0
        %757 = vmatprep.subr.mxu0 0.0
        %758 = vmatpush1.msra.mxu0 0.0
        %759 = vmatprep.subr.mxu0 0.0
        %760 = vmatpush1.msra.mxu0 0.0
        %761 = vmatprep.subr.mxu0 0.0
        %762 = vmatpush1.msra.mxu0 0.0
        %763 = vmatprep.subr.mxu0 0.0
        %764 = vmatpush1.msra.mxu0 0.0
        %765 = vmatprep.subr.mxu0 0.0
        %766 = vmatpush1.msra.mxu0 0.0
        %767 = vmatprep.subr.mxu0 0.0
        %768 = vmatpush1.msra.mxu0 0.0
        %769 = vmatprep.subr.mxu0 0.0
        %770 = vmatpush1.msra.mxu0 0.0
        %771 = vmatprep.subr.mxu0 0.0
        %772 = vmatpush1.msra.mxu0 0.0
        %773 = vmatprep.subr.mxu0 0.0
        %774 = vmatpush1.msra.mxu0 0.0
        %775 = vmatprep.subr.mxu0 0.0
        %776 = vmatpush1.msra.mxu0 0.0
        %777 = vmatprep.subr.mxu0 0.0
        %778 = vmatpush1.msra.mxu0 0.0
        %779 = vmatprep.subr.mxu0 0.0
        %780 = vmatpush1.msra.mxu0 0.0
        %781 = vmatprep.subr.mxu0 0.0
        %782 = vmatpush1.msra.mxu0 0.0
        %783 = vmatprep.subr.mxu0 0.0
        %784 = vmatpush1.msra.mxu0 0.0
        %785 = vmatprep.subr.mxu0 0.0
        %786 = vmatpush1.msra.mxu0 0.0
        %787 = vmatprep.subr.mxu0 0.0
        %788 = vmatpush1.msra.mxu0 0.0
        %789 = vmatprep.subr.mxu0 0.0
        %790 = vmatpush1.msra.mxu0 0.0
        %791 = vmatprep.subr.mxu0 0.0
        %792 = vmatpush1.msra.mxu0 0.0
        %793 = vmatprep.subr.mxu0 0.0
        %794 = vmatpush1.msra.mxu0 0.0
        %795 = vmatprep.subr.mxu0 0.0
        %796 = vmatpush1.msra.mxu0 0.0
        %797 = vmatprep.subr.mxu0 0.0
        %798 = vmatpush1.msra.mxu0 0.0
        %799 = vmatprep.subr.mxu0 0.0
        %800 = vmatpush1.msra.mxu0 0.0
        %801 = vmatprep.subr.mxu0 0.0
        %802 = vmatpush1.msra.mxu0 0.0
        %803 = vmatprep.subr.mxu0 0.0
        %804 = vmatpush1.msra.mxu0 0.0
        %805 = vmatprep.subr.mxu0 0.0
        %806 = vmatpush1.msra.mxu0 0.0
        %807 = vmatprep.subr.mxu0 0.0
        %808 = vmatpush1.msra.mxu0 0.0
        %809 = vmatprep.mubr.f32.mxu0 0.0
        %810 = vmatmul.mubr.f32.gmra.mrb[0].mxu0 %v642
        %v811 = vpop.f32.mrb[0].mxu0
        %v812 = vadd.f32 %v424, %v811
        %v813 = vpop.f32.mrb[0].mxu0
        %v814 = vadd.f32 %v426, %v813
        %815 = vdwg.mxu0
        %816 = vmatprep.subr.mxu0 %v660
        %817 = vmatpush1.msra.mxu0 %v657
        %818 = vmatprep.subr.mxu0 0.0
        %819 = vmatpush1.msra.mxu0 0.0
        %820 = vmatprep.subr.mxu0 0.0
        %821 = vmatpush1.msra.mxu0 0.0
        %822 = vmatprep.subr.mxu0 0.0
        %823 = vmatpush1.msra.mxu0 0.0
        %824 = vmatprep.subr.mxu0 0.0
        %825 = vmatpush1.msra.mxu0 0.0
        %826 = vmatprep.subr.mxu0 0.0
        %827 = vmatpush1.msra.mxu0 0.0
        %828 = vmatprep.subr.mxu0 0.0
        %829 = vmatpush1.msra.mxu0 0.0
        %830 = vmatprep.subr.mxu0 0.0
        %831 = vmatpush1.msra.mxu0 0.0
        %832 = vmatprep.subr.mxu0 0.0
        %833 = vmatpush1.msra.mxu0 0.0
        %834 = vmatprep.subr.mxu0 0.0
        %835 = vmatpush1.msra.mxu0 0.0
        %836 = vmatprep.subr.mxu0 0.0
        %837 = vmatpush1.msra.mxu0 0.0
        %838 = vmatprep.subr.mxu0 0.0
        %839 = vmatpush1.msra.mxu0 0.0
        %840 = vmatprep.subr.mxu0 0.0
        %841 = vmatpush1.msra.mxu0 0.0
        %842 = vmatprep.subr.mxu0 0.0
        %843 = vmatpush1.msra.mxu0 0.0
        %844 = vmatprep.subr.mxu0 0.0
        %845 = vmatpush1.msra.mxu0 0.0
        %846 = vmatprep.subr.mxu0 0.0
        %847 = vmatpush1.msra.mxu0 0.0
        %848 = vmatprep.subr.mxu0 0.0
        %849 = vmatpush1.msra.mxu0 0.0
        %850 = vmatprep.subr.mxu0 0.0
        %851 = vmatpush1.msra.mxu0 0.0
        %852 = vmatprep.subr.mxu0 0.0
        %853 = vmatpush1.msra.mxu0 0.0
        %854 = vmatprep.subr.mxu0 0.0
        %855 = vmatpush1.msra.mxu0 0.0
        %856 = vmatprep.subr.mxu0 0.0
        %857 = vmatpush1.msra.mxu0 0.0
        %858 = vmatprep.subr.mxu0 0.0
        %859 = vmatpush1.msra.mxu0 0.0
        %860 = vmatprep.subr.mxu0 0.0
        %861 = vmatpush1.msra.mxu0 0.0
        %862 = vmatprep.subr.mxu0 0.0
        %863 = vmatpush1.msra.mxu0 0.0
        %864 = vmatprep.subr.mxu0 0.0
        %865 = vmatpush1.msra.mxu0 0.0
        %866 = vmatprep.subr.mxu0 0.0
        %867 = vmatpush1.msra.mxu0 0.0
        %868 = vmatprep.subr.mxu0 0.0
        %869 = vmatpush1.msra.mxu0 0.0
        %870 = vmatprep.subr.mxu0 0.0
        %871 = vmatpush1.msra.mxu0 0.0
        %872 = vmatprep.subr.mxu0 0.0
        %873 = vmatpush1.msra.mxu0 0.0
        %874 = vmatprep.subr.mxu0 0.0
        %875 = vmatpush1.msra.mxu0 0.0
        %876 = vmatprep.subr.mxu0 0.0
        %877 = vmatpush1.msra.mxu0 0.0
        %878 = vmatprep.subr.mxu0 0.0
        %879 = vmatpush1.msra.mxu0 0.0
        %880 = vmatprep.mubr.f32.mxu0 0.0
        %881 = vmatmul.mubr.f32.gmra.mrb[0].mxu0 %v642
        %v882 = vpop.f32.mrb[0].mxu0
        %v883 = vadd.f32 %v495, %v882
        %v884 = vpop.f32.mrb[0].mxu0
        %v885 = vadd.f32 %v497, %v884
        %886 = vdwg.mxu0
        %887 = vmatprep.subr.mxu0 %v666
        %888 = vmatpush1.msra.mxu0 %v663
        %889 = vmatprep.subr.mxu0 0.0
        %890 = vmatpush1.msra.mxu0 0.0
        %891 = vmatprep.subr.mxu0 0.0
        %892 = vmatpush1.msra.mxu0 0.0
        %893 = vmatprep.subr.mxu0 0.0
        %894 = vmatpush1.msra.mxu0 0.0
        %895 = vmatprep.subr.mxu0 0.0
        %896 = vmatpush1.msra.mxu0 0.0
        %897 = vmatprep.subr.mxu0 0.0
        %898 = vmatpush1.msra.mxu0 0.0
        %899 = vmatprep.subr.mxu0 0.0
        %900 = vmatpush1.msra.mxu0 0.0
        %901 = vmatprep.subr.mxu0 0.0
        %902 = vmatpush1.msra.mxu0 0.0
        %903 = vmatprep.subr.mxu0 0.0
        %904 = vmatpush1.msra.mxu0 0.0
        %905 = vmatprep.subr.mxu0 0.0
        %906 = vmatpush1.msra.mxu0 0.0
        %907 = vmatprep.subr.mxu0 0.0
        %908 = vmatpush1.msra.mxu0 0.0
        %909 = vmatprep.subr.mxu0 0.0
        %910 = vmatpush1.msra.mxu0 0.0
        %911 = vmatprep.subr.mxu0 0.0
        %912 = vmatpush1.msra.mxu0 0.0
        %913 = vmatprep.subr.mxu0 0.0
        %914 = vmatpush1.msra.mxu0 0.0
        %915 = vmatprep.subr.mxu0 0.0
        %916 = vmatpush1.msra.mxu0 0.0
        %917 = vmatprep.subr.mxu0 0.0
        %918 = vmatpush1.msra.mxu0 0.0
        %919 = vmatprep.subr.mxu0 0.0
        %920 = vmatpush1.msra.mxu0 0.0
        %921 = vmatprep.subr.mxu0 0.0
        %922 = vmatpush1.msra.mxu0 0.0
        %923 = vmatprep.subr.mxu0 0.0
        %924 = vmatpush1.msra.mxu0 0.0
        %925 = vmatprep.subr.mxu0 0.0
        %926 = vmatpush1.msra.mxu0 0.0
        %927 = vmatprep.subr.mxu0 0.0
        %928 = vmatpush1.msra.mxu0 0.0
        %929 = vmatprep.subr.mxu0 0.0
        %930 = vmatpush1.msra.mxu0 0.0
        %931 = vmatprep.subr.mxu0 0.0
        %932 = vmatpush1.msra.mxu0 0.0
        %933 = vmatprep.subr.mxu0 0.0
        %934 = vmatpush1.msra.mxu0 0.0
        %935 = vmatprep.subr.mxu0 0.0
        %936 = vmatpush1.msra.mxu0 0.0
        %937 = vmatprep.subr.mxu0 0.0
        %938 = vmatpush1.msra.mxu0 0.0
        %939 = vmatprep.subr.mxu0 0.0
        %940 = vmatpush1.msra.mxu0 0.0
        %941 = vmatprep.subr.mxu0 0.0
        %942 = vmatpush1.msra.mxu0 0.0
        %943 = vmatprep.subr.mxu0 0.0
        %944 = vmatpush1.msra.mxu0 0.0
        %945 = vmatprep.subr.mxu0 0.0
        %946 = vmatpush1.msra.mxu0 0.0
        %947 = vmatprep.subr.mxu0 0.0
        %948 = vmatpush1.msra.mxu0 0.0
        %949 = vmatprep.subr.mxu0 0.0
        %950 = vmatpush1.msra.mxu0 0.0
        %951 = vmatprep.mubr.f32.mxu0 0.0
        %952 = vmatmul.mubr.f32.gmra.mrb[0].mxu0 %v642
        %v953 = vpop.f32.mrb[0].mxu0
        %v954 = vadd.f32 %v566, %v953
        %v955 = vpop.f32.mrb[0].mxu0
        %v956 = vadd.f32 %v568, %v955
        %957 = vdwg.mxu0
        %958 = vmatprep.subr.mxu0 %v672
        %959 = vmatpush1.msra.mxu0 %v669
        %960 = vmatprep.subr.mxu0 0.0
        %961 = vmatpush1.msra.mxu0 0.0
        %962 = vmatprep.subr.mxu0 0.0
        %963 = vmatpush1.msra.mxu0 0.0
        %964 = vmatprep.subr.mxu0 0.0
        %965 = vmatpush1.msra.mxu0 0.0
        %966 = vmatprep.subr.mxu0 0.0
        %967 = vmatpush1.msra.mxu0 0.0
        %968 = vmatprep.subr.mxu0 0.0
        %969 = vmatpush1.msra.mxu0 0.0
        %970 = vmatprep.subr.mxu0 0.0
        %971 = vmatpush1.msra.mxu0 0.0
        %972 = vmatprep.subr.mxu0 0.0
        %973 = vmatpush1.msra.mxu0 0.0
        %974 = vmatprep.subr.mxu0 0.0
        %975 = vmatpush1.msra.mxu0 0.0
        %976 = vmatprep.subr.mxu0 0.0
        %977 = vmatpush1.msra.mxu0 0.0
        %978 = vmatprep.subr.mxu0 0.0
        %979 = vmatpush1.msra.mxu0 0.0
        %980 = vmatprep.subr.mxu0 0.0
        %981 = vmatpush1.msra.mxu0 0.0
        %982 = vmatprep.subr.mxu0 0.0
        %983 = vmatpush1.msra.mxu0 0.0
        %984 = vmatprep.subr.mxu0 0.0
        %985 = vmatpush1.msra.mxu0 0.0
        %986 = vmatprep.subr.mxu0 0.0
        %987 = vmatpush1.msra.mxu0 0.0
        %988 = vmatprep.subr.mxu0 0.0
        %989 = vmatpush1.msra.mxu0 0.0
        %990 = vmatprep.subr.mxu0 0.0
        %991 = vmatpush1.msra.mxu0 0.0
        %992 = vmatprep.subr.mxu0 0.0
        %993 = vmatpush1.msra.mxu0 0.0
        %994 = vmatprep.subr.mxu0 0.0
        %995 = vmatpush1.msra.mxu0 0.0
        %996 = vmatprep.subr.mxu0 0.0
        %997 = vmatpush1.msra.mxu0 0.0
        %998 = vmatprep.subr.mxu0 0.0
        %999 = vmatpush1.msra.mxu0 0.0
        %1000 = vmatprep.subr.mxu0 0.0
        %1001 = vmatpush1.msra.mxu0 0.0
        %1002 = vmatprep.subr.mxu0 0.0
        %1003 = vmatpush1.msra.mxu0 0.0
        %1004 = vmatprep.subr.mxu0 0.0
        %1005 = vmatpush1.msra.mxu0 0.0
        %1006 = vmatprep.subr.mxu0 0.0
        %1007 = vmatpush1.msra.mxu0 0.0
        %1008 = vmatprep.subr.mxu0 0.0
        %1009 = vmatpush1.msra.mxu0 0.0
        %1010 = vmatprep.subr.mxu0 0.0
        %1011 = vmatpush1.msra.mxu0 0.0
        %1012 = vmatprep.subr.mxu0 0.0
        %1013 = vmatpush1.msra.mxu0 0.0
        %1014 = vmatprep.subr.mxu0 0.0
        %1015 = vmatpush1.msra.mxu0 0.0
        %1016 = vmatprep.subr.mxu0 0.0
        %1017 = vmatpush1.msra.mxu0 0.0
        %1018 = vmatprep.subr.mxu0 0.0
        %1019 = vmatpush1.msra.mxu0 0.0
        %1020 = vmatprep.subr.mxu0 0.0
        %1021 = vmatpush1.msra.mxu0 0.0
        %1022 = vmatprep.mubr.f32.mxu0 0.0
        %1023 = vmatmul.mubr.f32.gmra.mrb[0].mxu0 %v642
        %v1024 = vpop.f32.mrb[0].mxu0
        %v1025 = vadd.f32 %v637, %v1024
        %v1026 = vpop.f32.mrb[0].mxu0
        %v1027 = vadd.f32 %v639, %v1026
        %1028 = vdwg.mxu0
        %1029 = vrot.lane.b32.xlu0 %v174, 33
        %v1030 = vpop.permute.xlu0 %1029
        %1031 = vrot.lane.b32.xlu0 %v175, 33
        %v1032 = vpop.permute.xlu0 %1031
        %1033 = vrot.lane.b32.xlu0 %v176, 33
        %v1034 = vpop.permute.xlu0 %1033
        %1035 = vrot.lane.b32.xlu0 %v177, 33
        %v1036 = vpop.permute.xlu0 %1035
        %1037 = vrot.lane.b32.xlu0 %v178, 33
        %v1038 = vpop.permute.xlu0 %1037
        %1039 = vrot.lane.b32.xlu0 %v179, 33
        %v1040 = vpop.permute.xlu0 %1039
        %1041 = vrot.lane.b32.xlu0 %v180, 33
        %v1042 = vpop.permute.xlu0 %1041
        %1043 = vrot.lane.b32.xlu0 %v181, 33
        %v1044 = vpop.permute.xlu0 %1043
        %1045 = vrot.lane.b32.xlu0 %v182, 33
        %v1046 = vpop.permute.xlu0 %1045
        %1047 = vrot.lane.b32.xlu0 %v183, 33
        %v1048 = vpop.permute.xlu0 %1047
        %vm1049 = vcmp.lt.s32.totalorder %v205, 33
        %v1050 = vsel %vm1049, %v1046, %v1048
        %v1051 = vsel %vm1049, %v1044, %v1046
        %v1052 = vsel %vm1049, %v1042, %v1044
        %v1053 = vsel %vm1049, %v1040, %v1042
        %v1054 = vsel %vm1049, %v1038, %v1040
        %v1055 = vsel %vm1049, %v1036, %v1038
        %v1056 = vsel %vm1049, %v1034, %v1036
        %v1057 = vsel %vm1049, %v1032, %v1034
        %v1058 = vsel %vm1049, %v1030, %v1032
        %v1059 = vsel %vm1049, %v1048, %v1030
        %s1060 = scalar_lea.vmem %s1, 16
        %v1061 = vld [vmem:[%s1060] sm:$0xff]
        %v1063 = vsel %vm251, %v1061, 0
        %v1066 = vsel %vm255, %v1059, 0
        %v1069 = vsel %vm255, %v1058, 0
        %v1072 = vsel %vm255, %v1057, 0
        %v1075 = vsel %vm255, %v1056, 0
        %v1078 = vsel %vm255, %v1055, 0
        %v1081 = vsel %vm255, %v1054, 0
        %v1084 = vsel %vm255, %v1053, 0
        %v1087 = vsel %vm255, %v1052, 0
        %v1090 = vsel %vm255, %v1051, 0
        %v1093 = vsel %vm255, %v1050, 0
        %1095 = vmatprep.subr.mxu0 %v1069
        %1096 = vmatpush1.msra.mxu0 %v1066
        %1097 = vmatprep.subr.mxu0 0.0
        %1098 = vmatpush1.msra.mxu0 0.0
        %1099 = vmatprep.subr.mxu0 0.0
        %1100 = vmatpush1.msra.mxu0 0.0
        %1101 = vmatprep.subr.mxu0 0.0
        %1102 = vmatpush1.msra.mxu0 0.0
        %1103 = vmatprep.subr.mxu0 0.0
        %1104 = vmatpush1.msra.mxu0 0.0
        %1105 = vmatprep.subr.mxu0 0.0
        %1106 = vmatpush1.msra.mxu0 0.0
        %1107 = vmatprep.subr.mxu0 0.0
        %1108 = vmatpush1.msra.mxu0 0.0
        %1109 = vmatprep.subr.mxu0 0.0
        %1110 = vmatpush1.msra.mxu0 0.0
        %1111 = vmatprep.subr.mxu0 0.0
        %1112 = vmatpush1.msra.mxu0 0.0
        %1113 = vmatprep.subr.mxu0 0.0
        %1114 = vmatpush1.msra.mxu0 0.0
        %1115 = vmatprep.subr.mxu0 0.0
        %1116 = vmatpush1.msra.mxu0 0.0
        %1117 = vmatprep.subr.mxu0 0.0
        %1118 = vmatpush1.msra.mxu0 0.0
        %1119 = vmatprep.subr.mxu0 0.0
        %1120 = vmatpush1.msra.mxu0 0.0
        %1121 = vmatprep.subr.mxu0 0.0
        %1122 = vmatpush1.msra.mxu0 0.0
        %1123 = vmatprep.subr.mxu0 0.0
        %1124 = vmatpush1.msra.mxu0 0.0
        %1125 = vmatprep.subr.mxu0 0.0
        %1126 = vmatpush1.msra.mxu0 0.0
        %1127 = vmatprep.subr.mxu0 0.0
        %1128 = vmatpush1.msra.mxu0 0.0
        %1129 = vmatprep.subr.mxu0 0.0
        %1130 = vmatpush1.msra.mxu0 0.0
        %1131 = vmatprep.subr.mxu0 0.0
        %1132 = vmatpush1.msra.mxu0 0.0
        %1133 = vmatprep.subr.mxu0 0.0
        %1134 = vmatpush1.msra.mxu0 0.0
        %1135 = vmatprep.subr.mxu0 0.0
        %1136 = vmatpush1.msra.mxu0 0.0
        %1137 = vmatprep.subr.mxu0 0.0
        %1138 = vmatpush1.msra.mxu0 0.0
        %1139 = vmatprep.subr.mxu0 0.0
        %1140 = vmatpush1.msra.mxu0 0.0
        %1141 = vmatprep.subr.mxu0 0.0
        %1142 = vmatpush1.msra.mxu0 0.0
        %1143 = vmatprep.subr.mxu0 0.0
        %1144 = vmatpush1.msra.mxu0 0.0
        %1145 = vmatprep.subr.mxu0 0.0
        %1146 = vmatpush1.msra.mxu0 0.0
        %1147 = vmatprep.subr.mxu0 0.0
        %1148 = vmatpush1.msra.mxu0 0.0
        %1149 = vmatprep.subr.mxu0 0.0
        %1150 = vmatpush1.msra.mxu0 0.0
        %1151 = vmatprep.subr.mxu0 0.0
        %1152 = vmatpush1.msra.mxu0 0.0
        %1153 = vmatprep.subr.mxu0 0.0
        %1154 = vmatpush1.msra.mxu0 0.0
        %1155 = vmatprep.subr.mxu0 0.0
        %1156 = vmatpush1.msra.mxu0 0.0
        %1157 = vmatprep.subr.mxu0 0.0
        %1158 = vmatpush1.msra.mxu0 0.0
        %1159 = vmatprep.mubr.f32.mxu0 0.0
        %1160 = vmatmul.mubr.f32.gmra.mrb[0].mxu0 %v1063
        %v1161 = vpop.f32.mrb[0].mxu0
        %v1162 = vadd.f32 0.0, %v1161
        %v1163 = vpop.f32.mrb[0].mxu0
        %v1164 = vadd.f32 0.0, %v1163
        %1165 = vdwg.mxu0
        %1166 = vmatprep.subr.mxu0 %v1075
        %1167 = vmatpush1.msra.mxu0 %v1072
        %1168 = vmatprep.subr.mxu0 0.0
        %1169 = vmatpush1.msra.mxu0 0.0
        %1170 = vmatprep.subr.mxu0 0.0
        %1171 = vmatpush1.msra.mxu0 0.0
        %1172 = vmatprep.subr.mxu0 0.0
        %1173 = vmatpush1.msra.mxu0 0.0
        %1174 = vmatprep.subr.mxu0 0.0
        %1175 = vmatpush1.msra.mxu0 0.0
        %1176 = vmatprep.subr.mxu0 0.0
        %1177 = vmatpush1.msra.mxu0 0.0
        %1178 = vmatprep.subr.mxu0 0.0
        %1179 = vmatpush1.msra.mxu0 0.0
        %1180 = vmatprep.subr.mxu0 0.0
        %1181 = vmatpush1.msra.mxu0 0.0
        %1182 = vmatprep.subr.mxu0 0.0
        %1183 = vmatpush1.msra.mxu0 0.0
        %1184 = vmatprep.subr.mxu0 0.0
        %1185 = vmatpush1.msra.mxu0 0.0
        %1186 = vmatprep.subr.mxu0 0.0
        %1187 = vmatpush1.msra.mxu0 0.0
        %1188 = vmatprep.subr.mxu0 0.0
        %1189 = vmatpush1.msra.mxu0 0.0
        %1190 = vmatprep.subr.mxu0 0.0
        %1191 = vmatpush1.msra.mxu0 0.0
        %1192 = vmatprep.subr.mxu0 0.0
        %1193 = vmatpush1.msra.mxu0 0.0
        %1194 = vmatprep.subr.mxu0 0.0
        %1195 = vmatpush1.msra.mxu0 0.0
        %1196 = vmatprep.subr.mxu0 0.0
        %1197 = vmatpush1.msra.mxu0 0.0
        %1198 = vmatprep.subr.mxu0 0.0
        %1199 = vmatpush1.msra.mxu0 0.0
        %1200 = vmatprep.subr.mxu0 0.0
        %1201 = vmatpush1.msra.mxu0 0.0
        %1202 = vmatprep.subr.mxu0 0.0
        %1203 = vmatpush1.msra.mxu0 0.0
        %1204 = vmatprep.subr.mxu0 0.0
        %1205 = vmatpush1.msra.mxu0 0.0
        %1206 = vmatprep.subr.mxu0 0.0
        %1207 = vmatpush1.msra.mxu0 0.0
        %1208 = vmatprep.subr.mxu0 0.0
        %1209 = vmatpush1.msra.mxu0 0.0
        %1210 = vmatprep.subr.mxu0 0.0
        %1211 = vmatpush1.msra.mxu0 0.0
        %1212 = vmatprep.subr.mxu0 0.0
        %1213 = vmatpush1.msra.mxu0 0.0
        %1214 = vmatprep.subr.mxu0 0.0
        %1215 = vmatpush1.msra.mxu0 0.0
        %1216 = vmatprep.subr.mxu0 0.0
        %1217 = vmatpush1.msra.mxu0 0.0
        %1218 = vmatprep.subr.mxu0 0.0
        %1219 = vmatpush1.msra.mxu0 0.0
        %1220 = vmatprep.subr.mxu0 0.0
        %1221 = vmatpush1.msra.mxu0 0.0
        %1222 = vmatprep.subr.mxu0 0.0
        %1223 = vmatpush1.msra.mxu0 0.0
        %1224 = vmatprep.subr.mxu0 0.0
        %1225 = vmatpush1.msra.mxu0 0.0
        %1226 = vmatprep.subr.mxu0 0.0
        %1227 = vmatpush1.msra.mxu0 0.0
        %1228 = vmatprep.subr.mxu0 0.0
        %1229 = vmatpush1.msra.mxu0 0.0
        %1230 = vmatprep.mubr.f32.mxu0 0.0
        %1231 = vmatmul.mubr.f32.gmra.mrb[0].mxu0 %v1063
        %v1232 = vpop.f32.mrb[0].mxu0
        %v1233 = vadd.f32 0.0, %v1232
        %v1234 = vpop.f32.mrb[0].mxu0
        %v1235 = vadd.f32 0.0, %v1234
        %1236 = vdwg.mxu0
        %1237 = vmatprep.subr.mxu0 %v1081
        %1238 = vmatpush1.msra.mxu0 %v1078
        %1239 = vmatprep.subr.mxu0 0.0
        %1240 = vmatpush1.msra.mxu0 0.0
        %1241 = vmatprep.subr.mxu0 0.0
        %1242 = vmatpush1.msra.mxu0 0.0
        %1243 = vmatprep.subr.mxu0 0.0
        %1244 = vmatpush1.msra.mxu0 0.0
        %1245 = vmatprep.subr.mxu0 0.0
        %1246 = vmatpush1.msra.mxu0 0.0
        %1247 = vmatprep.subr.mxu0 0.0
        %1248 = vmatpush1.msra.mxu0 0.0
        %1249 = vmatprep.subr.mxu0 0.0
        %1250 = vmatpush1.msra.mxu0 0.0
        %1251 = vmatprep.subr.mxu0 0.0
        %1252 = vmatpush1.msra.mxu0 0.0
        %1253 = vmatprep.subr.mxu0 0.0
        %1254 = vmatpush1.msra.mxu0 0.0
        %1255 = vmatprep.subr.mxu0 0.0
        %1256 = vmatpush1.msra.mxu0 0.0
        %1257 = vmatprep.subr.mxu0 0.0
        %1258 = vmatpush1.msra.mxu0 0.0
        %1259 = vmatprep.subr.mxu0 0.0
        %1260 = vmatpush1.msra.mxu0 0.0
        %1261 = vmatprep.subr.mxu0 0.0
        %1262 = vmatpush1.msra.mxu0 0.0
        %1263 = vmatprep.subr.mxu0 0.0
        %1264 = vmatpush1.msra.mxu0 0.0
        %1265 = vmatprep.subr.mxu0 0.0
        %1266 = vmatpush1.msra.mxu0 0.0
        %1267 = vmatprep.subr.mxu0 0.0
        %1268 = vmatpush1.msra.mxu0 0.0
        %1269 = vmatprep.subr.mxu0 0.0
        %1270 = vmatpush1.msra.mxu0 0.0
        %1271 = vmatprep.subr.mxu0 0.0
        %1272 = vmatpush1.msra.mxu0 0.0
        %1273 = vmatprep.subr.mxu0 0.0
        %1274 = vmatpush1.msra.mxu0 0.0
        %1275 = vmatprep.subr.mxu0 0.0
        %1276 = vmatpush1.msra.mxu0 0.0
        %1277 = vmatprep.subr.mxu0 0.0
        %1278 = vmatpush1.msra.mxu0 0.0
        %1279 = vmatprep.subr.mxu0 0.0
        %1280 = vmatpush1.msra.mxu0 0.0
        %1281 = vmatprep.subr.mxu0 0.0
        %1282 = vmatpush1.msra.mxu0 0.0
        %1283 = vmatprep.subr.mxu0 0.0
        %1284 = vmatpush1.msra.mxu0 0.0
        %1285 = vmatprep.subr.mxu0 0.0
        %1286 = vmatpush1.msra.mxu0 0.0
        %1287 = vmatprep.subr.mxu0 0.0
        %1288 = vmatpush1.msra.mxu0 0.0
        %1289 = vmatprep.subr.mxu0 0.0
        %1290 = vmatpush1.msra.mxu0 0.0
        %1291 = vmatprep.subr.mxu0 0.0
        %1292 = vmatpush1.msra.mxu0 0.0
        %1293 = vmatprep.subr.mxu0 0.0
        %1294 = vmatpush1.msra.mxu0 0.0
        %1295 = vmatprep.subr.mxu0 0.0
        %1296 = vmatpush1.msra.mxu0 0.0
        %1297 = vmatprep.subr.mxu0 0.0
        %1298 = vmatpush1.msra.mxu0 0.0
        %1299 = vmatprep.subr.mxu0 0.0
        %1300 = vmatpush1.msra.mxu0 0.0
        %1301 = vmatprep.mubr.f32.mxu0 0.0
        %1302 = vmatmul.mubr.f32.gmra.mrb[0].mxu0 %v1063
        %v1303 = vpop.f32.mrb[0].mxu0
        %v1304 = vadd.f32 0.0, %v1303
        %v1305 = vpop.f32.mrb[0].mxu0
        %v1306 = vadd.f32 0.0, %v1305
        %1307 = vdwg.mxu0
        %1308 = vmatprep.subr.mxu0 %v1087
        %1309 = vmatpush1.msra.mxu0 %v1084
        %1310 = vmatprep.subr.mxu0 0.0
        %1311 = vmatpush1.msra.mxu0 0.0
        %1312 = vmatprep.subr.mxu0 0.0
        %1313 = vmatpush1.msra.mxu0 0.0
        %1314 = vmatprep.subr.mxu0 0.0
        %1315 = vmatpush1.msra.mxu0 0.0
        %1316 = vmatprep.subr.mxu0 0.0
        %1317 = vmatpush1.msra.mxu0 0.0
        %1318 = vmatprep.subr.mxu0 0.0
        %1319 = vmatpush1.msra.mxu0 0.0
        %1320 = vmatprep.subr.mxu0 0.0
        %1321 = vmatpush1.msra.mxu0 0.0
        %1322 = vmatprep.subr.mxu0 0.0
        %1323 = vmatpush1.msra.mxu0 0.0
        %1324 = vmatprep.subr.mxu0 0.0
        %1325 = vmatpush1.msra.mxu0 0.0
        %1326 = vmatprep.subr.mxu0 0.0
        %1327 = vmatpush1.msra.mxu0 0.0
        %1328 = vmatprep.subr.mxu0 0.0
        %1329 = vmatpush1.msra.mxu0 0.0
        %1330 = vmatprep.subr.mxu0 0.0
        %1331 = vmatpush1.msra.mxu0 0.0
        %1332 = vmatprep.subr.mxu0 0.0
        %1333 = vmatpush1.msra.mxu0 0.0
        %1334 = vmatprep.subr.mxu0 0.0
        %1335 = vmatpush1.msra.mxu0 0.0
        %1336 = vmatprep.subr.mxu0 0.0
        %1337 = vmatpush1.msra.mxu0 0.0
        %1338 = vmatprep.subr.mxu0 0.0
        %1339 = vmatpush1.msra.mxu0 0.0
        %1340 = vmatprep.subr.mxu0 0.0
        %1341 = vmatpush1.msra.mxu0 0.0
        %1342 = vmatprep.subr.mxu0 0.0
        %1343 = vmatpush1.msra.mxu0 0.0
        %1344 = vmatprep.subr.mxu0 0.0
        %1345 = vmatpush1.msra.mxu0 0.0
        %1346 = vmatprep.subr.mxu0 0.0
        %1347 = vmatpush1.msra.mxu0 0.0
        %1348 = vmatprep.subr.mxu0 0.0
        %1349 = vmatpush1.msra.mxu0 0.0
        %1350 = vmatprep.subr.mxu0 0.0
        %1351 = vmatpush1.msra.mxu0 0.0
        %1352 = vmatprep.subr.mxu0 0.0
        %1353 = vmatpush1.msra.mxu0 0.0
        %1354 = vmatprep.subr.mxu0 0.0
        %1355 = vmatpush1.msra.mxu0 0.0
        %1356 = vmatprep.subr.mxu0 0.0
        %1357 = vmatpush1.msra.mxu0 0.0
        %1358 = vmatprep.subr.mxu0 0.0
        %1359 = vmatpush1.msra.mxu0 0.0
        %1360 = vmatprep.subr.mxu0 0.0
        %1361 = vmatpush1.msra.mxu0 0.0
        %1362 = vmatprep.subr.mxu0 0.0
        %1363 = vmatpush1.msra.mxu0 0.0
        %1364 = vmatprep.subr.mxu0 0.0
        %1365 = vmatpush1.msra.mxu0 0.0
        %1366 = vmatprep.subr.mxu0 0.0
        %1367 = vmatpush1.msra.mxu0 0.0
        %1368 = vmatprep.subr.mxu0 0.0
        %1369 = vmatpush1.msra.mxu0 0.0
        %1370 = vmatprep.subr.mxu0 0.0
        %1371 = vmatpush1.msra.mxu0 0.0
        %1372 = vmatprep.mubr.f32.mxu0 0.0
        %1373 = vmatmul.mubr.f32.gmra.mrb[0].mxu0 %v1063
        %v1374 = vpop.f32.mrb[0].mxu0
        %v1375 = vadd.f32 0.0, %v1374
        %v1376 = vpop.f32.mrb[0].mxu0
        %v1377 = vadd.f32 0.0, %v1376
        %1378 = vdwg.mxu0
        %1379 = vmatprep.subr.mxu0 %v1093
        %1380 = vmatpush1.msra.mxu0 %v1090
        %1381 = vmatprep.subr.mxu0 0.0
        %1382 = vmatpush1.msra.mxu0 0.0
        %1383 = vmatprep.subr.mxu0 0.0
        %1384 = vmatpush1.msra.mxu0 0.0
        %1385 = vmatprep.subr.mxu0 0.0
        %1386 = vmatpush1.msra.mxu0 0.0
        %1387 = vmatprep.subr.mxu0 0.0
        %1388 = vmatpush1.msra.mxu0 0.0
        %1389 = vmatprep.subr.mxu0 0.0
        %1390 = vmatpush1.msra.mxu0 0.0
        %1391 = vmatprep.subr.mxu0 0.0
        %1392 = vmatpush1.msra.mxu0 0.0
        %1393 = vmatprep.subr.mxu0 0.0
        %1394 = vmatpush1.msra.mxu0 0.0
        %1395 = vmatprep.subr.mxu0 0.0
        %1396 = vmatpush1.msra.mxu0 0.0
        %1397 = vmatprep.subr.mxu0 0.0
        %1398 = vmatpush1.msra.mxu0 0.0
        %1399 = vmatprep.subr.mxu0 0.0
        %1400 = vmatpush1.msra.mxu0 0.0
        %1401 = vmatprep.subr.mxu0 0.0
        %1402 = vmatpush1.msra.mxu0 0.0
        %1403 = vmatprep.subr.mxu0 0.0
        %1404 = vmatpush1.msra.mxu0 0.0
        %1405 = vmatprep.subr.mxu0 0.0
        %1406 = vmatpush1.msra.mxu0 0.0
        %1407 = vmatprep.subr.mxu0 0.0
        %1408 = vmatpush1.msra.mxu0 0.0
        %1409 = vmatprep.subr.mxu0 0.0
        %1410 = vmatpush1.msra.mxu0 0.0
        %1411 = vmatprep.subr.mxu0 0.0
        %1412 = vmatpush1.msra.mxu0 0.0
        %1413 = vmatprep.subr.mxu0 0.0
        %1414 = vmatpush1.msra.mxu0 0.0
        %1415 = vmatprep.subr.mxu0 0.0
        %1416 = vmatpush1.msra.mxu0 0.0
        %1417 = vmatprep.subr.mxu0 0.0
        %1418 = vmatpush1.msra.mxu0 0.0
        %1419 = vmatprep.subr.mxu0 0.0
        %1420 = vmatpush1.msra.mxu0 0.0
        %1421 = vmatprep.subr.mxu0 0.0
        %1422 = vmatpush1.msra.mxu0 0.0
        %1423 = vmatprep.subr.mxu0 0.0
        %1424 = vmatpush1.msra.mxu0 0.0
        %1425 = vmatprep.subr.mxu0 0.0
        %1426 = vmatpush1.msra.mxu0 0.0
        %1427 = vmatprep.subr.mxu0 0.0
        %1428 = vmatpush1.msra.mxu0 0.0
        %1429 = vmatprep.subr.mxu0 0.0
        %1430 = vmatpush1.msra.mxu0 0.0
        %1431 = vmatprep.subr.mxu0 0.0
        %1432 = vmatpush1.msra.mxu0 0.0
        %1433 = vmatprep.subr.mxu0 0.0
        %1434 = vmatpush1.msra.mxu0 0.0
        %1435 = vmatprep.subr.mxu0 0.0
        %1436 = vmatpush1.msra.mxu0 0.0
        %1437 = vmatprep.subr.mxu0 0.0
        %1438 = vmatpush1.msra.mxu0 0.0
        %1439 = vmatprep.subr.mxu0 0.0
        %1440 = vmatpush1.msra.mxu0 0.0
        %1441 = vmatprep.subr.mxu0 0.0
        %1442 = vmatpush1.msra.mxu0 0.0
        %1443 = vmatprep.mubr.f32.mxu0 0.0
        %1444 = vmatmul.mubr.f32.gmra.mrb[0].mxu0 %v1063
        %v1445 = vpop.f32.mrb[0].mxu0
        %v1446 = vadd.f32 0.0, %v1445
        %v1447 = vpop.f32.mrb[0].mxu0
        %v1448 = vadd.f32 0.0, %v1447
        %1449 = vdwg.mxu0
        %v1450 = vadd.f32 %v741, %v1162
        %v1451 = vadd.f32 %v743, %v1164
        %v1452 = vadd.f32 %v812, %v1233
        %v1453 = vadd.f32 %v814, %v1235
        %v1454 = vadd.f32 %v883, %v1304
        %v1455 = vadd.f32 %v885, %v1306
        %v1456 = vadd.f32 %v954, %v1375
        %v1457 = vadd.f32 %v956, %v1377
        %v1458 = vadd.f32 %v1025, %v1446
        %v1459 = vadd.f32 %v1027, %v1448
        %1460 = vrot.lane.b32.xlu0 %v174, 1
        %v1461 = vpop.permute.xlu0 %1460
        %1462 = vrot.lane.b32.xlu0 %v175, 1
        %v1463 = vpop.permute.xlu0 %1462
        %1464 = vrot.lane.b32.xlu0 %v176, 1
        %v1465 = vpop.permute.xlu0 %1464
        %1466 = vrot.lane.b32.xlu0 %v177, 1
        %v1467 = vpop.permute.xlu0 %1466
        %1468 = vrot.lane.b32.xlu0 %v178, 1
        %v1469 = vpop.permute.xlu0 %1468
        %1470 = vrot.lane.b32.xlu0 %v179, 1
        %v1471 = vpop.permute.xlu0 %1470
        %1472 = vrot.lane.b32.xlu0 %v180, 1
        %v1473 = vpop.permute.xlu0 %1472
        %1474 = vrot.lane.b32.xlu0 %v181, 1
        %v1475 = vpop.permute.xlu0 %1474
        %1476 = vrot.lane.b32.xlu0 %v182, 1
        %v1477 = vpop.permute.xlu0 %1476
        %1478 = vrot.lane.b32.xlu0 %v183, 1
        %v1479 = vpop.permute.xlu0 %1478
        %vm1480 = vcmp.lt.s32.totalorder %v205, 1
        %v1481 = vsel %vm1480, %v1477, %v1479
        %v1482 = vsel %vm1480, %v1475, %v1477
        %v1483 = vsel %vm1480, %v1473, %v1475
        %v1484 = vsel %vm1480, %v1471, %v1473
        %v1485 = vsel %vm1480, %v1469, %v1471
        %v1486 = vsel %vm1480, %v1467, %v1469
        %v1487 = vsel %vm1480, %v1465, %v1467
        %v1488 = vsel %vm1480, %v1463, %v1465
        %v1489 = vsel %vm1480, %v1461, %v1463
        %v1490 = vsel %vm1480, %v1479, %v1461
        %s1491 = scalar_lea.vmem %s1, 24
        %v1492 = vld [vmem:[%s1491] sm:$0xff]
        %v1494 = vsel %vm251, %v1492, 0
        %v1497 = vsel %vm255, %v1490, 0
        %v1500 = vsel %vm255, %v1489, 0
        %v1503 = vsel %vm255, %v1488, 0
        %v1506 = vsel %vm255, %v1487, 0
        %v1509 = vsel %vm255, %v1486, 0
        %v1512 = vsel %vm255, %v1485, 0
        %v1515 = vsel %vm255, %v1484, 0
        %v1518 = vsel %vm255, %v1483, 0
        %v1521 = vsel %vm255, %v1482, 0
        %v1524 = vsel %vm255, %v1481, 0
        %1526 = vmatprep.subr.mxu0 %v1500
        %1527 = vmatpush1.msra.mxu0 %v1497
        %1528 = vmatprep.subr.mxu0 0.0
        %1529 = vmatpush1.msra.mxu0 0.0
        %1530 = vmatprep.subr.mxu0 0.0
        %1531 = vmatpush1.msra.mxu0 0.0
        %1532 = vmatprep.subr.mxu0 0.0
        %1533 = vmatpush1.msra.mxu0 0.0
        %1534 = vmatprep.subr.mxu0 0.0
        %1535 = vmatpush1.msra.mxu0 0.0
        %1536 = vmatprep.subr.mxu0 0.0
        %1537 = vmatpush1.msra.mxu0 0.0
        %1538 = vmatprep.subr.mxu0 0.0
        %1539 = vmatpush1.msra.mxu0 0.0
        %1540 = vmatprep.subr.mxu0 0.0
        %1541 = vmatpush1.msra.mxu0 0.0
        %1542 = vmatprep.subr.mxu0 0.0
        %1543 = vmatpush1.msra.mxu0 0.0
        %1544 = vmatprep.subr.mxu0 0.0
        %1545 = vmatpush1.msra.mxu0 0.0
        %1546 = vmatprep.subr.mxu0 0.0
        %1547 = vmatpush1.msra.mxu0 0.0
        %1548 = vmatprep.subr.mxu0 0.0
        %1549 = vmatpush1.msra.mxu0 0.0
        %1550 = vmatprep.subr.mxu0 0.0
        %1551 = vmatpush1.msra.mxu0 0.0
        %1552 = vmatprep.subr.mxu0 0.0
        %1553 = vmatpush1.msra.mxu0 0.0
        %1554 = vmatprep.subr.mxu0 0.0
        %1555 = vmatpush1.msra.mxu0 0.0
        %1556 = vmatprep.subr.mxu0 0.0
        %1557 = vmatpush1.msra.mxu0 0.0
        %1558 = vmatprep.subr.mxu0 0.0
        %1559 = vmatpush1.msra.mxu0 0.0
        %1560 = vmatprep.subr.mxu0 0.0
        %1561 = vmatpush1.msra.mxu0 0.0
        %1562 = vmatprep.subr.mxu0 0.0
        %1563 = vmatpush1.msra.mxu0 0.0
        %1564 = vmatprep.subr.mxu0 0.0
        %1565 = vmatpush1.msra.mxu0 0.0
        %1566 = vmatprep.subr.mxu0 0.0
        %1567 = vmatpush1.msra.mxu0 0.0
        %1568 = vmatprep.subr.mxu0 0.0
        %1569 = vmatpush1.msra.mxu0 0.0
        %1570 = vmatprep.subr.mxu0 0.0
        %1571 = vmatpush1.msra.mxu0 0.0
        %1572 = vmatprep.subr.mxu0 0.0
        %1573 = vmatpush1.msra.mxu0 0.0
        %1574 = vmatprep.subr.mxu0 0.0
        %1575 = vmatpush1.msra.mxu0 0.0
        %1576 = vmatprep.subr.mxu0 0.0
        %1577 = vmatpush1.msra.mxu0 0.0
        %1578 = vmatprep.subr.mxu0 0.0
        %1579 = vmatpush1.msra.mxu0 0.0
        %1580 = vmatprep.subr.mxu0 0.0
        %1581 = vmatpush1.msra.mxu0 0.0
        %1582 = vmatprep.subr.mxu0 0.0
        %1583 = vmatpush1.msra.mxu0 0.0
        %1584 = vmatprep.subr.mxu0 0.0
        %1585 = vmatpush1.msra.mxu0 0.0
        %1586 = vmatprep.subr.mxu0 0.0
        %1587 = vmatpush1.msra.mxu0 0.0
        %1588 = vmatprep.subr.mxu0 0.0
        %1589 = vmatpush1.msra.mxu0 0.0
        %1590 = vmatprep.mubr.f32.mxu0 0.0
        %1591 = vmatmul.mubr.f32.gmra.mrb[0].mxu0 %v1494
        %v1592 = vpop.f32.mrb[0].mxu0
        %v1593 = vadd.f32 0.0, %v1592
        %v1594 = vpop.f32.mrb[0].mxu0
        %v1595 = vadd.f32 0.0, %v1594
        %1596 = vdwg.mxu0
        %1597 = vmatprep.subr.mxu0 %v1506
        %1598 = vmatpush1.msra.mxu0 %v1503
        %1599 = vmatprep.subr.mxu0 0.0
        %1600 = vmatpush1.msra.mxu0 0.0
        %1601 = vmatprep.subr.mxu0 0.0
        %1602 = vmatpush1.msra.mxu0 0.0
        %1603 = vmatprep.subr.mxu0 0.0
        %1604 = vmatpush1.msra.mxu0 0.0
        %1605 = vmatprep.subr.mxu0 0.0
        %1606 = vmatpush1.msra.mxu0 0.0
        %1607 = vmatprep.subr.mxu0 0.0
        %1608 = vmatpush1.msra.mxu0 0.0
        %1609 = vmatprep.subr.mxu0 0.0
        %1610 = vmatpush1.msra.mxu0 0.0
        %1611 = vmatprep.subr.mxu0 0.0
        %1612 = vmatpush1.msra.mxu0 0.0
        %1613 = vmatprep.subr.mxu0 0.0
        %1614 = vmatpush1.msra.mxu0 0.0
        %1615 = vmatprep.subr.mxu0 0.0
        %1616 = vmatpush1.msra.mxu0 0.0
        %1617 = vmatprep.subr.mxu0 0.0
        %1618 = vmatpush1.msra.mxu0 0.0
        %1619 = vmatprep.subr.mxu0 0.0
        %1620 = vmatpush1.msra.mxu0 0.0
        %1621 = vmatprep.subr.mxu0 0.0
        %1622 = vmatpush1.msra.mxu0 0.0
        %1623 = vmatprep.subr.mxu0 0.0
        %1624 = vmatpush1.msra.mxu0 0.0
        %1625 = vmatprep.subr.mxu0 0.0
        %1626 = vmatpush1.msra.mxu0 0.0
        %1627 = vmatprep.subr.mxu0 0.0
        %1628 = vmatpush1.msra.mxu0 0.0
        %1629 = vmatprep.subr.mxu0 0.0
        %1630 = vmatpush1.msra.mxu0 0.0
        %1631 = vmatprep.subr.mxu0 0.0
        %1632 = vmatpush1.msra.mxu0 0.0
        %1633 = vmatprep.subr.mxu0 0.0
        %1634 = vmatpush1.msra.mxu0 0.0
        %1635 = vmatprep.subr.mxu0 0.0
        %1636 = vmatpush1.msra.mxu0 0.0
        %1637 = vmatprep.subr.mxu0 0.0
        %1638 = vmatpush1.msra.mxu0 0.0
        %1639 = vmatprep.subr.mxu0 0.0
        %1640 = vmatpush1.msra.mxu0 0.0
        %1641 = vmatprep.subr.mxu0 0.0
        %1642 = vmatpush1.msra.mxu0 0.0
        %1643 = vmatprep.subr.mxu0 0.0
        %1644 = vmatpush1.msra.mxu0 0.0
        %1645 = vmatprep.subr.mxu0 0.0
        %1646 = vmatpush1.msra.mxu0 0.0
        %1647 = vmatprep.subr.mxu0 0.0
        %1648 = vmatpush1.msra.mxu0 0.0
        %1649 = vmatprep.subr.mxu0 0.0
        %1650 = vmatpush1.msra.mxu0 0.0
        %1651 = vmatprep.subr.mxu0 0.0
        %1652 = vmatpush1.msra.mxu0 0.0
        %1653 = vmatprep.subr.mxu0 0.0
        %1654 = vmatpush1.msra.mxu0 0.0
        %1655 = vmatprep.subr.mxu0 0.0
        %1656 = vmatpush1.msra.mxu0 0.0
        %1657 = vmatprep.subr.mxu0 0.0
        %1658 = vmatpush1.msra.mxu0 0.0
        %1659 = vmatprep.subr.mxu0 0.0
        %1660 = vmatpush1.msra.mxu0 0.0
        %1661 = vmatprep.mubr.f32.mxu0 0.0
        %1662 = vmatmul.mubr.f32.gmra.mrb[0].mxu0 %v1494
        %v1663 = vpop.f32.mrb[0].mxu0
        %v1664 = vadd.f32 0.0, %v1663
        %v1665 = vpop.f32.mrb[0].mxu0
        %v1666 = vadd.f32 0.0, %v1665
        %1667 = vdwg.mxu0
        %1668 = vmatprep.subr.mxu0 %v1512
        %1669 = vmatpush1.msra.mxu0 %v1509
        %1670 = vmatprep.subr.mxu0 0.0
        %1671 = vmatpush1.msra.mxu0 0.0
        %1672 = vmatprep.subr.mxu0 0.0
        %1673 = vmatpush1.msra.mxu0 0.0
        %1674 = vmatprep.subr.mxu0 0.0
        %1675 = vmatpush1.msra.mxu0 0.0
        %1676 = vmatprep.subr.mxu0 0.0
        %1677 = vmatpush1.msra.mxu0 0.0
        %1678 = vmatprep.subr.mxu0 0.0
        %1679 = vmatpush1.msra.mxu0 0.0
        %1680 = vmatprep.subr.mxu0 0.0
        %1681 = vmatpush1.msra.mxu0 0.0
        %1682 = vmatprep.subr.mxu0 0.0
        %1683 = vmatpush1.msra.mxu0 0.0
        %1684 = vmatprep.subr.mxu0 0.0
        %1685 = vmatpush1.msra.mxu0 0.0
        %1686 = vmatprep.subr.mxu0 0.0
        %1687 = vmatpush1.msra.mxu0 0.0
        %1688 = vmatprep.subr.mxu0 0.0
        %1689 = vmatpush1.msra.mxu0 0.0
        %1690 = vmatprep.subr.mxu0 0.0
        %1691 = vmatpush1.msra.mxu0 0.0
        %1692 = vmatprep.subr.mxu0 0.0
        %1693 = vmatpush1.msra.mxu0 0.0
        %1694 = vmatprep.subr.mxu0 0.0
        %1695 = vmatpush1.msra.mxu0 0.0
        %1696 = vmatprep.subr.mxu0 0.0
        %1697 = vmatpush1.msra.mxu0 0.0
        %1698 = vmatprep.subr.mxu0 0.0
        %1699 = vmatpush1.msra.mxu0 0.0
        %1700 = vmatprep.subr.mxu0 0.0
        %1701 = vmatpush1.msra.mxu0 0.0
        %1702 = vmatprep.subr.mxu0 0.0
        %1703 = vmatpush1.msra.mxu0 0.0
        %1704 = vmatprep.subr.mxu0 0.0
        %1705 = vmatpush1.msra.mxu0 0.0
        %1706 = vmatprep.subr.mxu0 0.0
        %1707 = vmatpush1.msra.mxu0 0.0
        %1708 = vmatprep.subr.mxu0 0.0
        %1709 = vmatpush1.msra.mxu0 0.0
        %1710 = vmatprep.subr.mxu0 0.0
        %1711 = vmatpush1.msra.mxu0 0.0
        %1712 = vmatprep.subr.mxu0 0.0
        %1713 = vmatpush1.msra.mxu0 0.0
        %1714 = vmatprep.subr.mxu0 0.0
        %1715 = vmatpush1.msra.mxu0 0.0
        %1716 = vmatprep.subr.mxu0 0.0
        %1717 = vmatpush1.msra.mxu0 0.0
        %1718 = vmatprep.subr.mxu0 0.0
        %1719 = vmatpush1.msra.mxu0 0.0
        %1720 = vmatprep.subr.mxu0 0.0
        %1721 = vmatpush1.msra.mxu0 0.0
        %1722 = vmatprep.subr.mxu0 0.0
        %1723 = vmatpush1.msra.mxu0 0.0
        %1724 = vmatprep.subr.mxu0 0.0
        %1725 = vmatpush1.msra.mxu0 0.0
        %1726 = vmatprep.subr.mxu0 0.0
        %1727 = vmatpush1.msra.mxu0 0.0
        %1728 = vmatprep.subr.mxu0 0.0
        %1729 = vmatpush1.msra.mxu0 0.0
        %1730 = vmatprep.subr.mxu0 0.0
        %1731 = vmatpush1.msra.mxu0 0.0
        %1732 = vmatprep.mubr.f32.mxu0 0.0
        %1733 = vmatmul.mubr.f32.gmra.mrb[0].mxu0 %v1494
        %v1734 = vpop.f32.mrb[0].mxu0
        %v1735 = vadd.f32 0.0, %v1734
        %v1736 = vpop.f32.mrb[0].mxu0
        %v1737 = vadd.f32 0.0, %v1736
        %1738 = vdwg.mxu0
        %1739 = vmatprep.subr.mxu0 %v1518
        %1740 = vmatpush1.msra.mxu0 %v1515
        %1741 = vmatprep.subr.mxu0 0.0
        %1742 = vmatpush1.msra.mxu0 0.0
        %1743 = vmatprep.subr.mxu0 0.0
        %1744 = vmatpush1.msra.mxu0 0.0
        %1745 = vmatprep.subr.mxu0 0.0
        %1746 = vmatpush1.msra.mxu0 0.0
        %1747 = vmatprep.subr.mxu0 0.0
        %1748 = vmatpush1.msra.mxu0 0.0
        %1749 = vmatprep.subr.mxu0 0.0
        %1750 = vmatpush1.msra.mxu0 0.0
        %1751 = vmatprep.subr.mxu0 0.0
        %1752 = vmatpush1.msra.mxu0 0.0
        %1753 = vmatprep.subr.mxu0 0.0
        %1754 = vmatpush1.msra.mxu0 0.0
        %1755 = vmatprep.subr.mxu0 0.0
        %1756 = vmatpush1.msra.mxu0 0.0
        %1757 = vmatprep.subr.mxu0 0.0
        %1758 = vmatpush1.msra.mxu0 0.0
        %1759 = vmatprep.subr.mxu0 0.0
        %1760 = vmatpush1.msra.mxu0 0.0
        %1761 = vmatprep.subr.mxu0 0.0
        %1762 = vmatpush1.msra.mxu0 0.0
        %1763 = vmatprep.subr.mxu0 0.0
        %1764 = vmatpush1.msra.mxu0 0.0
        %1765 = vmatprep.subr.mxu0 0.0
        %1766 = vmatpush1.msra.mxu0 0.0
        %1767 = vmatprep.subr.mxu0 0.0
        %1768 = vmatpush1.msra.mxu0 0.0
        %1769 = vmatprep.subr.mxu0 0.0
        %1770 = vmatpush1.msra.mxu0 0.0
        %1771 = vmatprep.subr.mxu0 0.0
        %1772 = vmatpush1.msra.mxu0 0.0
        %1773 = vmatprep.subr.mxu0 0.0
        %1774 = vmatpush1.msra.mxu0 0.0
        %1775 = vmatprep.subr.mxu0 0.0
        %1776 = vmatpush1.msra.mxu0 0.0
        %1777 = vmatprep.subr.mxu0 0.0
        %1778 = vmatpush1.msra.mxu0 0.0
        %1779 = vmatprep.subr.mxu0 0.0
        %1780 = vmatpush1.msra.mxu0 0.0
        %1781 = vmatprep.subr.mxu0 0.0
        %1782 = vmatpush1.msra.mxu0 0.0
        %1783 = vmatprep.subr.mxu0 0.0
        %1784 = vmatpush1.msra.mxu0 0.0
        %1785 = vmatprep.subr.mxu0 0.0
        %1786 = vmatpush1.msra.mxu0 0.0
        %1787 = vmatprep.subr.mxu0 0.0
        %1788 = vmatpush1.msra.mxu0 0.0
        %1789 = vmatprep.subr.mxu0 0.0
        %1790 = vmatpush1.msra.mxu0 0.0
        %1791 = vmatprep.subr.mxu0 0.0
        %1792 = vmatpush1.msra.mxu0 0.0
        %1793 = vmatprep.subr.mxu0 0.0
        %1794 = vmatpush1.msra.mxu0 0.0
        %1795 = vmatprep.subr.mxu0 0.0
        %1796 = vmatpush1.msra.mxu0 0.0
        %1797 = vmatprep.subr.mxu0 0.0
        %1798 = vmatpush1.msra.mxu0 0.0
        %1799 = vmatprep.subr.mxu0 0.0
        %1800 = vmatpush1.msra.mxu0 0.0
        %1801 = vmatprep.subr.mxu0 0.0
        %1802 = vmatpush1.msra.mxu0 0.0
        %1803 = vmatprep.mubr.f32.mxu0 0.0
        %1804 = vmatmul.mubr.f32.gmra.mrb[0].mxu0 %v1494
        %v1805 = vpop.f32.mrb[0].mxu0
        %v1806 = vadd.f32 0.0, %v1805
        %v1807 = vpop.f32.mrb[0].mxu0
        %v1808 = vadd.f32 0.0, %v1807
        %1809 = vdwg.mxu0
        %1810 = vmatprep.subr.mxu0 %v1524
        %1811 = vmatpush1.msra.mxu0 %v1521
        %1812 = vmatprep.subr.mxu0 0.0
        %1813 = vmatpush1.msra.mxu0 0.0
        %1814 = vmatprep.subr.mxu0 0.0
        %1815 = vmatpush1.msra.mxu0 0.0
        %1816 = vmatprep.subr.mxu0 0.0
        %1817 = vmatpush1.msra.mxu0 0.0
        %1818 = vmatprep.subr.mxu0 0.0
        %1819 = vmatpush1.msra.mxu0 0.0
        %1820 = vmatprep.subr.mxu0 0.0
        %1821 = vmatpush1.msra.mxu0 0.0
        %1822 = vmatprep.subr.mxu0 0.0
        %1823 = vmatpush1.msra.mxu0 0.0
        %1824 = vmatprep.subr.mxu0 0.0
        %1825 = vmatpush1.msra.mxu0 0.0
        %1826 = vmatprep.subr.mxu0 0.0
        %1827 = vmatpush1.msra.mxu0 0.0
        %1828 = vmatprep.subr.mxu0 0.0
        %1829 = vmatpush1.msra.mxu0 0.0
        %1830 = vmatprep.subr.mxu0 0.0
        %1831 = vmatpush1.msra.mxu0 0.0
        %1832 = vmatprep.subr.mxu0 0.0
        %1833 = vmatpush1.msra.mxu0 0.0
        %1834 = vmatprep.subr.mxu0 0.0
        %1835 = vmatpush1.msra.mxu0 0.0
        %1836 = vmatprep.subr.mxu0 0.0
        %1837 = vmatpush1.msra.mxu0 0.0
        %1838 = vmatprep.subr.mxu0 0.0
        %1839 = vmatpush1.msra.mxu0 0.0
        %1840 = vmatprep.subr.mxu0 0.0
        %1841 = vmatpush1.msra.mxu0 0.0
        %1842 = vmatprep.subr.mxu0 0.0
        %1843 = vmatpush1.msra.mxu0 0.0
        %1844 = vmatprep.subr.mxu0 0.0
        %1845 = vmatpush1.msra.mxu0 0.0
        %1846 = vmatprep.subr.mxu0 0.0
        %1847 = vmatpush1.msra.mxu0 0.0
        %1848 = vmatprep.subr.mxu0 0.0
        %1849 = vmatpush1.msra.mxu0 0.0
        %1850 = vmatprep.subr.mxu0 0.0
        %1851 = vmatpush1.msra.mxu0 0.0
        %1852 = vmatprep.subr.mxu0 0.0
        %1853 = vmatpush1.msra.mxu0 0.0
        %1854 = vmatprep.subr.mxu0 0.0
        %1855 = vmatpush1.msra.mxu0 0.0
        %1856 = vmatprep.subr.mxu0 0.0
        %1857 = vmatpush1.msra.mxu0 0.0
        %1858 = vmatprep.subr.mxu0 0.0
        %1859 = vmatpush1.msra.mxu0 0.0
        %1860 = vmatprep.subr.mxu0 0.0
        %1861 = vmatpush1.msra.mxu0 0.0
        %1862 = vmatprep.subr.mxu0 0.0
        %1863 = vmatpush1.msra.mxu0 0.0
        %1864 = vmatprep.subr.mxu0 0.0
        %1865 = vmatpush1.msra.mxu0 0.0
        %1866 = vmatprep.subr.mxu0 0.0
        %1867 = vmatpush1.msra.mxu0 0.0
        %1868 = vmatprep.subr.mxu0 0.0
        %1869 = vmatpush1.msra.mxu0 0.0
        %1870 = vmatprep.subr.mxu0 0.0
        %1871 = vmatpush1.msra.mxu0 0.0
        %1872 = vmatprep.subr.mxu0 0.0
        %1873 = vmatpush1.msra.mxu0 0.0
        %1874 = vmatprep.mubr.f32.mxu0 0.0
        %1875 = vmatmul.mubr.f32.gmra.mrb[0].mxu0 %v1494
        %v1876 = vpop.f32.mrb[0].mxu0
        %v1877 = vadd.f32 0.0, %v1876
        %v1878 = vpop.f32.mrb[0].mxu0
        %v1879 = vadd.f32 0.0, %v1878
        %1880 = vdwg.mxu0
        %v1881 = vadd.f32 %v1450, %v1593
        %v1882 = vadd.f32 %v1451, %v1595
        %v1883 = vadd.f32 %v1452, %v1664
        %v1884 = vadd.f32 %v1453, %v1666
        %v1885 = vadd.f32 %v1454, %v1735
        %v1886 = vadd.f32 %v1455, %v1737
        %v1887 = vadd.f32 %v1456, %v1806
        %v1888 = vadd.f32 %v1457, %v1808
        %v1889 = vadd.f32 %v1458, %v1877
        %v1890 = vadd.f32 %v1459, %v1879
        %s1891 = scalar_lea.vmem %s1, 32
        %v1892 = vld [vmem:[%s1891] sm:$0xff]
        %v1894 = vsel %vm251, %v1892, 0
        %v1897 = vsel %vm255, %v174, 0
        %v1900 = vsel %vm255, %v175, 0
        %v1903 = vsel %vm255, %v176, 0
        %v1906 = vsel %vm255, %v177, 0
        %v1909 = vsel %vm255, %v178, 0
        %v1912 = vsel %vm255, %v179, 0
        %v1915 = vsel %vm255, %v180, 0
        %v1918 = vsel %vm255, %v181, 0
        %v1921 = vsel %vm255, %v182, 0
        %v1924 = vsel %vm255, %v183, 0
        %1926 = vmatprep.subr.mxu0 %v1900
        %1927 = vmatpush1.msra.mxu0 %v1897
        %1928 = vmatprep.subr.mxu0 0.0
        %1929 = vmatpush1.msra.mxu0 0.0
        %1930 = vmatprep.subr.mxu0 0.0
        %1931 = vmatpush1.msra.mxu0 0.0
        %1932 = vmatprep.subr.mxu0 0.0
        %1933 = vmatpush1.msra.mxu0 0.0
        %1934 = vmatprep.subr.mxu0 0.0
        %1935 = vmatpush1.msra.mxu0 0.0
        %1936 = vmatprep.subr.mxu0 0.0
        %1937 = vmatpush1.msra.mxu0 0.0
        %1938 = vmatprep.subr.mxu0 0.0
        %1939 = vmatpush1.msra.mxu0 0.0
        %1940 = vmatprep.subr.mxu0 0.0
        %1941 = vmatpush1.msra.mxu0 0.0
        %1942 = vmatprep.subr.mxu0 0.0
        %1943 = vmatpush1.msra.mxu0 0.0
        %1944 = vmatprep.subr.mxu0 0.0
        %1945 = vmatpush1.msra.mxu0 0.0
        %1946 = vmatprep.subr.mxu0 0.0
        %1947 = vmatpush1.msra.mxu0 0.0
        %1948 = vmatprep.subr.mxu0 0.0
        %1949 = vmatpush1.msra.mxu0 0.0
        %1950 = vmatprep.subr.mxu0 0.0
        %1951 = vmatpush1.msra.mxu0 0.0
        %1952 = vmatprep.subr.mxu0 0.0
        %1953 = vmatpush1.msra.mxu0 0.0
        %1954 = vmatprep.subr.mxu0 0.0
        %1955 = vmatpush1.msra.mxu0 0.0
        %1956 = vmatprep.subr.mxu0 0.0
        %1957 = vmatpush1.msra.mxu0 0.0
        %1958 = vmatprep.subr.mxu0 0.0
        %1959 = vmatpush1.msra.mxu0 0.0
        %1960 = vmatprep.subr.mxu0 0.0
        %1961 = vmatpush1.msra.mxu0 0.0
        %1962 = vmatprep.subr.mxu0 0.0
        %1963 = vmatpush1.msra.mxu0 0.0
        %1964 = vmatprep.subr.mxu0 0.0
        %1965 = vmatpush1.msra.mxu0 0.0
        %1966 = vmatprep.subr.mxu0 0.0
        %1967 = vmatpush1.msra.mxu0 0.0
        %1968 = vmatprep.subr.mxu0 0.0
        %1969 = vmatpush1.msra.mxu0 0.0
        %1970 = vmatprep.subr.mxu0 0.0
        %1971 = vmatpush1.msra.mxu0 0.0
        %1972 = vmatprep.subr.mxu0 0.0
        %1973 = vmatpush1.msra.mxu0 0.0
        %1974 = vmatprep.subr.mxu0 0.0
        %1975 = vmatpush1.msra.mxu0 0.0
        %1976 = vmatprep.subr.mxu0 0.0
        %1977 = vmatpush1.msra.mxu0 0.0
        %1978 = vmatprep.subr.mxu0 0.0
        %1979 = vmatpush1.msra.mxu0 0.0
        %1980 = vmatprep.subr.mxu0 0.0
        %1981 = vmatpush1.msra.mxu0 0.0
        %1982 = vmatprep.subr.mxu0 0.0
        %1983 = vmatpush1.msra.mxu0 0.0
        %1984 = vmatprep.subr.mxu0 0.0
        %1985 = vmatpush1.msra.mxu0 0.0
        %1986 = vmatprep.subr.mxu0 0.0
        %1987 = vmatpush1.msra.mxu0 0.0
        %1988 = vmatprep.subr.mxu0 0.0
        %1989 = vmatpush1.msra.mxu0 0.0
        %1990 = vmatprep.mubr.f32.mxu0 0.0
        %1991 = vmatmul.mubr.f32.gmra.mrb[0].mxu0 %v1894
        %v1992 = vpop.f32.mrb[0].mxu0
        %v1993 = vadd.f32 0.0, %v1992
        %v1994 = vpop.f32.mrb[0].mxu0
        %v1995 = vadd.f32 0.0, %v1994
        %1996 = vdwg.mxu0
        %1997 = vmatprep.subr.mxu0 %v1906
        %1998 = vmatpush1.msra.mxu0 %v1903
        %1999 = vmatprep.subr.mxu0 0.0
        %2000 = vmatpush1.msra.mxu0 0.0
        %2001 = vmatprep.subr.mxu0 0.0
        %2002 = vmatpush1.msra.mxu0 0.0
        %2003 = vmatprep.subr.mxu0 0.0
        %2004 = vmatpush1.msra.mxu0 0.0
        %2005 = vmatprep.subr.mxu0 0.0
        %2006 = vmatpush1.msra.mxu0 0.0
        %2007 = vmatprep.subr.mxu0 0.0
        %2008 = vmatpush1.msra.mxu0 0.0
        %2009 = vmatprep.subr.mxu0 0.0
        %2010 = vmatpush1.msra.mxu0 0.0
        %2011 = vmatprep.subr.mxu0 0.0
        %2012 = vmatpush1.msra.mxu0 0.0
        %2013 = vmatprep.subr.mxu0 0.0
        %2014 = vmatpush1.msra.mxu0 0.0
        %2015 = vmatprep.subr.mxu0 0.0
        %2016 = vmatpush1.msra.mxu0 0.0
        %2017 = vmatprep.subr.mxu0 0.0
        %2018 = vmatpush1.msra.mxu0 0.0
        %2019 = vmatprep.subr.mxu0 0.0
        %2020 = vmatpush1.msra.mxu0 0.0
        %2021 = vmatprep.subr.mxu0 0.0
        %2022 = vmatpush1.msra.mxu0 0.0
        %2023 = vmatprep.subr.mxu0 0.0
        %2024 = vmatpush1.msra.mxu0 0.0
        %2025 = vmatprep.subr.mxu0 0.0
        %2026 = vmatpush1.msra.mxu0 0.0
        %2027 = vmatprep.subr.mxu0 0.0
        %2028 = vmatpush1.msra.mxu0 0.0
        %2029 = vmatprep.subr.mxu0 0.0
        %2030 = vmatpush1.msra.mxu0 0.0
        %2031 = vmatprep.subr.mxu0 0.0
        %2032 = vmatpush1.msra.mxu0 0.0
        %2033 = vmatprep.subr.mxu0 0.0
        %2034 = vmatpush1.msra.mxu0 0.0
        %2035 = vmatprep.subr.mxu0 0.0
        %2036 = vmatpush1.msra.mxu0 0.0
        %2037 = vmatprep.subr.mxu0 0.0
        %2038 = vmatpush1.msra.mxu0 0.0
        %2039 = vmatprep.subr.mxu0 0.0
        %2040 = vmatpush1.msra.mxu0 0.0
        %2041 = vmatprep.subr.mxu0 0.0
        %2042 = vmatpush1.msra.mxu0 0.0
        %2043 = vmatprep.subr.mxu0 0.0
        %2044 = vmatpush1.msra.mxu0 0.0
        %2045 = vmatprep.subr.mxu0 0.0
        %2046 = vmatpush1.msra.mxu0 0.0
        %2047 = vmatprep.subr.mxu0 0.0
        %2048 = vmatpush1.msra.mxu0 0.0
        %2049 = vmatprep.subr.mxu0 0.0
        %2050 = vmatpush1.msra.mxu0 0.0
        %2051 = vmatprep.subr.mxu0 0.0
        %2052 = vmatpush1.msra.mxu0 0.0
        %2053 = vmatprep.subr.mxu0 0.0
        %2054 = vmatpush1.msra.mxu0 0.0
        %2055 = vmatprep.subr.mxu0 0.0
        %2056 = vmatpush1.msra.mxu0 0.0
        %2057 = vmatprep.subr.mxu0 0.0
        %2058 = vmatpush1.msra.mxu0 0.0
        %2059 = vmatprep.subr.mxu0 0.0
        %2060 = vmatpush1.msra.mxu0 0.0
        %2061 = vmatprep.mubr.f32.mxu0 0.0
        %2062 = vmatmul.mubr.f32.gmra.mrb[0].mxu0 %v1894
        %v2063 = vpop.f32.mrb[0].mxu0
        %v2064 = vadd.f32 0.0, %v2063
        %v2065 = vpop.f32.mrb[0].mxu0
        %v2066 = vadd.f32 0.0, %v2065
        %2067 = vdwg.mxu0
        %2068 = vmatprep.subr.mxu0 %v1912
        %2069 = vmatpush1.msra.mxu0 %v1909
        %2070 = vmatprep.subr.mxu0 0.0
        %2071 = vmatpush1.msra.mxu0 0.0
        %2072 = vmatprep.subr.mxu0 0.0
        %2073 = vmatpush1.msra.mxu0 0.0
        %2074 = vmatprep.subr.mxu0 0.0
        %2075 = vmatpush1.msra.mxu0 0.0
        %2076 = vmatprep.subr.mxu0 0.0
        %2077 = vmatpush1.msra.mxu0 0.0
        %2078 = vmatprep.subr.mxu0 0.0
        %2079 = vmatpush1.msra.mxu0 0.0
        %2080 = vmatprep.subr.mxu0 0.0
        %2081 = vmatpush1.msra.mxu0 0.0
        %2082 = vmatprep.subr.mxu0 0.0
        %2083 = vmatpush1.msra.mxu0 0.0
        %2084 = vmatprep.subr.mxu0 0.0
        %2085 = vmatpush1.msra.mxu0 0.0
        %2086 = vmatprep.subr.mxu0 0.0
        %2087 = vmatpush1.msra.mxu0 0.0
        %2088 = vmatprep.subr.mxu0 0.0
        %2089 = vmatpush1.msra.mxu0 0.0
        %2090 = vmatprep.subr.mxu0 0.0
        %2091 = vmatpush1.msra.mxu0 0.0
        %2092 = vmatprep.subr.mxu0 0.0
        %2093 = vmatpush1.msra.mxu0 0.0
        %2094 = vmatprep.subr.mxu0 0.0
        %2095 = vmatpush1.msra.mxu0 0.0
        %2096 = vmatprep.subr.mxu0 0.0
        %2097 = vmatpush1.msra.mxu0 0.0
        %2098 = vmatprep.subr.mxu0 0.0
        %2099 = vmatpush1.msra.mxu0 0.0
        %2100 = vmatprep.subr.mxu0 0.0
        %2101 = vmatpush1.msra.mxu0 0.0
        %2102 = vmatprep.subr.mxu0 0.0
        %2103 = vmatpush1.msra.mxu0 0.0
        %2104 = vmatprep.subr.mxu0 0.0
        %2105 = vmatpush1.msra.mxu0 0.0
        %2106 = vmatprep.subr.mxu0 0.0
        %2107 = vmatpush1.msra.mxu0 0.0
        %2108 = vmatprep.subr.mxu0 0.0
        %2109 = vmatpush1.msra.mxu0 0.0
        %2110 = vmatprep.subr.mxu0 0.0
        %2111 = vmatpush1.msra.mxu0 0.0
        %2112 = vmatprep.subr.mxu0 0.0
        %2113 = vmatpush1.msra.mxu0 0.0
        %2114 = vmatprep.subr.mxu0 0.0
        %2115 = vmatpush1.msra.mxu0 0.0
        %2116 = vmatprep.subr.mxu0 0.0
        %2117 = vmatpush1.msra.mxu0 0.0
        %2118 = vmatprep.subr.mxu0 0.0
        %2119 = vmatpush1.msra.mxu0 0.0
        %2120 = vmatprep.subr.mxu0 0.0
        %2121 = vmatpush1.msra.mxu0 0.0
        %2122 = vmatprep.subr.mxu0 0.0
        %2123 = vmatpush1.msra.mxu0 0.0
        %2124 = vmatprep.subr.mxu0 0.0
        %2125 = vmatpush1.msra.mxu0 0.0
        %2126 = vmatprep.subr.mxu0 0.0
        %2127 = vmatpush1.msra.mxu0 0.0
        %2128 = vmatprep.subr.mxu0 0.0
        %2129 = vmatpush1.msra.mxu0 0.0
        %2130 = vmatprep.subr.mxu0 0.0
        %2131 = vmatpush1.msra.mxu0 0.0
        %2132 = vmatprep.mubr.f32.mxu0 0.0
        %2133 = vmatmul.mubr.f32.gmra.mrb[0].mxu0 %v1894
        %v2134 = vpop.f32.mrb[0].mxu0
        %v2135 = vadd.f32 0.0, %v2134
        %v2136 = vpop.f32.mrb[0].mxu0
        %v2137 = vadd.f32 0.0, %v2136
        %2138 = vdwg.mxu0
        %2139 = vmatprep.subr.mxu0 %v1918
        %2140 = vmatpush1.msra.mxu0 %v1915
        %2141 = vmatprep.subr.mxu0 0.0
        %2142 = vmatpush1.msra.mxu0 0.0
        %2143 = vmatprep.subr.mxu0 0.0
        %2144 = vmatpush1.msra.mxu0 0.0
        %2145 = vmatprep.subr.mxu0 0.0
        %2146 = vmatpush1.msra.mxu0 0.0
        %2147 = vmatprep.subr.mxu0 0.0
        %2148 = vmatpush1.msra.mxu0 0.0
        %2149 = vmatprep.subr.mxu0 0.0
        %2150 = vmatpush1.msra.mxu0 0.0
        %2151 = vmatprep.subr.mxu0 0.0
        %2152 = vmatpush1.msra.mxu0 0.0
        %2153 = vmatprep.subr.mxu0 0.0
        %2154 = vmatpush1.msra.mxu0 0.0
        %2155 = vmatprep.subr.mxu0 0.0
        %2156 = vmatpush1.msra.mxu0 0.0
        %2157 = vmatprep.subr.mxu0 0.0
        %2158 = vmatpush1.msra.mxu0 0.0
        %2159 = vmatprep.subr.mxu0 0.0
        %2160 = vmatpush1.msra.mxu0 0.0
        %2161 = vmatprep.subr.mxu0 0.0
        %2162 = vmatpush1.msra.mxu0 0.0
        %2163 = vmatprep.subr.mxu0 0.0
        %2164 = vmatpush1.msra.mxu0 0.0
        %2165 = vmatprep.subr.mxu0 0.0
        %2166 = vmatpush1.msra.mxu0 0.0
        %2167 = vmatprep.subr.mxu0 0.0
        %2168 = vmatpush1.msra.mxu0 0.0
        %2169 = vmatprep.subr.mxu0 0.0
        %2170 = vmatpush1.msra.mxu0 0.0
        %2171 = vmatprep.subr.mxu0 0.0
        %2172 = vmatpush1.msra.mxu0 0.0
        %2173 = vmatprep.subr.mxu0 0.0
        %2174 = vmatpush1.msra.mxu0 0.0
        %2175 = vmatprep.subr.mxu0 0.0
        %2176 = vmatpush1.msra.mxu0 0.0
        %2177 = vmatprep.subr.mxu0 0.0
        %2178 = vmatpush1.msra.mxu0 0.0
        %2179 = vmatprep.subr.mxu0 0.0
        %2180 = vmatpush1.msra.mxu0 0.0
        %2181 = vmatprep.subr.mxu0 0.0
        %2182 = vmatpush1.msra.mxu0 0.0
        %2183 = vmatprep.subr.mxu0 0.0
        %2184 = vmatpush1.msra.mxu0 0.0
        %2185 = vmatprep.subr.mxu0 0.0
        %2186 = vmatpush1.msra.mxu0 0.0
        %2187 = vmatprep.subr.mxu0 0.0
        %2188 = vmatpush1.msra.mxu0 0.0
        %2189 = vmatprep.subr.mxu0 0.0
        %2190 = vmatpush1.msra.mxu0 0.0
        %2191 = vmatprep.subr.mxu0 0.0
        %2192 = vmatpush1.msra.mxu0 0.0
        %2193 = vmatprep.subr.mxu0 0.0
        %2194 = vmatpush1.msra.mxu0 0.0
        %2195 = vmatprep.subr.mxu0 0.0
        %2196 = vmatpush1.msra.mxu0 0.0
        %2197 = vmatprep.subr.mxu0 0.0
        %2198 = vmatpush1.msra.mxu0 0.0
        %2199 = vmatprep.subr.mxu0 0.0
        %2200 = vmatpush1.msra.mxu0 0.0
        %2201 = vmatprep.subr.mxu0 0.0
        %2202 = vmatpush1.msra.mxu0 0.0
        %2203 = vmatprep.mubr.f32.mxu0 0.0
        %2204 = vmatmul.mubr.f32.gmra.mrb[0].mxu0 %v1894
        %v2205 = vpop.f32.mrb[0].mxu0
        %v2206 = vadd.f32 0.0, %v2205
        %v2207 = vpop.f32.mrb[0].mxu0
        %v2208 = vadd.f32 0.0, %v2207
        %2209 = vdwg.mxu0
        %2210 = vmatprep.subr.mxu0 %v1924
        %2211 = vmatpush1.msra.mxu0 %v1921
        %2212 = vmatprep.subr.mxu0 0.0
        %2213 = vmatpush1.msra.mxu0 0.0
        %2214 = vmatprep.subr.mxu0 0.0
        %2215 = vmatpush1.msra.mxu0 0.0
        %2216 = vmatprep.subr.mxu0 0.0
        %2217 = vmatpush1.msra.mxu0 0.0
        %2218 = vmatprep.subr.mxu0 0.0
        %2219 = vmatpush1.msra.mxu0 0.0
        %2220 = vmatprep.subr.mxu0 0.0
        %2221 = vmatpush1.msra.mxu0 0.0
        %2222 = vmatprep.subr.mxu0 0.0
        %2223 = vmatpush1.msra.mxu0 0.0
        %2224 = vmatprep.subr.mxu0 0.0
        %2225 = vmatpush1.msra.mxu0 0.0
        %2226 = vmatprep.subr.mxu0 0.0
        %2227 = vmatpush1.msra.mxu0 0.0
        %2228 = vmatprep.subr.mxu0 0.0
        %2229 = vmatpush1.msra.mxu0 0.0
        %2230 = vmatprep.subr.mxu0 0.0
        %2231 = vmatpush1.msra.mxu0 0.0
        %2232 = vmatprep.subr.mxu0 0.0
        %2233 = vmatpush1.msra.mxu0 0.0
        %2234 = vmatprep.subr.mxu0 0.0
        %2235 = vmatpush1.msra.mxu0 0.0
        %2236 = vmatprep.subr.mxu0 0.0
        %2237 = vmatpush1.msra.mxu0 0.0
        %2238 = vmatprep.subr.mxu0 0.0
        %2239 = vmatpush1.msra.mxu0 0.0
        %2240 = vmatprep.subr.mxu0 0.0
        %2241 = vmatpush1.msra.mxu0 0.0
        %2242 = vmatprep.subr.mxu0 0.0
        %2243 = vmatpush1.msra.mxu0 0.0
        %2244 = vmatprep.subr.mxu0 0.0
        %2245 = vmatpush1.msra.mxu0 0.0
        %2246 = vmatprep.subr.mxu0 0.0
        %2247 = vmatpush1.msra.mxu0 0.0
        %2248 = vmatprep.subr.mxu0 0.0
        %2249 = vmatpush1.msra.mxu0 0.0
        %2250 = vmatprep.subr.mxu0 0.0
        %2251 = vmatpush1.msra.mxu0 0.0
        %2252 = vmatprep.subr.mxu0 0.0
        %2253 = vmatpush1.msra.mxu0 0.0
        %2254 = vmatprep.subr.mxu0 0.0
        %2255 = vmatpush1.msra.mxu0 0.0
        %2256 = vmatprep.subr.mxu0 0.0
        %2257 = vmatpush1.msra.mxu0 0.0
        %2258 = vmatprep.subr.mxu0 0.0
        %2259 = vmatpush1.msra.mxu0 0.0
        %2260 = vmatprep.subr.mxu0 0.0
        %2261 = vmatpush1.msra.mxu0 0.0
        %2262 = vmatprep.subr.mxu0 0.0
        %2263 = vmatpush1.msra.mxu0 0.0
        %2264 = vmatprep.subr.mxu0 0.0
        %2265 = vmatpush1.msra.mxu0 0.0
        %2266 = vmatprep.subr.mxu0 0.0
        %2267 = vmatpush1.msra.mxu0 0.0
        %2268 = vmatprep.subr.mxu0 0.0
        %2269 = vmatpush1.msra.mxu0 0.0
        %2270 = vmatprep.subr.mxu0 0.0
        %2271 = vmatpush1.msra.mxu0 0.0
        %2272 = vmatprep.subr.mxu0 0.0
        %2273 = vmatpush1.msra.mxu0 0.0
        %2274 = vmatprep.mubr.f32.mxu0 0.0
        %2275 = vmatmul.mubr.f32.gmra.mrb[0].mxu0 %v1894
        %v2276 = vpop.f32.mrb[0].mxu0
        %v2277 = vadd.f32 0.0, %v2276
        %v2278 = vpop.f32.mrb[0].mxu0
        %v2279 = vadd.f32 0.0, %v2278
        %2280 = vdwg.mxu0
        %v2281 = vadd.f32 %v1881, %v1993
        %v2282 = vadd.f32 %v1882, %v1995
        %v2283 = vadd.f32 %v1883, %v2064
        %v2284 = vadd.f32 %v1884, %v2066
        %v2285 = vadd.f32 %v1885, %v2135
        %v2286 = vadd.f32 %v1886, %v2137
        %v2287 = vadd.f32 %v1887, %v2206
        %v2288 = vadd.f32 %v1888, %v2208
        %v2289 = vadd.f32 %v1889, %v2277
        %v2290 = vadd.f32 %v1890, %v2279
        %2291 = vrot.lane.b32.xlu0 %v174, 127
        %v2292 = vpop.permute.xlu0 %2291
        %2293 = vrot.lane.b32.xlu0 %v175, 127
        %v2294 = vpop.permute.xlu0 %2293
        %2295 = vrot.lane.b32.xlu0 %v176, 127
        %v2296 = vpop.permute.xlu0 %2295
        %2297 = vrot.lane.b32.xlu0 %v177, 127
        %v2298 = vpop.permute.xlu0 %2297
        %2299 = vrot.lane.b32.xlu0 %v178, 127
        %v2300 = vpop.permute.xlu0 %2299
        %2301 = vrot.lane.b32.xlu0 %v179, 127
        %v2302 = vpop.permute.xlu0 %2301
        %2303 = vrot.lane.b32.xlu0 %v180, 127
        %v2304 = vpop.permute.xlu0 %2303
        %2305 = vrot.lane.b32.xlu0 %v181, 127
        %v2306 = vpop.permute.xlu0 %2305
        %2307 = vrot.lane.b32.xlu0 %v182, 127
        %v2308 = vpop.permute.xlu0 %2307
        %2309 = vrot.lane.b32.xlu0 %v183, 127
        %v2310 = vpop.permute.xlu0 %2309
        %vm2311 = vcmp.lt.s32.totalorder %v205, 127
        %v2312 = vsel %vm2311, %v2308, %v2310
        %v2313 = vsel %vm2311, %v2306, %v2308
        %v2314 = vsel %vm2311, %v2304, %v2306
        %v2315 = vsel %vm2311, %v2302, %v2304
        %v2316 = vsel %vm2311, %v2300, %v2302
        %v2317 = vsel %vm2311, %v2298, %v2300
        %v2318 = vsel %vm2311, %v2296, %v2298
        %v2319 = vsel %vm2311, %v2294, %v2296
        %v2320 = vsel %vm2311, %v2292, %v2294
        %v2321 = vsel %vm2311, %v2310, %v2292
        %s2322 = scalar_lea.vmem %s1, 40
        %v2323 = vld [vmem:[%s2322] sm:$0xff]
        %v2325 = vsel %vm251, %v2323, 0
        %v2328 = vsel %vm255, %v2320, 0
        %v2331 = vsel %vm255, %v2319, 0
        %v2334 = vsel %vm255, %v2318, 0
        %v2337 = vsel %vm255, %v2317, 0
        %v2340 = vsel %vm255, %v2316, 0
        %v2343 = vsel %vm255, %v2315, 0
        %v2346 = vsel %vm255, %v2314, 0
        %v2349 = vsel %vm255, %v2313, 0
        %v2352 = vsel %vm255, %v2312, 0
        %v2355 = vsel %vm255, %v2321, 0
        %2357 = vmatprep.subr.mxu0 %v2331
        %2358 = vmatpush1.msra.mxu0 %v2328
        %2359 = vmatprep.subr.mxu0 0.0
        %2360 = vmatpush1.msra.mxu0 0.0
        %2361 = vmatprep.subr.mxu0 0.0
        %2362 = vmatpush1.msra.mxu0 0.0
        %2363 = vmatprep.subr.mxu0 0.0
        %2364 = vmatpush1.msra.mxu0 0.0
        %2365 = vmatprep.subr.mxu0 0.0
        %2366 = vmatpush1.msra.mxu0 0.0
        %2367 = vmatprep.subr.mxu0 0.0
        %2368 = vmatpush1.msra.mxu0 0.0
        %2369 = vmatprep.subr.mxu0 0.0
        %2370 = vmatpush1.msra.mxu0 0.0
        %2371 = vmatprep.subr.mxu0 0.0
        %2372 = vmatpush1.msra.mxu0 0.0
        %2373 = vmatprep.subr.mxu0 0.0
        %2374 = vmatpush1.msra.mxu0 0.0
        %2375 = vmatprep.subr.mxu0 0.0
        %2376 = vmatpush1.msra.mxu0 0.0
        %2377 = vmatprep.subr.mxu0 0.0
        %2378 = vmatpush1.msra.mxu0 0.0
        %2379 = vmatprep.subr.mxu0 0.0
        %2380 = vmatpush1.msra.mxu0 0.0
        %2381 = vmatprep.subr.mxu0 0.0
        %2382 = vmatpush1.msra.mxu0 0.0
        %2383 = vmatprep.subr.mxu0 0.0
        %2384 = vmatpush1.msra.mxu0 0.0
        %2385 = vmatprep.subr.mxu0 0.0
        %2386 = vmatpush1.msra.mxu0 0.0
        %2387 = vmatprep.subr.mxu0 0.0
        %2388 = vmatpush1.msra.mxu0 0.0
        %2389 = vmatprep.subr.mxu0 0.0
        %2390 = vmatpush1.msra.mxu0 0.0
        %2391 = vmatprep.subr.mxu0 0.0
        %2392 = vmatpush1.msra.mxu0 0.0
        %2393 = vmatprep.subr.mxu0 0.0
        %2394 = vmatpush1.msra.mxu0 0.0
        %2395 = vmatprep.subr.mxu0 0.0
        %2396 = vmatpush1.msra.mxu0 0.0
        %2397 = vmatprep.subr.mxu0 0.0
        %2398 = vmatpush1.msra.mxu0 0.0
        %2399 = vmatprep.subr.mxu0 0.0
        %2400 = vmatpush1.msra.mxu0 0.0
        %2401 = vmatprep.subr.mxu0 0.0
        %2402 = vmatpush1.msra.mxu0 0.0
        %2403 = vmatprep.subr.mxu0 0.0
        %2404 = vmatpush1.msra.mxu0 0.0
        %2405 = vmatprep.subr.mxu0 0.0
        %2406 = vmatpush1.msra.mxu0 0.0
        %2407 = vmatprep.subr.mxu0 0.0
        %2408 = vmatpush1.msra.mxu0 0.0
        %2409 = vmatprep.subr.mxu0 0.0
        %2410 = vmatpush1.msra.mxu0 0.0
        %2411 = vmatprep.subr.mxu0 0.0
        %2412 = vmatpush1.msra.mxu0 0.0
        %2413 = vmatprep.subr.mxu0 0.0
        %2414 = vmatpush1.msra.mxu0 0.0
        %2415 = vmatprep.subr.mxu0 0.0
        %2416 = vmatpush1.msra.mxu0 0.0
        %2417 = vmatprep.subr.mxu0 0.0
        %2418 = vmatpush1.msra.mxu0 0.0
        %2419 = vmatprep.subr.mxu0 0.0
        %2420 = vmatpush1.msra.mxu0 0.0
        %2421 = vmatprep.mubr.f32.mxu0 0.0
        %2422 = vmatmul.mubr.f32.gmra.mrb[0].mxu0 %v2325
        %v2423 = vpop.f32.mrb[0].mxu0
        %v2424 = vadd.f32 0.0, %v2423
        %v2425 = vpop.f32.mrb[0].mxu0
        %v2426 = vadd.f32 0.0, %v2425
        %2427 = vdwg.mxu0
        %2428 = vmatprep.subr.mxu0 %v2337
        %2429 = vmatpush1.msra.mxu0 %v2334
        %2430 = vmatprep.subr.mxu0 0.0
        %2431 = vmatpush1.msra.mxu0 0.0
        %2432 = vmatprep.subr.mxu0 0.0
        %2433 = vmatpush1.msra.mxu0 0.0
        %2434 = vmatprep.subr.mxu0 0.0
        %2435 = vmatpush1.msra.mxu0 0.0
        %2436 = vmatprep.subr.mxu0 0.0
        %2437 = vmatpush1.msra.mxu0 0.0
        %2438 = vmatprep.subr.mxu0 0.0
        %2439 = vmatpush1.msra.mxu0 0.0
        %2440 = vmatprep.subr.mxu0 0.0
        %2441 = vmatpush1.msra.mxu0 0.0
        %2442 = vmatprep.subr.mxu0 0.0
        %2443 = vmatpush1.msra.mxu0 0.0
        %2444 = vmatprep.subr.mxu0 0.0
        %2445 = vmatpush1.msra.mxu0 0.0
        %2446 = vmatprep.subr.mxu0 0.0
        %2447 = vmatpush1.msra.mxu0 0.0
        %2448 = vmatprep.subr.mxu0 0.0
        %2449 = vmatpush1.msra.mxu0 0.0
        %2450 = vmatprep.subr.mxu0 0.0
        %2451 = vmatpush1.msra.mxu0 0.0
        %2452 = vmatprep.subr.mxu0 0.0
        %2453 = vmatpush1.msra.mxu0 0.0
        %2454 = vmatprep.subr.mxu0 0.0
        %2455 = vmatpush1.msra.mxu0 0.0
        %2456 = vmatprep.subr.mxu0 0.0
        %2457 = vmatpush1.msra.mxu0 0.0
        %2458 = vmatprep.subr.mxu0 0.0
        %2459 = vmatpush1.msra.mxu0 0.0
        %2460 = vmatprep.subr.mxu0 0.0
        %2461 = vmatpush1.msra.mxu0 0.0
        %2462 = vmatprep.subr.mxu0 0.0
        %2463 = vmatpush1.msra.mxu0 0.0
        %2464 = vmatprep.subr.mxu0 0.0
        %2465 = vmatpush1.msra.mxu0 0.0
        %2466 = vmatprep.subr.mxu0 0.0
        %2467 = vmatpush1.msra.mxu0 0.0
        %2468 = vmatprep.subr.mxu0 0.0
        %2469 = vmatpush1.msra.mxu0 0.0
        %2470 = vmatprep.subr.mxu0 0.0
        %2471 = vmatpush1.msra.mxu0 0.0
        %2472 = vmatprep.subr.mxu0 0.0
        %2473 = vmatpush1.msra.mxu0 0.0
        %2474 = vmatprep.subr.mxu0 0.0
        %2475 = vmatpush1.msra.mxu0 0.0
        %2476 = vmatprep.subr.mxu0 0.0
        %2477 = vmatpush1.msra.mxu0 0.0
        %2478 = vmatprep.subr.mxu0 0.0
        %2479 = vmatpush1.msra.mxu0 0.0
        %2480 = vmatprep.subr.mxu0 0.0
        %2481 = vmatpush1.msra.mxu0 0.0
        %2482 = vmatprep.subr.mxu0 0.0
        %2483 = vmatpush1.msra.mxu0 0.0
        %2484 = vmatprep.subr.mxu0 0.0
        %2485 = vmatpush1.msra.mxu0 0.0
        %2486 = vmatprep.subr.mxu0 0.0
        %2487 = vmatpush1.msra.mxu0 0.0
        %2488 = vmatprep.subr.mxu0 0.0
        %2489 = vmatpush1.msra.mxu0 0.0
        %2490 = vmatprep.subr.mxu0 0.0
        %2491 = vmatpush1.msra.mxu0 0.0
        %2492 = vmatprep.mubr.f32.mxu0 0.0
        %2493 = vmatmul.mubr.f32.gmra.mrb[0].mxu0 %v2325
        %v2494 = vpop.f32.mrb[0].mxu0
        %v2495 = vadd.f32 0.0, %v2494
        %v2496 = vpop.f32.mrb[0].mxu0
        %v2497 = vadd.f32 0.0, %v2496
        %2498 = vdwg.mxu0
        %2499 = vmatprep.subr.mxu0 %v2343
        %2500 = vmatpush1.msra.mxu0 %v2340
        %2501 = vmatprep.subr.mxu0 0.0
        %2502 = vmatpush1.msra.mxu0 0.0
        %2503 = vmatprep.subr.mxu0 0.0
        %2504 = vmatpush1.msra.mxu0 0.0
        %2505 = vmatprep.subr.mxu0 0.0
        %2506 = vmatpush1.msra.mxu0 0.0
        %2507 = vmatprep.subr.mxu0 0.0
        %2508 = vmatpush1.msra.mxu0 0.0
        %2509 = vmatprep.subr.mxu0 0.0
        %2510 = vmatpush1.msra.mxu0 0.0
        %2511 = vmatprep.subr.mxu0 0.0
        %2512 = vmatpush1.msra.mxu0 0.0
        %2513 = vmatprep.subr.mxu0 0.0
        %2514 = vmatpush1.msra.mxu0 0.0
        %2515 = vmatprep.subr.mxu0 0.0
        %2516 = vmatpush1.msra.mxu0 0.0
        %2517 = vmatprep.subr.mxu0 0.0
        %2518 = vmatpush1.msra.mxu0 0.0
        %2519 = vmatprep.subr.mxu0 0.0
        %2520 = vmatpush1.msra.mxu0 0.0
        %2521 = vmatprep.subr.mxu0 0.0
        %2522 = vmatpush1.msra.mxu0 0.0
        %2523 = vmatprep.subr.mxu0 0.0
        %2524 = vmatpush1.msra.mxu0 0.0
        %2525 = vmatprep.subr.mxu0 0.0
        %2526 = vmatpush1.msra.mxu0 0.0
        %2527 = vmatprep.subr.mxu0 0.0
        %2528 = vmatpush1.msra.mxu0 0.0
        %2529 = vmatprep.subr.mxu0 0.0
        %2530 = vmatpush1.msra.mxu0 0.0
        %2531 = vmatprep.subr.mxu0 0.0
        %2532 = vmatpush1.msra.mxu0 0.0
        %2533 = vmatprep.subr.mxu0 0.0
        %2534 = vmatpush1.msra.mxu0 0.0
        %2535 = vmatprep.subr.mxu0 0.0
        %2536 = vmatpush1.msra.mxu0 0.0
        %2537 = vmatprep.subr.mxu0 0.0
        %2538 = vmatpush1.msra.mxu0 0.0
        %2539 = vmatprep.subr.mxu0 0.0
        %2540 = vmatpush1.msra.mxu0 0.0
        %2541 = vmatprep.subr.mxu0 0.0
        %2542 = vmatpush1.msra.mxu0 0.0
        %2543 = vmatprep.subr.mxu0 0.0
        %2544 = vmatpush1.msra.mxu0 0.0
        %2545 = vmatprep.subr.mxu0 0.0
        %2546 = vmatpush1.msra.mxu0 0.0
        %2547 = vmatprep.subr.mxu0 0.0
        %2548 = vmatpush1.msra.mxu0 0.0
        %2549 = vmatprep.subr.mxu0 0.0
        %2550 = vmatpush1.msra.mxu0 0.0
        %2551 = vmatprep.subr.mxu0 0.0
        %2552 = vmatpush1.msra.mxu0 0.0
        %2553 = vmatprep.subr.mxu0 0.0
        %2554 = vmatpush1.msra.mxu0 0.0
        %2555 = vmatprep.subr.mxu0 0.0
        %2556 = vmatpush1.msra.mxu0 0.0
        %2557 = vmatprep.subr.mxu0 0.0
        %2558 = vmatpush1.msra.mxu0 0.0
        %2559 = vmatprep.subr.mxu0 0.0
        %2560 = vmatpush1.msra.mxu0 0.0
        %2561 = vmatprep.subr.mxu0 0.0
        %2562 = vmatpush1.msra.mxu0 0.0
        %2563 = vmatprep.mubr.f32.mxu0 0.0
        %2564 = vmatmul.mubr.f32.gmra.mrb[0].mxu0 %v2325
        %v2565 = vpop.f32.mrb[0].mxu0
        %v2566 = vadd.f32 0.0, %v2565
        %v2567 = vpop.f32.mrb[0].mxu0
        %v2568 = vadd.f32 0.0, %v2567
        %2569 = vdwg.mxu0
        %2570 = vmatprep.subr.mxu0 %v2349
        %2571 = vmatpush1.msra.mxu0 %v2346
        %2572 = vmatprep.subr.mxu0 0.0
        %2573 = vmatpush1.msra.mxu0 0.0
        %2574 = vmatprep.subr.mxu0 0.0
        %2575 = vmatpush1.msra.mxu0 0.0
        %2576 = vmatprep.subr.mxu0 0.0
        %2577 = vmatpush1.msra.mxu0 0.0
        %2578 = vmatprep.subr.mxu0 0.0
        %2579 = vmatpush1.msra.mxu0 0.0
        %2580 = vmatprep.subr.mxu0 0.0
        %2581 = vmatpush1.msra.mxu0 0.0
        %2582 = vmatprep.subr.mxu0 0.0
        %2583 = vmatpush1.msra.mxu0 0.0
        %2584 = vmatprep.subr.mxu0 0.0
        %2585 = vmatpush1.msra.mxu0 0.0
        %2586 = vmatprep.subr.mxu0 0.0
        %2587 = vmatpush1.msra.mxu0 0.0
        %2588 = vmatprep.subr.mxu0 0.0
        %2589 = vmatpush1.msra.mxu0 0.0
        %2590 = vmatprep.subr.mxu0 0.0
        %2591 = vmatpush1.msra.mxu0 0.0
        %2592 = vmatprep.subr.mxu0 0.0
        %2593 = vmatpush1.msra.mxu0 0.0
        %2594 = vmatprep.subr.mxu0 0.0
        %2595 = vmatpush1.msra.mxu0 0.0
        %2596 = vmatprep.subr.mxu0 0.0
        %2597 = vmatpush1.msra.mxu0 0.0
        %2598 = vmatprep.subr.mxu0 0.0
        %2599 = vmatpush1.msra.mxu0 0.0
        %2600 = vmatprep.subr.mxu0 0.0
        %2601 = vmatpush1.msra.mxu0 0.0
        %2602 = vmatprep.subr.mxu0 0.0
        %2603 = vmatpush1.msra.mxu0 0.0
        %2604 = vmatprep.subr.mxu0 0.0
        %2605 = vmatpush1.msra.mxu0 0.0
        %2606 = vmatprep.subr.mxu0 0.0
        %2607 = vmatpush1.msra.mxu0 0.0
        %2608 = vmatprep.subr.mxu0 0.0
        %2609 = vmatpush1.msra.mxu0 0.0
        %2610 = vmatprep.subr.mxu0 0.0
        %2611 = vmatpush1.msra.mxu0 0.0
        %2612 = vmatprep.subr.mxu0 0.0
        %2613 = vmatpush1.msra.mxu0 0.0
        %2614 = vmatprep.subr.mxu0 0.0
        %2615 = vmatpush1.msra.mxu0 0.0
        %2616 = vmatprep.subr.mxu0 0.0
        %2617 = vmatpush1.msra.mxu0 0.0
        %2618 = vmatprep.subr.mxu0 0.0
        %2619 = vmatpush1.msra.mxu0 0.0
        %2620 = vmatprep.subr.mxu0 0.0
        %2621 = vmatpush1.msra.mxu0 0.0
        %2622 = vmatprep.subr.mxu0 0.0
        %2623 = vmatpush1.msra.mxu0 0.0
        %2624 = vmatprep.subr.mxu0 0.0
        %2625 = vmatpush1.msra.mxu0 0.0
        %2626 = vmatprep.subr.mxu0 0.0
        %2627 = vmatpush1.msra.mxu0 0.0
        %2628 = vmatprep.subr.mxu0 0.0
        %2629 = vmatpush1.msra.mxu0 0.0
        %2630 = vmatprep.subr.mxu0 0.0
        %2631 = vmatpush1.msra.mxu0 0.0
        %2632 = vmatprep.subr.mxu0 0.0
        %2633 = vmatpush1.msra.mxu0 0.0
        %2634 = vmatprep.mubr.f32.mxu0 0.0
        %2635 = vmatmul.mubr.f32.gmra.mrb[0].mxu0 %v2325
        %v2636 = vpop.f32.mrb[0].mxu0
        %v2637 = vadd.f32 0.0, %v2636
        %v2638 = vpop.f32.mrb[0].mxu0
        %v2639 = vadd.f32 0.0, %v2638
        %2640 = vdwg.mxu0
        %2641 = vmatprep.subr.mxu0 %v2355
        %2642 = vmatpush1.msra.mxu0 %v2352
        %2643 = vmatprep.subr.mxu0 0.0
        %2644 = vmatpush1.msra.mxu0 0.0
        %2645 = vmatprep.subr.mxu0 0.0
        %2646 = vmatpush1.msra.mxu0 0.0
        %2647 = vmatprep.subr.mxu0 0.0
        %2648 = vmatpush1.msra.mxu0 0.0
        %2649 = vmatprep.subr.mxu0 0.0
        %2650 = vmatpush1.msra.mxu0 0.0
        %2651 = vmatprep.subr.mxu0 0.0
        %2652 = vmatpush1.msra.mxu0 0.0
        %2653 = vmatprep.subr.mxu0 0.0
        %2654 = vmatpush1.msra.mxu0 0.0
        %2655 = vmatprep.subr.mxu0 0.0
        %2656 = vmatpush1.msra.mxu0 0.0
        %2657 = vmatprep.subr.mxu0 0.0
        %2658 = vmatpush1.msra.mxu0 0.0
        %2659 = vmatprep.subr.mxu0 0.0
        %2660 = vmatpush1.msra.mxu0 0.0
        %2661 = vmatprep.subr.mxu0 0.0
        %2662 = vmatpush1.msra.mxu0 0.0
        %2663 = vmatprep.subr.mxu0 0.0
        %2664 = vmatpush1.msra.mxu0 0.0
        %2665 = vmatprep.subr.mxu0 0.0
        %2666 = vmatpush1.msra.mxu0 0.0
        %2667 = vmatprep.subr.mxu0 0.0
        %2668 = vmatpush1.msra.mxu0 0.0
        %2669 = vmatprep.subr.mxu0 0.0
        %2670 = vmatpush1.msra.mxu0 0.0
        %2671 = vmatprep.subr.mxu0 0.0
        %2672 = vmatpush1.msra.mxu0 0.0
        %2673 = vmatprep.subr.mxu0 0.0
        %2674 = vmatpush1.msra.mxu0 0.0
        %2675 = vmatprep.subr.mxu0 0.0
        %2676 = vmatpush1.msra.mxu0 0.0
        %2677 = vmatprep.subr.mxu0 0.0
        %2678 = vmatpush1.msra.mxu0 0.0
        %2679 = vmatprep.subr.mxu0 0.0
        %2680 = vmatpush1.msra.mxu0 0.0
        %2681 = vmatprep.subr.mxu0 0.0
        %2682 = vmatpush1.msra.mxu0 0.0
        %2683 = vmatprep.subr.mxu0 0.0
        %2684 = vmatpush1.msra.mxu0 0.0
        %2685 = vmatprep.subr.mxu0 0.0
        %2686 = vmatpush1.msra.mxu0 0.0
        %2687 = vmatprep.subr.mxu0 0.0
        %2688 = vmatpush1.msra.mxu0 0.0
        %2689 = vmatprep.subr.mxu0 0.0
        %2690 = vmatpush1.msra.mxu0 0.0
        %2691 = vmatprep.subr.mxu0 0.0
        %2692 = vmatpush1.msra.mxu0 0.0
        %2693 = vmatprep.subr.mxu0 0.0
        %2694 = vmatpush1.msra.mxu0 0.0
        %2695 = vmatprep.subr.mxu0 0.0
        %2696 = vmatpush1.msra.mxu0 0.0
        %2697 = vmatprep.subr.mxu0 0.0
        %2698 = vmatpush1.msra.mxu0 0.0
        %2699 = vmatprep.subr.mxu0 0.0
        %2700 = vmatpush1.msra.mxu0 0.0
        %2701 = vmatprep.subr.mxu0 0.0
        %2702 = vmatpush1.msra.mxu0 0.0
        %2703 = vmatprep.subr.mxu0 0.0
        %2704 = vmatpush1.msra.mxu0 0.0
        %2705 = vmatprep.mubr.f32.mxu0 0.0
        %2706 = vmatmul.mubr.f32.gmra.mrb[0].mxu0 %v2325
        %v2707 = vpop.f32.mrb[0].mxu0
        %v2708 = vadd.f32 0.0, %v2707
        %v2709 = vpop.f32.mrb[0].mxu0
        %v2710 = vadd.f32 0.0, %v2709
        %2711 = vdwg.mxu0
        %v2712 = vadd.f32 %v2281, %v2424
        %v2713 = vadd.f32 %v2282, %v2426
        %v2714 = vadd.f32 %v2283, %v2495
        %v2715 = vadd.f32 %v2284, %v2497
        %v2716 = vadd.f32 %v2285, %v2566
        %v2717 = vadd.f32 %v2286, %v2568
        %v2718 = vadd.f32 %v2287, %v2637
        %v2719 = vadd.f32 %v2288, %v2639
        %v2720 = vadd.f32 %v2289, %v2708
        %v2721 = vadd.f32 %v2290, %v2710
        %2722 = vrot.lane.b32.xlu0 %v174, 95
        %v2723 = vpop.permute.xlu0 %2722
        %2724 = vrot.lane.b32.xlu0 %v175, 95
        %v2725 = vpop.permute.xlu0 %2724
        %2726 = vrot.lane.b32.xlu0 %v176, 95
        %v2727 = vpop.permute.xlu0 %2726
        %2728 = vrot.lane.b32.xlu0 %v177, 95
        %v2729 = vpop.permute.xlu0 %2728
        %2730 = vrot.lane.b32.xlu0 %v178, 95
        %v2731 = vpop.permute.xlu0 %2730
        %2732 = vrot.lane.b32.xlu0 %v179, 95
        %v2733 = vpop.permute.xlu0 %2732
        %2734 = vrot.lane.b32.xlu0 %v180, 95
        %v2735 = vpop.permute.xlu0 %2734
        %2736 = vrot.lane.b32.xlu0 %v181, 95
        %v2737 = vpop.permute.xlu0 %2736
        %2738 = vrot.lane.b32.xlu0 %v182, 95
        %v2739 = vpop.permute.xlu0 %2738
        %2740 = vrot.lane.b32.xlu0 %v183, 95
        %v2741 = vpop.permute.xlu0 %2740
        %vm2742 = vcmp.lt.s32.totalorder %v205, 95
        %v2743 = vsel %vm2742, %v2739, %v2741
        %v2744 = vsel %vm2742, %v2737, %v2739
        %v2745 = vsel %vm2742, %v2735, %v2737
        %v2746 = vsel %vm2742, %v2733, %v2735
        %v2747 = vsel %vm2742, %v2731, %v2733
        %v2748 = vsel %vm2742, %v2729, %v2731
        %v2749 = vsel %vm2742, %v2727, %v2729
        %v2750 = vsel %vm2742, %v2725, %v2727
        %v2751 = vsel %vm2742, %v2723, %v2725
        %v2752 = vsel %vm2742, %v2741, %v2723
        %s2753 = scalar_lea.vmem %s1, 48
        %v2754 = vld [vmem:[%s2753] sm:$0xff]
        %v2756 = vsel %vm251, %v2754, 0
        %v2759 = vsel %vm255, %v2751, 0
        %v2762 = vsel %vm255, %v2750, 0
        %v2765 = vsel %vm255, %v2749, 0
        %v2768 = vsel %vm255, %v2748, 0
        %v2771 = vsel %vm255, %v2747, 0
        %v2774 = vsel %vm255, %v2746, 0
        %v2777 = vsel %vm255, %v2745, 0
        %v2780 = vsel %vm255, %v2744, 0
        %v2783 = vsel %vm255, %v2743, 0
        %v2786 = vsel %vm255, %v2752, 0
        %2788 = vmatprep.subr.mxu0 %v2762
        %2789 = vmatpush1.msra.mxu0 %v2759
        %2790 = vmatprep.subr.mxu0 0.0
        %2791 = vmatpush1.msra.mxu0 0.0
        %2792 = vmatprep.subr.mxu0 0.0
        %2793 = vmatpush1.msra.mxu0 0.0
        %2794 = vmatprep.subr.mxu0 0.0
        %2795 = vmatpush1.msra.mxu0 0.0
        %2796 = vmatprep.subr.mxu0 0.0
        %2797 = vmatpush1.msra.mxu0 0.0
        %2798 = vmatprep.subr.mxu0 0.0
        %2799 = vmatpush1.msra.mxu0 0.0
        %2800 = vmatprep.subr.mxu0 0.0
        %2801 = vmatpush1.msra.mxu0 0.0
        %2802 = vmatprep.subr.mxu0 0.0
        %2803 = vmatpush1.msra.mxu0 0.0
        %2804 = vmatprep.subr.mxu0 0.0
        %2805 = vmatpush1.msra.mxu0 0.0
        %2806 = vmatprep.subr.mxu0 0.0
        %2807 = vmatpush1.msra.mxu0 0.0
        %2808 = vmatprep.subr.mxu0 0.0
        %2809 = vmatpush1.msra.mxu0 0.0
        %2810 = vmatprep.subr.mxu0 0.0
        %2811 = vmatpush1.msra.mxu0 0.0
        %2812 = vmatprep.subr.mxu0 0.0
        %2813 = vmatpush1.msra.mxu0 0.0
        %2814 = vmatprep.subr.mxu0 0.0
        %2815 = vmatpush1.msra.mxu0 0.0
        %2816 = vmatprep.subr.mxu0 0.0
        %2817 = vmatpush1.msra.mxu0 0.0
        %2818 = vmatprep.subr.mxu0 0.0
        %2819 = vmatpush1.msra.mxu0 0.0
        %2820 = vmatprep.subr.mxu0 0.0
        %2821 = vmatpush1.msra.mxu0 0.0
        %2822 = vmatprep.subr.mxu0 0.0
        %2823 = vmatpush1.msra.mxu0 0.0
        %2824 = vmatprep.subr.mxu0 0.0
        %2825 = vmatpush1.msra.mxu0 0.0
        %2826 = vmatprep.subr.mxu0 0.0
        %2827 = vmatpush1.msra.mxu0 0.0
        %2828 = vmatprep.subr.mxu0 0.0
        %2829 = vmatpush1.msra.mxu0 0.0
        %2830 = vmatprep.subr.mxu0 0.0
        %2831 = vmatpush1.msra.mxu0 0.0
        %2832 = vmatprep.subr.mxu0 0.0
        %2833 = vmatpush1.msra.mxu0 0.0
        %2834 = vmatprep.subr.mxu0 0.0
        %2835 = vmatpush1.msra.mxu0 0.0
        %2836 = vmatprep.subr.mxu0 0.0
        %2837 = vmatpush1.msra.mxu0 0.0
        %2838 = vmatprep.subr.mxu0 0.0
        %2839 = vmatpush1.msra.mxu0 0.0
        %2840 = vmatprep.subr.mxu0 0.0
        %2841 = vmatpush1.msra.mxu0 0.0
        %2842 = vmatprep.subr.mxu0 0.0
        %2843 = vmatpush1.msra.mxu0 0.0
        %2844 = vmatprep.subr.mxu0 0.0
        %2845 = vmatpush1.msra.mxu0 0.0
        %2846 = vmatprep.subr.mxu0 0.0
        %2847 = vmatpush1.msra.mxu0 0.0
        %2848 = vmatprep.subr.mxu0 0.0
        %2849 = vmatpush1.msra.mxu0 0.0
        %2850 = vmatprep.subr.mxu0 0.0
        %2851 = vmatpush1.msra.mxu0 0.0
        %2852 = vmatprep.mubr.f32.mxu0 0.0
        %2853 = vmatmul.mubr.f32.gmra.mrb[0].mxu0 %v2756
        %v2854 = vpop.f32.mrb[0].mxu0
        %v2855 = vadd.f32 0.0, %v2854
        %v2856 = vpop.f32.mrb[0].mxu0
        %v2857 = vadd.f32 0.0, %v2856
        %2858 = vdwg.mxu0
        %2859 = vmatprep.subr.mxu0 %v2768
        %2860 = vmatpush1.msra.mxu0 %v2765
        %2861 = vmatprep.subr.mxu0 0.0
        %2862 = vmatpush1.msra.mxu0 0.0
        %2863 = vmatprep.subr.mxu0 0.0
        %2864 = vmatpush1.msra.mxu0 0.0
        %2865 = vmatprep.subr.mxu0 0.0
        %2866 = vmatpush1.msra.mxu0 0.0
        %2867 = vmatprep.subr.mxu0 0.0
        %2868 = vmatpush1.msra.mxu0 0.0
        %2869 = vmatprep.subr.mxu0 0.0
        %2870 = vmatpush1.msra.mxu0 0.0
        %2871 = vmatprep.subr.mxu0 0.0
        %2872 = vmatpush1.msra.mxu0 0.0
        %2873 = vmatprep.subr.mxu0 0.0
        %2874 = vmatpush1.msra.mxu0 0.0
        %2875 = vmatprep.subr.mxu0 0.0
        %2876 = vmatpush1.msra.mxu0 0.0
        %2877 = vmatprep.subr.mxu0 0.0
        %2878 = vmatpush1.msra.mxu0 0.0
        %2879 = vmatprep.subr.mxu0 0.0
        %2880 = vmatpush1.msra.mxu0 0.0
        %2881 = vmatprep.subr.mxu0 0.0
        %2882 = vmatpush1.msra.mxu0 0.0
        %2883 = vmatprep.subr.mxu0 0.0
        %2884 = vmatpush1.msra.mxu0 0.0
        %2885 = vmatprep.subr.mxu0 0.0
        %2886 = vmatpush1.msra.mxu0 0.0
        %2887 = vmatprep.subr.mxu0 0.0
        %2888 = vmatpush1.msra.mxu0 0.0
        %2889 = vmatprep.subr.mxu0 0.0
        %2890 = vmatpush1.msra.mxu0 0.0
        %2891 = vmatprep.subr.mxu0 0.0
        %2892 = vmatpush1.msra.mxu0 0.0
        %2893 = vmatprep.subr.mxu0 0.0
        %2894 = vmatpush1.msra.mxu0 0.0
        %2895 = vmatprep.subr.mxu0 0.0
        %2896 = vmatpush1.msra.mxu0 0.0
        %2897 = vmatprep.subr.mxu0 0.0
        %2898 = vmatpush1.msra.mxu0 0.0
        %2899 = vmatprep.subr.mxu0 0.0
        %2900 = vmatpush1.msra.mxu0 0.0
        %2901 = vmatprep.subr.mxu0 0.0
        %2902 = vmatpush1.msra.mxu0 0.0
        %2903 = vmatprep.subr.mxu0 0.0
        %2904 = vmatpush1.msra.mxu0 0.0
        %2905 = vmatprep.subr.mxu0 0.0
        %2906 = vmatpush1.msra.mxu0 0.0
        %2907 = vmatprep.subr.mxu0 0.0
        %2908 = vmatpush1.msra.mxu0 0.0
        %2909 = vmatprep.subr.mxu0 0.0
        %2910 = vmatpush1.msra.mxu0 0.0
        %2911 = vmatprep.subr.mxu0 0.0
        %2912 = vmatpush1.msra.mxu0 0.0
        %2913 = vmatprep.subr.mxu0 0.0
        %2914 = vmatpush1.msra.mxu0 0.0
        %2915 = vmatprep.subr.mxu0 0.0
        %2916 = vmatpush1.msra.mxu0 0.0
        %2917 = vmatprep.subr.mxu0 0.0
        %2918 = vmatpush1.msra.mxu0 0.0
        %2919 = vmatprep.subr.mxu0 0.0
        %2920 = vmatpush1.msra.mxu0 0.0
        %2921 = vmatprep.subr.mxu0 0.0
        %2922 = vmatpush1.msra.mxu0 0.0
        %2923 = vmatprep.mubr.f32.mxu0 0.0
        %2924 = vmatmul.mubr.f32.gmra.mrb[0].mxu0 %v2756
        %v2925 = vpop.f32.mrb[0].mxu0
        %v2926 = vadd.f32 0.0, %v2925
        %v2927 = vpop.f32.mrb[0].mxu0
        %v2928 = vadd.f32 0.0, %v2927
        %2929 = vdwg.mxu0
        %2930 = vmatprep.subr.mxu0 %v2774
        %2931 = vmatpush1.msra.mxu0 %v2771
        %2932 = vmatprep.subr.mxu0 0.0
        %2933 = vmatpush1.msra.mxu0 0.0
        %2934 = vmatprep.subr.mxu0 0.0
        %2935 = vmatpush1.msra.mxu0 0.0
        %2936 = vmatprep.subr.mxu0 0.0
        %2937 = vmatpush1.msra.mxu0 0.0
        %2938 = vmatprep.subr.mxu0 0.0
        %2939 = vmatpush1.msra.mxu0 0.0
        %2940 = vmatprep.subr.mxu0 0.0
        %2941 = vmatpush1.msra.mxu0 0.0
        %2942 = vmatprep.subr.mxu0 0.0
        %2943 = vmatpush1.msra.mxu0 0.0
        %2944 = vmatprep.subr.mxu0 0.0
        %2945 = vmatpush1.msra.mxu0 0.0
        %2946 = vmatprep.subr.mxu0 0.0
        %2947 = vmatpush1.msra.mxu0 0.0
        %2948 = vmatprep.subr.mxu0 0.0
        %2949 = vmatpush1.msra.mxu0 0.0
        %2950 = vmatprep.subr.mxu0 0.0
        %2951 = vmatpush1.msra.mxu0 0.0
        %2952 = vmatprep.subr.mxu0 0.0
        %2953 = vmatpush1.msra.mxu0 0.0
        %2954 = vmatprep.subr.mxu0 0.0
        %2955 = vmatpush1.msra.mxu0 0.0
        %2956 = vmatprep.subr.mxu0 0.0
        %2957 = vmatpush1.msra.mxu0 0.0
        %2958 = vmatprep.subr.mxu0 0.0
        %2959 = vmatpush1.msra.mxu0 0.0
        %2960 = vmatprep.subr.mxu0 0.0
        %2961 = vmatpush1.msra.mxu0 0.0
        %2962 = vmatprep.subr.mxu0 0.0
        %2963 = vmatpush1.msra.mxu0 0.0
        %2964 = vmatprep.subr.mxu0 0.0
        %2965 = vmatpush1.msra.mxu0 0.0
        %2966 = vmatprep.subr.mxu0 0.0
        %2967 = vmatpush1.msra.mxu0 0.0
        %2968 = vmatprep.subr.mxu0 0.0
        %2969 = vmatpush1.msra.mxu0 0.0
        %2970 = vmatprep.subr.mxu0 0.0
        %2971 = vmatpush1.msra.mxu0 0.0
        %2972 = vmatprep.subr.mxu0 0.0
        %2973 = vmatpush1.msra.mxu0 0.0
        %2974 = vmatprep.subr.mxu0 0.0
        %2975 = vmatpush1.msra.mxu0 0.0
        %2976 = vmatprep.subr.mxu0 0.0
        %2977 = vmatpush1.msra.mxu0 0.0
        %2978 = vmatprep.subr.mxu0 0.0
        %2979 = vmatpush1.msra.mxu0 0.0
        %2980 = vmatprep.subr.mxu0 0.0
        %2981 = vmatpush1.msra.mxu0 0.0
        %2982 = vmatprep.subr.mxu0 0.0
        %2983 = vmatpush1.msra.mxu0 0.0
        %2984 = vmatprep.subr.mxu0 0.0
        %2985 = vmatpush1.msra.mxu0 0.0
        %2986 = vmatprep.subr.mxu0 0.0
        %2987 = vmatpush1.msra.mxu0 0.0
        %2988 = vmatprep.subr.mxu0 0.0
        %2989 = vmatpush1.msra.mxu0 0.0
        %2990 = vmatprep.subr.mxu0 0.0
        %2991 = vmatpush1.msra.mxu0 0.0
        %2992 = vmatprep.subr.mxu0 0.0
        %2993 = vmatpush1.msra.mxu0 0.0
        %2994 = vmatprep.mubr.f32.mxu0 0.0
        %2995 = vmatmul.mubr.f32.gmra.mrb[0].mxu0 %v2756
        %v2996 = vpop.f32.mrb[0].mxu0
        %v2997 = vadd.f32 0.0, %v2996
        %v2998 = vpop.f32.mrb[0].mxu0
        %v2999 = vadd.f32 0.0, %v2998
        %3000 = vdwg.mxu0
        %3001 = vmatprep.subr.mxu0 %v2780
        %3002 = vmatpush1.msra.mxu0 %v2777
        %3003 = vmatprep.subr.mxu0 0.0
        %3004 = vmatpush1.msra.mxu0 0.0
        %3005 = vmatprep.subr.mxu0 0.0
        %3006 = vmatpush1.msra.mxu0 0.0
        %3007 = vmatprep.subr.mxu0 0.0
        %3008 = vmatpush1.msra.mxu0 0.0
        %3009 = vmatprep.subr.mxu0 0.0
        %3010 = vmatpush1.msra.mxu0 0.0
        %3011 = vmatprep.subr.mxu0 0.0
        %3012 = vmatpush1.msra.mxu0 0.0
        %3013 = vmatprep.subr.mxu0 0.0
        %3014 = vmatpush1.msra.mxu0 0.0
        %3015 = vmatprep.subr.mxu0 0.0
        %3016 = vmatpush1.msra.mxu0 0.0
        %3017 = vmatprep.subr.mxu0 0.0
        %3018 = vmatpush1.msra.mxu0 0.0
        %3019 = vmatprep.subr.mxu0 0.0
        %3020 = vmatpush1.msra.mxu0 0.0
        %3021 = vmatprep.subr.mxu0 0.0
        %3022 = vmatpush1.msra.mxu0 0.0
        %3023 = vmatprep.subr.mxu0 0.0
        %3024 = vmatpush1.msra.mxu0 0.0
        %3025 = vmatprep.subr.mxu0 0.0
        %3026 = vmatpush1.msra.mxu0 0.0
        %3027 = vmatprep.subr.mxu0 0.0
        %3028 = vmatpush1.msra.mxu0 0.0
        %3029 = vmatprep.subr.mxu0 0.0
        %3030 = vmatpush1.msra.mxu0 0.0
        %3031 = vmatprep.subr.mxu0 0.0
        %3032 = vmatpush1.msra.mxu0 0.0
        %3033 = vmatprep.subr.mxu0 0.0
        %3034 = vmatpush1.msra.mxu0 0.0
        %3035 = vmatprep.subr.mxu0 0.0
        %3036 = vmatpush1.msra.mxu0 0.0
        %3037 = vmatprep.subr.mxu0 0.0
        %3038 = vmatpush1.msra.mxu0 0.0
        %3039 = vmatprep.subr.mxu0 0.0
        %3040 = vmatpush1.msra.mxu0 0.0
        %3041 = vmatprep.subr.mxu0 0.0
        %3042 = vmatpush1.msra.mxu0 0.0
        %3043 = vmatprep.subr.mxu0 0.0
        %3044 = vmatpush1.msra.mxu0 0.0
        %3045 = vmatprep.subr.mxu0 0.0
        %3046 = vmatpush1.msra.mxu0 0.0
        %3047 = vmatprep.subr.mxu0 0.0
        %3048 = vmatpush1.msra.mxu0 0.0
        %3049 = vmatprep.subr.mxu0 0.0
        %3050 = vmatpush1.msra.mxu0 0.0
        %3051 = vmatprep.subr.mxu0 0.0
        %3052 = vmatpush1.msra.mxu0 0.0
        %3053 = vmatprep.subr.mxu0 0.0
        %3054 = vmatpush1.msra.mxu0 0.0
        %3055 = vmatprep.subr.mxu0 0.0
        %3056 = vmatpush1.msra.mxu0 0.0
        %3057 = vmatprep.subr.mxu0 0.0
        %3058 = vmatpush1.msra.mxu0 0.0
        %3059 = vmatprep.subr.mxu0 0.0
        %3060 = vmatpush1.msra.mxu0 0.0
        %3061 = vmatprep.subr.mxu0 0.0
        %3062 = vmatpush1.msra.mxu0 0.0
        %3063 = vmatprep.subr.mxu0 0.0
        %3064 = vmatpush1.msra.mxu0 0.0
        %3065 = vmatprep.mubr.f32.mxu0 0.0
        %3066 = vmatmul.mubr.f32.gmra.mrb[0].mxu0 %v2756
        %v3067 = vpop.f32.mrb[0].mxu0
        %v3068 = vadd.f32 0.0, %v3067
        %v3069 = vpop.f32.mrb[0].mxu0
        %v3070 = vadd.f32 0.0, %v3069
        %3071 = vdwg.mxu0
        %3072 = vmatprep.subr.mxu0 %v2786
        %3073 = vmatpush1.msra.mxu0 %v2783
        %3074 = vmatprep.subr.mxu0 0.0
        %3075 = vmatpush1.msra.mxu0 0.0
        %3076 = vmatprep.subr.mxu0 0.0
        %3077 = vmatpush1.msra.mxu0 0.0
        %3078 = vmatprep.subr.mxu0 0.0
        %3079 = vmatpush1.msra.mxu0 0.0
        %3080 = vmatprep.subr.mxu0 0.0
        %3081 = vmatpush1.msra.mxu0 0.0
        %3082 = vmatprep.subr.mxu0 0.0
        %3083 = vmatpush1.msra.mxu0 0.0
        %3084 = vmatprep.subr.mxu0 0.0
        %3085 = vmatpush1.msra.mxu0 0.0
        %3086 = vmatprep.subr.mxu0 0.0
        %3087 = vmatpush1.msra.mxu0 0.0
        %3088 = vmatprep.subr.mxu0 0.0
        %3089 = vmatpush1.msra.mxu0 0.0
        %3090 = vmatprep.subr.mxu0 0.0
        %3091 = vmatpush1.msra.mxu0 0.0
        %3092 = vmatprep.subr.mxu0 0.0
        %3093 = vmatpush1.msra.mxu0 0.0
        %3094 = vmatprep.subr.mxu0 0.0
        %3095 = vmatpush1.msra.mxu0 0.0
        %3096 = vmatprep.subr.mxu0 0.0
        %3097 = vmatpush1.msra.mxu0 0.0
        %3098 = vmatprep.subr.mxu0 0.0
        %3099 = vmatpush1.msra.mxu0 0.0
        %3100 = vmatprep.subr.mxu0 0.0
        %3101 = vmatpush1.msra.mxu0 0.0
        %3102 = vmatprep.subr.mxu0 0.0
        %3103 = vmatpush1.msra.mxu0 0.0
        %3104 = vmatprep.subr.mxu0 0.0
        %3105 = vmatpush1.msra.mxu0 0.0
        %3106 = vmatprep.subr.mxu0 0.0
        %3107 = vmatpush1.msra.mxu0 0.0
        %3108 = vmatprep.subr.mxu0 0.0
        %3109 = vmatpush1.msra.mxu0 0.0
        %3110 = vmatprep.subr.mxu0 0.0
        %3111 = vmatpush1.msra.mxu0 0.0
        %3112 = vmatprep.subr.mxu0 0.0
        %3113 = vmatpush1.msra.mxu0 0.0
        %3114 = vmatprep.subr.mxu0 0.0
        %3115 = vmatpush1.msra.mxu0 0.0
        %3116 = vmatprep.subr.mxu0 0.0
        %3117 = vmatpush1.msra.mxu0 0.0
        %3118 = vmatprep.subr.mxu0 0.0
        %3119 = vmatpush1.msra.mxu0 0.0
        %3120 = vmatprep.subr.mxu0 0.0
        %3121 = vmatpush1.msra.mxu0 0.0
        %3122 = vmatprep.subr.mxu0 0.0
        %3123 = vmatpush1.msra.mxu0 0.0
        %3124 = vmatprep.subr.mxu0 0.0
        %3125 = vmatpush1.msra.mxu0 0.0
        %3126 = vmatprep.subr.mxu0 0.0
        %3127 = vmatpush1.msra.mxu0 0.0
        %3128 = vmatprep.subr.mxu0 0.0
        %3129 = vmatpush1.msra.mxu0 0.0
        %3130 = vmatprep.subr.mxu0 0.0
        %3131 = vmatpush1.msra.mxu0 0.0
        %3132 = vmatprep.subr.mxu0 0.0
        %3133 = vmatpush1.msra.mxu0 0.0
        %3134 = vmatprep.subr.mxu0 0.0
        %3135 = vmatpush1.msra.mxu0 0.0
        %3136 = vmatprep.mubr.f32.mxu0 0.0
        %3137 = vmatmul.mubr.f32.gmra.mrb[0].mxu0 %v2756
        %v3138 = vpop.f32.mrb[0].mxu0
        %v3139 = vadd.f32 0.0, %v3138
        %v3140 = vpop.f32.mrb[0].mxu0
        %v3141 = vadd.f32 0.0, %v3140
        %3142 = vdwg.mxu0
        %v3143 = vadd.f32 %v2712, %v2855
        %v3144 = vadd.f32 %v2713, %v2857
        %v3145 = vadd.f32 %v2714, %v2926
        %v3146 = vadd.f32 %v2715, %v2928
        %v3147 = vadd.f32 %v2716, %v2997
        %v3148 = vadd.f32 %v2717, %v2999
        %v3149 = vadd.f32 %v2718, %v3068
        %v3150 = vadd.f32 %v2719, %v3070
        %v3151 = vadd.f32 %v2720, %v3139
        %v3152 = vadd.f32 %v2721, %v3141
        %3153 = vrot.lane.b32.xlu0 %v174, 94
        %v3154 = vpop.permute.xlu0 %3153
        %3155 = vrot.lane.b32.xlu0 %v175, 94
        %v3156 = vpop.permute.xlu0 %3155
        %3157 = vrot.lane.b32.xlu0 %v176, 94
        %v3158 = vpop.permute.xlu0 %3157
        %3159 = vrot.lane.b32.xlu0 %v177, 94
        %v3160 = vpop.permute.xlu0 %3159
        %3161 = vrot.lane.b32.xlu0 %v178, 94
        %v3162 = vpop.permute.xlu0 %3161
        %3163 = vrot.lane.b32.xlu0 %v179, 94
        %v3164 = vpop.permute.xlu0 %3163
        %3165 = vrot.lane.b32.xlu0 %v180, 94
        %v3166 = vpop.permute.xlu0 %3165
        %3167 = vrot.lane.b32.xlu0 %v181, 94
        %v3168 = vpop.permute.xlu0 %3167
        %3169 = vrot.lane.b32.xlu0 %v182, 94
        %v3170 = vpop.permute.xlu0 %3169
        %3171 = vrot.lane.b32.xlu0 %v183, 94
        %v3172 = vpop.permute.xlu0 %3171
        %vm3173 = vcmp.lt.s32.totalorder %v205, 94
        %v3174 = vsel %vm3173, %v3170, %v3172
        %v3175 = vsel %vm3173, %v3168, %v3170
        %v3176 = vsel %vm3173, %v3166, %v3168
        %v3177 = vsel %vm3173, %v3164, %v3166
        %v3178 = vsel %vm3173, %v3162, %v3164
        %v3179 = vsel %vm3173, %v3160, %v3162
        %v3180 = vsel %vm3173, %v3158, %v3160
        %v3181 = vsel %vm3173, %v3156, %v3158
        %v3182 = vsel %vm3173, %v3154, %v3156
        %v3183 = vsel %vm3173, %v3172, %v3154
        %s3184 = scalar_lea.vmem %s1, 56
        %v3185 = vld [vmem:[%s3184] sm:$0xff]
        %v3187 = vsel %vm251, %v3185, 0
        %v3190 = vsel %vm255, %v3182, 0
        %v3193 = vsel %vm255, %v3181, 0
        %v3196 = vsel %vm255, %v3180, 0
        %v3199 = vsel %vm255, %v3179, 0
        %v3202 = vsel %vm255, %v3178, 0
        %v3205 = vsel %vm255, %v3177, 0
        %v3208 = vsel %vm255, %v3176, 0
        %v3211 = vsel %vm255, %v3175, 0
        %v3214 = vsel %vm255, %v3174, 0
        %v3217 = vsel %vm255, %v3183, 0
        %3219 = vmatprep.subr.mxu0 %v3193
        %3220 = vmatpush1.msra.mxu0 %v3190
        %3221 = vmatprep.subr.mxu0 0.0
        %3222 = vmatpush1.msra.mxu0 0.0
        %3223 = vmatprep.subr.mxu0 0.0
        %3224 = vmatpush1.msra.mxu0 0.0
        %3225 = vmatprep.subr.mxu0 0.0
        %3226 = vmatpush1.msra.mxu0 0.0
        %3227 = vmatprep.subr.mxu0 0.0
        %3228 = vmatpush1.msra.mxu0 0.0
        %3229 = vmatprep.subr.mxu0 0.0
        %3230 = vmatpush1.msra.mxu0 0.0
        %3231 = vmatprep.subr.mxu0 0.0
        %3232 = vmatpush1.msra.mxu0 0.0
        %3233 = vmatprep.subr.mxu0 0.0
        %3234 = vmatpush1.msra.mxu0 0.0
        %3235 = vmatprep.subr.mxu0 0.0
        %3236 = vmatpush1.msra.mxu0 0.0
        %3237 = vmatprep.subr.mxu0 0.0
        %3238 = vmatpush1.msra.mxu0 0.0
        %3239 = vmatprep.subr.mxu0 0.0
        %3240 = vmatpush1.msra.mxu0 0.0
        %3241 = vmatprep.subr.mxu0 0.0
        %3242 = vmatpush1.msra.mxu0 0.0
        %3243 = vmatprep.subr.mxu0 0.0
        %3244 = vmatpush1.msra.mxu0 0.0
        %3245 = vmatprep.subr.mxu0 0.0
        %3246 = vmatpush1.msra.mxu0 0.0
        %3247 = vmatprep.subr.mxu0 0.0
        %3248 = vmatpush1.msra.mxu0 0.0
        %3249 = vmatprep.subr.mxu0 0.0
        %3250 = vmatpush1.msra.mxu0 0.0
        %3251 = vmatprep.subr.mxu0 0.0
        %3252 = vmatpush1.msra.mxu0 0.0
        %3253 = vmatprep.subr.mxu0 0.0
        %3254 = vmatpush1.msra.mxu0 0.0
        %3255 = vmatprep.subr.mxu0 0.0
        %3256 = vmatpush1.msra.mxu0 0.0
        %3257 = vmatprep.subr.mxu0 0.0
        %3258 = vmatpush1.msra.mxu0 0.0
        %3259 = vmatprep.subr.mxu0 0.0
        %3260 = vmatpush1.msra.mxu0 0.0
        %3261 = vmatprep.subr.mxu0 0.0
        %3262 = vmatpush1.msra.mxu0 0.0
        %3263 = vmatprep.subr.mxu0 0.0
        %3264 = vmatpush1.msra.mxu0 0.0
        %3265 = vmatprep.subr.mxu0 0.0
        %3266 = vmatpush1.msra.mxu0 0.0
        %3267 = vmatprep.subr.mxu0 0.0
        %3268 = vmatpush1.msra.mxu0 0.0
        %3269 = vmatprep.subr.mxu0 0.0
        %3270 = vmatpush1.msra.mxu0 0.0
        %3271 = vmatprep.subr.mxu0 0.0
        %3272 = vmatpush1.msra.mxu0 0.0
        %3273 = vmatprep.subr.mxu0 0.0
        %3274 = vmatpush1.msra.mxu0 0.0
        %3275 = vmatprep.subr.mxu0 0.0
        %3276 = vmatpush1.msra.mxu0 0.0
        %3277 = vmatprep.subr.mxu0 0.0
        %3278 = vmatpush1.msra.mxu0 0.0
        %3279 = vmatprep.subr.mxu0 0.0
        %3280 = vmatpush1.msra.mxu0 0.0
        %3281 = vmatprep.subr.mxu0 0.0
        %3282 = vmatpush1.msra.mxu0 0.0
        %3283 = vmatprep.mubr.f32.mxu0 0.0
        %3284 = vmatmul.mubr.f32.gmra.mrb[0].mxu0 %v3187
        %v3285 = vpop.f32.mrb[0].mxu0
        %v3286 = vadd.f32 0.0, %v3285
        %v3287 = vpop.f32.mrb[0].mxu0
        %v3288 = vadd.f32 0.0, %v3287
        %3289 = vdwg.mxu0
        %3290 = vmatprep.subr.mxu0 %v3199
        %3291 = vmatpush1.msra.mxu0 %v3196
        %3292 = vmatprep.subr.mxu0 0.0
        %3293 = vmatpush1.msra.mxu0 0.0
        %3294 = vmatprep.subr.mxu0 0.0
        %3295 = vmatpush1.msra.mxu0 0.0
        %3296 = vmatprep.subr.mxu0 0.0
        %3297 = vmatpush1.msra.mxu0 0.0
        %3298 = vmatprep.subr.mxu0 0.0
        %3299 = vmatpush1.msra.mxu0 0.0
        %3300 = vmatprep.subr.mxu0 0.0
        %3301 = vmatpush1.msra.mxu0 0.0
        %3302 = vmatprep.subr.mxu0 0.0
        %3303 = vmatpush1.msra.mxu0 0.0
        %3304 = vmatprep.subr.mxu0 0.0
        %3305 = vmatpush1.msra.mxu0 0.0
        %3306 = vmatprep.subr.mxu0 0.0
        %3307 = vmatpush1.msra.mxu0 0.0
        %3308 = vmatprep.subr.mxu0 0.0
        %3309 = vmatpush1.msra.mxu0 0.0
        %3310 = vmatprep.subr.mxu0 0.0
        %3311 = vmatpush1.msra.mxu0 0.0
        %3312 = vmatprep.subr.mxu0 0.0
        %3313 = vmatpush1.msra.mxu0 0.0
        %3314 = vmatprep.subr.mxu0 0.0
        %3315 = vmatpush1.msra.mxu0 0.0
        %3316 = vmatprep.subr.mxu0 0.0
        %3317 = vmatpush1.msra.mxu0 0.0
        %3318 = vmatprep.subr.mxu0 0.0
        %3319 = vmatpush1.msra.mxu0 0.0
        %3320 = vmatprep.subr.mxu0 0.0
        %3321 = vmatpush1.msra.mxu0 0.0
        %3322 = vmatprep.subr.mxu0 0.0
        %3323 = vmatpush1.msra.mxu0 0.0
        %3324 = vmatprep.subr.mxu0 0.0
        %3325 = vmatpush1.msra.mxu0 0.0
        %3326 = vmatprep.subr.mxu0 0.0
        %3327 = vmatpush1.msra.mxu0 0.0
        %3328 = vmatprep.subr.mxu0 0.0
        %3329 = vmatpush1.msra.mxu0 0.0
        %3330 = vmatprep.subr.mxu0 0.0
        %3331 = vmatpush1.msra.mxu0 0.0
        %3332 = vmatprep.subr.mxu0 0.0
        %3333 = vmatpush1.msra.mxu0 0.0
        %3334 = vmatprep.subr.mxu0 0.0
        %3335 = vmatpush1.msra.mxu0 0.0
        %3336 = vmatprep.subr.mxu0 0.0
        %3337 = vmatpush1.msra.mxu0 0.0
        %3338 = vmatprep.subr.mxu0 0.0
        %3339 = vmatpush1.msra.mxu0 0.0
        %3340 = vmatprep.subr.mxu0 0.0
        %3341 = vmatpush1.msra.mxu0 0.0
        %3342 = vmatprep.subr.mxu0 0.0
        %3343 = vmatpush1.msra.mxu0 0.0
        %3344 = vmatprep.subr.mxu0 0.0
        %3345 = vmatpush1.msra.mxu0 0.0
        %3346 = vmatprep.subr.mxu0 0.0
        %3347 = vmatpush1.msra.mxu0 0.0
        %3348 = vmatprep.subr.mxu0 0.0
        %3349 = vmatpush1.msra.mxu0 0.0
        %3350 = vmatprep.subr.mxu0 0.0
        %3351 = vmatpush1.msra.mxu0 0.0
        %3352 = vmatprep.subr.mxu0 0.0
        %3353 = vmatpush1.msra.mxu0 0.0
        %3354 = vmatprep.mubr.f32.mxu0 0.0
        %3355 = vmatmul.mubr.f32.gmra.mrb[0].mxu0 %v3187
        %v3356 = vpop.f32.mrb[0].mxu0
        %v3357 = vadd.f32 0.0, %v3356
        %v3358 = vpop.f32.mrb[0].mxu0
        %v3359 = vadd.f32 0.0, %v3358
        %3360 = vdwg.mxu0
        %3361 = vmatprep.subr.mxu0 %v3205
        %3362 = vmatpush1.msra.mxu0 %v3202
        %3363 = vmatprep.subr.mxu0 0.0
        %3364 = vmatpush1.msra.mxu0 0.0
        %3365 = vmatprep.subr.mxu0 0.0
        %3366 = vmatpush1.msra.mxu0 0.0
        %3367 = vmatprep.subr.mxu0 0.0
        %3368 = vmatpush1.msra.mxu0 0.0
        %3369 = vmatprep.subr.mxu0 0.0
        %3370 = vmatpush1.msra.mxu0 0.0
        %3371 = vmatprep.subr.mxu0 0.0
        %3372 = vmatpush1.msra.mxu0 0.0
        %3373 = vmatprep.subr.mxu0 0.0
        %3374 = vmatpush1.msra.mxu0 0.0
        %3375 = vmatprep.subr.mxu0 0.0
        %3376 = vmatpush1.msra.mxu0 0.0
        %3377 = vmatprep.subr.mxu0 0.0
        %3378 = vmatpush1.msra.mxu0 0.0
        %3379 = vmatprep.subr.mxu0 0.0
        %3380 = vmatpush1.msra.mxu0 0.0
        %3381 = vmatprep.subr.mxu0 0.0
        %3382 = vmatpush1.msra.mxu0 0.0
        %3383 = vmatprep.subr.mxu0 0.0
        %3384 = vmatpush1.msra.mxu0 0.0
        %3385 = vmatprep.subr.mxu0 0.0
        %3386 = vmatpush1.msra.mxu0 0.0
        %3387 = vmatprep.subr.mxu0 0.0
        %3388 = vmatpush1.msra.mxu0 0.0
        %3389 = vmatprep.subr.mxu0 0.0
        %3390 = vmatpush1.msra.mxu0 0.0
        %3391 = vmatprep.subr.mxu0 0.0
        %3392 = vmatpush1.msra.mxu0 0.0
        %3393 = vmatprep.subr.mxu0 0.0
        %3394 = vmatpush1.msra.mxu0 0.0
        %3395 = vmatprep.subr.mxu0 0.0
        %3396 = vmatpush1.msra.mxu0 0.0
        %3397 = vmatprep.subr.mxu0 0.0
        %3398 = vmatpush1.msra.mxu0 0.0
        %3399 = vmatprep.subr.mxu0 0.0
        %3400 = vmatpush1.msra.mxu0 0.0
        %3401 = vmatprep.subr.mxu0 0.0
        %3402 = vmatpush1.msra.mxu0 0.0
        %3403 = vmatprep.subr.mxu0 0.0
        %3404 = vmatpush1.msra.mxu0 0.0
        %3405 = vmatprep.subr.mxu0 0.0
        %3406 = vmatpush1.msra.mxu0 0.0
        %3407 = vmatprep.subr.mxu0 0.0
        %3408 = vmatpush1.msra.mxu0 0.0
        %3409 = vmatprep.subr.mxu0 0.0
        %3410 = vmatpush1.msra.mxu0 0.0
        %3411 = vmatprep.subr.mxu0 0.0
        %3412 = vmatpush1.msra.mxu0 0.0
        %3413 = vmatprep.subr.mxu0 0.0
        %3414 = vmatpush1.msra.mxu0 0.0
        %3415 = vmatprep.subr.mxu0 0.0
        %3416 = vmatpush1.msra.mxu0 0.0
        %3417 = vmatprep.subr.mxu0 0.0
        %3418 = vmatpush1.msra.mxu0 0.0
        %3419 = vmatprep.subr.mxu0 0.0
        %3420 = vmatpush1.msra.mxu0 0.0
        %3421 = vmatprep.subr.mxu0 0.0
        %3422 = vmatpush1.msra.mxu0 0.0
        %3423 = vmatprep.subr.mxu0 0.0
        %3424 = vmatpush1.msra.mxu0 0.0
        %3425 = vmatprep.mubr.f32.mxu0 0.0
        %3426 = vmatmul.mubr.f32.gmra.mrb[0].mxu0 %v3187
        %v3427 = vpop.f32.mrb[0].mxu0
        %v3428 = vadd.f32 0.0, %v3427
        %v3429 = vpop.f32.mrb[0].mxu0
        %v3430 = vadd.f32 0.0, %v3429
        %3431 = vdwg.mxu0
        %3432 = vmatprep.subr.mxu0 %v3211
        %3433 = vmatpush1.msra.mxu0 %v3208
        %3434 = vmatprep.subr.mxu0 0.0
        %3435 = vmatpush1.msra.mxu0 0.0
        %3436 = vmatprep.subr.mxu0 0.0
        %3437 = vmatpush1.msra.mxu0 0.0
        %3438 = vmatprep.subr.mxu0 0.0
        %3439 = vmatpush1.msra.mxu0 0.0
        %3440 = vmatprep.subr.mxu0 0.0
        %3441 = vmatpush1.msra.mxu0 0.0
        %3442 = vmatprep.subr.mxu0 0.0
        %3443 = vmatpush1.msra.mxu0 0.0
        %3444 = vmatprep.subr.mxu0 0.0
        %3445 = vmatpush1.msra.mxu0 0.0
        %3446 = vmatprep.subr.mxu0 0.0
        %3447 = vmatpush1.msra.mxu0 0.0
        %3448 = vmatprep.subr.mxu0 0.0
        %3449 = vmatpush1.msra.mxu0 0.0
        %3450 = vmatprep.subr.mxu0 0.0
        %3451 = vmatpush1.msra.mxu0 0.0
        %3452 = vmatprep.subr.mxu0 0.0
        %3453 = vmatpush1.msra.mxu0 0.0
        %3454 = vmatprep.subr.mxu0 0.0
        %3455 = vmatpush1.msra.mxu0 0.0
        %3456 = vmatprep.subr.mxu0 0.0
        %3457 = vmatpush1.msra.mxu0 0.0
        %3458 = vmatprep.subr.mxu0 0.0
        %3459 = vmatpush1.msra.mxu0 0.0
        %3460 = vmatprep.subr.mxu0 0.0
        %3461 = vmatpush1.msra.mxu0 0.0
        %3462 = vmatprep.subr.mxu0 0.0
        %3463 = vmatpush1.msra.mxu0 0.0
        %3464 = vmatprep.subr.mxu0 0.0
        %3465 = vmatpush1.msra.mxu0 0.0
        %3466 = vmatprep.subr.mxu0 0.0
        %3467 = vmatpush1.msra.mxu0 0.0
        %3468 = vmatprep.subr.mxu0 0.0
        %3469 = vmatpush1.msra.mxu0 0.0
        %3470 = vmatprep.subr.mxu0 0.0
        %3471 = vmatpush1.msra.mxu0 0.0
        %3472 = vmatprep.subr.mxu0 0.0
        %3473 = vmatpush1.msra.mxu0 0.0
        %3474 = vmatprep.subr.mxu0 0.0
        %3475 = vmatpush1.msra.mxu0 0.0
        %3476 = vmatprep.subr.mxu0 0.0
        %3477 = vmatpush1.msra.mxu0 0.0
        %3478 = vmatprep.subr.mxu0 0.0
        %3479 = vmatpush1.msra.mxu0 0.0
        %3480 = vmatprep.subr.mxu0 0.0
        %3481 = vmatpush1.msra.mxu0 0.0
        %3482 = vmatprep.subr.mxu0 0.0
        %3483 = vmatpush1.msra.mxu0 0.0
        %3484 = vmatprep.subr.mxu0 0.0
        %3485 = vmatpush1.msra.mxu0 0.0
        %3486 = vmatprep.subr.mxu0 0.0
        %3487 = vmatpush1.msra.mxu0 0.0
        %3488 = vmatprep.subr.mxu0 0.0
        %3489 = vmatpush1.msra.mxu0 0.0
        %3490 = vmatprep.subr.mxu0 0.0
        %3491 = vmatpush1.msra.mxu0 0.0
        %3492 = vmatprep.subr.mxu0 0.0
        %3493 = vmatpush1.msra.mxu0 0.0
        %3494 = vmatprep.subr.mxu0 0.0
        %3495 = vmatpush1.msra.mxu0 0.0
        %3496 = vmatprep.mubr.f32.mxu0 0.0
        %3497 = vmatmul.mubr.f32.gmra.mrb[0].mxu0 %v3187
        %v3498 = vpop.f32.mrb[0].mxu0
        %v3499 = vadd.f32 0.0, %v3498
        %v3500 = vpop.f32.mrb[0].mxu0
        %v3501 = vadd.f32 0.0, %v3500
        %3502 = vdwg.mxu0
        %3503 = vmatprep.subr.mxu0 %v3217
        %3504 = vmatpush1.msra.mxu0 %v3214
        %3505 = vmatprep.subr.mxu0 0.0
        %3506 = vmatpush1.msra.mxu0 0.0
        %3507 = vmatprep.subr.mxu0 0.0
        %3508 = vmatpush1.msra.mxu0 0.0
        %3509 = vmatprep.subr.mxu0 0.0
        %3510 = vmatpush1.msra.mxu0 0.0
        %3511 = vmatprep.subr.mxu0 0.0
        %3512 = vmatpush1.msra.mxu0 0.0
        %3513 = vmatprep.subr.mxu0 0.0
        %3514 = vmatpush1.msra.mxu0 0.0
        %3515 = vmatprep.subr.mxu0 0.0
        %3516 = vmatpush1.msra.mxu0 0.0
        %3517 = vmatprep.subr.mxu0 0.0
        %3518 = vmatpush1.msra.mxu0 0.0
        %3519 = vmatprep.subr.mxu0 0.0
        %3520 = vmatpush1.msra.mxu0 0.0
        %3521 = vmatprep.subr.mxu0 0.0
        %3522 = vmatpush1.msra.mxu0 0.0
        %3523 = vmatprep.subr.mxu0 0.0
        %3524 = vmatpush1.msra.mxu0 0.0
        %3525 = vmatprep.subr.mxu0 0.0
        %3526 = vmatpush1.msra.mxu0 0.0
        %3527 = vmatprep.subr.mxu0 0.0
        %3528 = vmatpush1.msra.mxu0 0.0
        %3529 = vmatprep.subr.mxu0 0.0
        %3530 = vmatpush1.msra.mxu0 0.0
        %3531 = vmatprep.subr.mxu0 0.0
        %3532 = vmatpush1.msra.mxu0 0.0
        %3533 = vmatprep.subr.mxu0 0.0
        %3534 = vmatpush1.msra.mxu0 0.0
        %3535 = vmatprep.subr.mxu0 0.0
        %3536 = vmatpush1.msra.mxu0 0.0
        %3537 = vmatprep.subr.mxu0 0.0
        %3538 = vmatpush1.msra.mxu0 0.0
        %3539 = vmatprep.subr.mxu0 0.0
        %3540 = vmatpush1.msra.mxu0 0.0
        %3541 = vmatprep.subr.mxu0 0.0
        %3542 = vmatpush1.msra.mxu0 0.0
        %3543 = vmatprep.subr.mxu0 0.0
        %3544 = vmatpush1.msra.mxu0 0.0
        %3545 = vmatprep.subr.mxu0 0.0
        %3546 = vmatpush1.msra.mxu0 0.0
        %3547 = vmatprep.subr.mxu0 0.0
        %3548 = vmatpush1.msra.mxu0 0.0
        %3549 = vmatprep.subr.mxu0 0.0
        %3550 = vmatpush1.msra.mxu0 0.0
        %3551 = vmatprep.subr.mxu0 0.0
        %3552 = vmatpush1.msra.mxu0 0.0
        %3553 = vmatprep.subr.mxu0 0.0
        %3554 = vmatpush1.msra.mxu0 0.0
        %3555 = vmatprep.subr.mxu0 0.0
        %3556 = vmatpush1.msra.mxu0 0.0
        %3557 = vmatprep.subr.mxu0 0.0
        %3558 = vmatpush1.msra.mxu0 0.0
        %3559 = vmatprep.subr.mxu0 0.0
        %3560 = vmatpush1.msra.mxu0 0.0
        %3561 = vmatprep.subr.mxu0 0.0
        %3562 = vmatpush1.msra.mxu0 0.0
        %3563 = vmatprep.subr.mxu0 0.0
        %3564 = vmatpush1.msra.mxu0 0.0
        %3565 = vmatprep.subr.mxu0 0.0
        %3566 = vmatpush1.msra.mxu0 0.0
        %3567 = vmatprep.mubr.f32.mxu0 0.0
        %3568 = vmatmul.mubr.f32.gmra.mrb[0].mxu0 %v3187
        %v3569 = vpop.f32.mrb[0].mxu0
        %v3570 = vadd.f32 0.0, %v3569
        %v3571 = vpop.f32.mrb[0].mxu0
        %v3572 = vadd.f32 0.0, %v3571
        %3573 = vdwg.mxu0
        %v3574 = vadd.f32 %v3143, %v3286
        %v3575 = vadd.f32 %v3144, %v3288
        %v3576 = vadd.f32 %v3145, %v3357
        %v3577 = vadd.f32 %v3146, %v3359
        %v3578 = vadd.f32 %v3147, %v3428
        %v3579 = vadd.f32 %v3148, %v3430
        %v3580 = vadd.f32 %v3149, %v3499
        %v3581 = vadd.f32 %v3150, %v3501
        %v3582 = vadd.f32 %v3151, %v3570
        %v3583 = vadd.f32 %v3152, %v3572
        %3584 = vrot.lane.b32.xlu0 %v174, 93
        %v3585 = vpop.permute.xlu0 %3584
        %3586 = vrot.lane.b32.xlu0 %v175, 93
        %v3587 = vpop.permute.xlu0 %3586
        %3588 = vrot.lane.b32.xlu0 %v176, 93
        %v3589 = vpop.permute.xlu0 %3588
        %3590 = vrot.lane.b32.xlu0 %v177, 93
        %v3591 = vpop.permute.xlu0 %3590
        %3592 = vrot.lane.b32.xlu0 %v178, 93
        %v3593 = vpop.permute.xlu0 %3592
        %3594 = vrot.lane.b32.xlu0 %v179, 93
        %v3595 = vpop.permute.xlu0 %3594
        %3596 = vrot.lane.b32.xlu0 %v180, 93
        %v3597 = vpop.permute.xlu0 %3596
        %3598 = vrot.lane.b32.xlu0 %v181, 93
        %v3599 = vpop.permute.xlu0 %3598
        %3600 = vrot.lane.b32.xlu0 %v182, 93
        %v3601 = vpop.permute.xlu0 %3600
        %3602 = vrot.lane.b32.xlu0 %v183, 93
        %v3603 = vpop.permute.xlu0 %3602
        %vm3604 = vcmp.lt.s32.totalorder %v205, 93
        %v3605 = vsel %vm3604, %v3601, %v3603
        %v3606 = vsel %vm3604, %v3599, %v3601
        %v3607 = vsel %vm3604, %v3597, %v3599
        %v3608 = vsel %vm3604, %v3595, %v3597
        %v3609 = vsel %vm3604, %v3593, %v3595
        %v3610 = vsel %vm3604, %v3591, %v3593
        %v3611 = vsel %vm3604, %v3589, %v3591
        %v3612 = vsel %vm3604, %v3587, %v3589
        %v3613 = vsel %vm3604, %v3585, %v3587
        %v3614 = vsel %vm3604, %v3603, %v3585
        %s3615 = scalar_lea.vmem %s1, 64
        %v3616 = vld [vmem:[%s3615] sm:$0xff]
        %v3618 = vsel %vm251, %v3616, 0
        %v3621 = vsel %vm255, %v3613, 0
        %v3624 = vsel %vm255, %v3612, 0
        %v3627 = vsel %vm255, %v3611, 0
        %v3630 = vsel %vm255, %v3610, 0
        %v3633 = vsel %vm255, %v3609, 0
        %v3636 = vsel %vm255, %v3608, 0
        %v3639 = vsel %vm255, %v3607, 0
        %v3642 = vsel %vm255, %v3606, 0
        %v3645 = vsel %vm255, %v3605, 0
        %v3648 = vsel %vm255, %v3614, 0
        %3650 = vmatprep.subr.mxu0 %v3624
        %3651 = vmatpush1.msra.mxu0 %v3621
        %3652 = vmatprep.subr.mxu0 0.0
        %3653 = vmatpush1.msra.mxu0 0.0
        %3654 = vmatprep.subr.mxu0 0.0
        %3655 = vmatpush1.msra.mxu0 0.0
        %3656 = vmatprep.subr.mxu0 0.0
        %3657 = vmatpush1.msra.mxu0 0.0
        %3658 = vmatprep.subr.mxu0 0.0
        %3659 = vmatpush1.msra.mxu0 0.0
        %3660 = vmatprep.subr.mxu0 0.0
        %3661 = vmatpush1.msra.mxu0 0.0
        %3662 = vmatprep.subr.mxu0 0.0
        %3663 = vmatpush1.msra.mxu0 0.0
        %3664 = vmatprep.subr.mxu0 0.0
        %3665 = vmatpush1.msra.mxu0 0.0
        %3666 = vmatprep.subr.mxu0 0.0
        %3667 = vmatpush1.msra.mxu0 0.0
        %3668 = vmatprep.subr.mxu0 0.0
        %3669 = vmatpush1.msra.mxu0 0.0
        %3670 = vmatprep.subr.mxu0 0.0
        %3671 = vmatpush1.msra.mxu0 0.0
        %3672 = vmatprep.subr.mxu0 0.0
        %3673 = vmatpush1.msra.mxu0 0.0
        %3674 = vmatprep.subr.mxu0 0.0
        %3675 = vmatpush1.msra.mxu0 0.0
        %3676 = vmatprep.subr.mxu0 0.0
        %3677 = vmatpush1.msra.mxu0 0.0
        %3678 = vmatprep.subr.mxu0 0.0
        %3679 = vmatpush1.msra.mxu0 0.0
        %3680 = vmatprep.subr.mxu0 0.0
        %3681 = vmatpush1.msra.mxu0 0.0
        %3682 = vmatprep.subr.mxu0 0.0
        %3683 = vmatpush1.msra.mxu0 0.0
        %3684 = vmatprep.subr.mxu0 0.0
        %3685 = vmatpush1.msra.mxu0 0.0
        %3686 = vmatprep.subr.mxu0 0.0
        %3687 = vmatpush1.msra.mxu0 0.0
        %3688 = vmatprep.subr.mxu0 0.0
        %3689 = vmatpush1.msra.mxu0 0.0
        %3690 = vmatprep.subr.mxu0 0.0
        %3691 = vmatpush1.msra.mxu0 0.0
        %3692 = vmatprep.subr.mxu0 0.0
        %3693 = vmatpush1.msra.mxu0 0.0
        %3694 = vmatprep.subr.mxu0 0.0
        %3695 = vmatpush1.msra.mxu0 0.0
        %3696 = vmatprep.subr.mxu0 0.0
        %3697 = vmatpush1.msra.mxu0 0.0
        %3698 = vmatprep.subr.mxu0 0.0
        %3699 = vmatpush1.msra.mxu0 0.0
        %3700 = vmatprep.subr.mxu0 0.0
        %3701 = vmatpush1.msra.mxu0 0.0
        %3702 = vmatprep.subr.mxu0 0.0
        %3703 = vmatpush1.msra.mxu0 0.0
        %3704 = vmatprep.subr.mxu0 0.0
        %3705 = vmatpush1.msra.mxu0 0.0
        %3706 = vmatprep.subr.mxu0 0.0
        %3707 = vmatpush1.msra.mxu0 0.0
        %3708 = vmatprep.subr.mxu0 0.0
        %3709 = vmatpush1.msra.mxu0 0.0
        %3710 = vmatprep.subr.mxu0 0.0
        %3711 = vmatpush1.msra.mxu0 0.0
        %3712 = vmatprep.subr.mxu0 0.0
        %3713 = vmatpush1.msra.mxu0 0.0
        %3714 = vmatprep.mubr.f32.mxu0 0.0
        %3715 = vmatmul.mubr.f32.gmra.mrb[0].mxu0 %v3618
        %v3716 = vpop.f32.mrb[0].mxu0
        %v3717 = vadd.f32 0.0, %v3716
        %v3718 = vpop.f32.mrb[0].mxu0
        %v3719 = vadd.f32 0.0, %v3718
        %3720 = vdwg.mxu0
        %3721 = vmatprep.subr.mxu0 %v3630
        %3722 = vmatpush1.msra.mxu0 %v3627
        %3723 = vmatprep.subr.mxu0 0.0
        %3724 = vmatpush1.msra.mxu0 0.0
        %3725 = vmatprep.subr.mxu0 0.0
        %3726 = vmatpush1.msra.mxu0 0.0
        %3727 = vmatprep.subr.mxu0 0.0
        %3728 = vmatpush1.msra.mxu0 0.0
        %3729 = vmatprep.subr.mxu0 0.0
        %3730 = vmatpush1.msra.mxu0 0.0
        %3731 = vmatprep.subr.mxu0 0.0
        %3732 = vmatpush1.msra.mxu0 0.0
        %3733 = vmatprep.subr.mxu0 0.0
        %3734 = vmatpush1.msra.mxu0 0.0
        %3735 = vmatprep.subr.mxu0 0.0
        %3736 = vmatpush1.msra.mxu0 0.0
        %3737 = vmatprep.subr.mxu0 0.0
        %3738 = vmatpush1.msra.mxu0 0.0
        %3739 = vmatprep.subr.mxu0 0.0
        %3740 = vmatpush1.msra.mxu0 0.0
        %3741 = vmatprep.subr.mxu0 0.0
        %3742 = vmatpush1.msra.mxu0 0.0
        %3743 = vmatprep.subr.mxu0 0.0
        %3744 = vmatpush1.msra.mxu0 0.0
        %3745 = vmatprep.subr.mxu0 0.0
        %3746 = vmatpush1.msra.mxu0 0.0
        %3747 = vmatprep.subr.mxu0 0.0
        %3748 = vmatpush1.msra.mxu0 0.0
        %3749 = vmatprep.subr.mxu0 0.0
        %3750 = vmatpush1.msra.mxu0 0.0
        %3751 = vmatprep.subr.mxu0 0.0
        %3752 = vmatpush1.msra.mxu0 0.0
        %3753 = vmatprep.subr.mxu0 0.0
        %3754 = vmatpush1.msra.mxu0 0.0
        %3755 = vmatprep.subr.mxu0 0.0
        %3756 = vmatpush1.msra.mxu0 0.0
        %3757 = vmatprep.subr.mxu0 0.0
        %3758 = vmatpush1.msra.mxu0 0.0
        %3759 = vmatprep.subr.mxu0 0.0
        %3760 = vmatpush1.msra.mxu0 0.0
        %3761 = vmatprep.subr.mxu0 0.0
        %3762 = vmatpush1.msra.mxu0 0.0
        %3763 = vmatprep.subr.mxu0 0.0
        %3764 = vmatpush1.msra.mxu0 0.0
        %3765 = vmatprep.subr.mxu0 0.0
        %3766 = vmatpush1.msra.mxu0 0.0
        %3767 = vmatprep.subr.mxu0 0.0
        %3768 = vmatpush1.msra.mxu0 0.0
        %3769 = vmatprep.subr.mxu0 0.0
        %3770 = vmatpush1.msra.mxu0 0.0
        %3771 = vmatprep.subr.mxu0 0.0
        %3772 = vmatpush1.msra.mxu0 0.0
        %3773 = vmatprep.subr.mxu0 0.0
        %3774 = vmatpush1.msra.mxu0 0.0
        %3775 = vmatprep.subr.mxu0 0.0
        %3776 = vmatpush1.msra.mxu0 0.0
        %3777 = vmatprep.subr.mxu0 0.0
        %3778 = vmatpush1.msra.mxu0 0.0
        %3779 = vmatprep.subr.mxu0 0.0
        %3780 = vmatpush1.msra.mxu0 0.0
        %3781 = vmatprep.subr.mxu0 0.0
        %3782 = vmatpush1.msra.mxu0 0.0
        %3783 = vmatprep.subr.mxu0 0.0
        %3784 = vmatpush1.msra.mxu0 0.0
        %3785 = vmatprep.mubr.f32.mxu0 0.0
        %3786 = vmatmul.mubr.f32.gmra.mrb[0].mxu0 %v3618
        %v3787 = vpop.f32.mrb[0].mxu0
        %v3788 = vadd.f32 0.0, %v3787
        %v3789 = vpop.f32.mrb[0].mxu0
        %v3790 = vadd.f32 0.0, %v3789
        %3791 = vdwg.mxu0
        %3792 = vmatprep.subr.mxu0 %v3636
        %3793 = vmatpush1.msra.mxu0 %v3633
        %3794 = vmatprep.subr.mxu0 0.0
        %3795 = vmatpush1.msra.mxu0 0.0
        %3796 = vmatprep.subr.mxu0 0.0
        %3797 = vmatpush1.msra.mxu0 0.0
        %3798 = vmatprep.subr.mxu0 0.0
        %3799 = vmatpush1.msra.mxu0 0.0
        %3800 = vmatprep.subr.mxu0 0.0
        %3801 = vmatpush1.msra.mxu0 0.0
        %3802 = vmatprep.subr.mxu0 0.0
        %3803 = vmatpush1.msra.mxu0 0.0
        %3804 = vmatprep.subr.mxu0 0.0
        %3805 = vmatpush1.msra.mxu0 0.0
        %3806 = vmatprep.subr.mxu0 0.0
        %3807 = vmatpush1.msra.mxu0 0.0
        %3808 = vmatprep.subr.mxu0 0.0
        %3809 = vmatpush1.msra.mxu0 0.0
        %3810 = vmatprep.subr.mxu0 0.0
        %3811 = vmatpush1.msra.mxu0 0.0
        %3812 = vmatprep.subr.mxu0 0.0
        %3813 = vmatpush1.msra.mxu0 0.0
        %3814 = vmatprep.subr.mxu0 0.0
        %3815 = vmatpush1.msra.mxu0 0.0
        %3816 = vmatprep.subr.mxu0 0.0
        %3817 = vmatpush1.msra.mxu0 0.0
        %3818 = vmatprep.subr.mxu0 0.0
        %3819 = vmatpush1.msra.mxu0 0.0
        %3820 = vmatprep.subr.mxu0 0.0
        %3821 = vmatpush1.msra.mxu0 0.0
        %3822 = vmatprep.subr.mxu0 0.0
        %3823 = vmatpush1.msra.mxu0 0.0
        %3824 = vmatprep.subr.mxu0 0.0
        %3825 = vmatpush1.msra.mxu0 0.0
        %3826 = vmatprep.subr.mxu0 0.0
        %3827 = vmatpush1.msra.mxu0 0.0
        %3828 = vmatprep.subr.mxu0 0.0
        %3829 = vmatpush1.msra.mxu0 0.0
        %3830 = vmatprep.subr.mxu0 0.0
        %3831 = vmatpush1.msra.mxu0 0.0
        %3832 = vmatprep.subr.mxu0 0.0
        %3833 = vmatpush1.msra.mxu0 0.0
        %3834 = vmatprep.subr.mxu0 0.0
        %3835 = vmatpush1.msra.mxu0 0.0
        %3836 = vmatprep.subr.mxu0 0.0
        %3837 = vmatpush1.msra.mxu0 0.0
        %3838 = vmatprep.subr.mxu0 0.0
        %3839 = vmatpush1.msra.mxu0 0.0
        %3840 = vmatprep.subr.mxu0 0.0
        %3841 = vmatpush1.msra.mxu0 0.0
        %3842 = vmatprep.subr.mxu0 0.0
        %3843 = vmatpush1.msra.mxu0 0.0
        %3844 = vmatprep.subr.mxu0 0.0
        %3845 = vmatpush1.msra.mxu0 0.0
        %3846 = vmatprep.subr.mxu0 0.0
        %3847 = vmatpush1.msra.mxu0 0.0
        %3848 = vmatprep.subr.mxu0 0.0
        %3849 = vmatpush1.msra.mxu0 0.0
        %3850 = vmatprep.subr.mxu0 0.0
        %3851 = vmatpush1.msra.mxu0 0.0
        %3852 = vmatprep.subr.mxu0 0.0
        %3853 = vmatpush1.msra.mxu0 0.0
        %3854 = vmatprep.subr.mxu0 0.0
        %3855 = vmatpush1.msra.mxu0 0.0
        %3856 = vmatprep.mubr.f32.mxu0 0.0
        %3857 = vmatmul.mubr.f32.gmra.mrb[0].mxu0 %v3618
        %v3858 = vpop.f32.mrb[0].mxu0
        %v3859 = vadd.f32 0.0, %v3858
        %v3860 = vpop.f32.mrb[0].mxu0
        %v3861 = vadd.f32 0.0, %v3860
        %3862 = vdwg.mxu0
        %3863 = vmatprep.subr.mxu0 %v3642
        %3864 = vmatpush1.msra.mxu0 %v3639
        %3865 = vmatprep.subr.mxu0 0.0
        %3866 = vmatpush1.msra.mxu0 0.0
        %3867 = vmatprep.subr.mxu0 0.0
        %3868 = vmatpush1.msra.mxu0 0.0
        %3869 = vmatprep.subr.mxu0 0.0
        %3870 = vmatpush1.msra.mxu0 0.0
        %3871 = vmatprep.subr.mxu0 0.0
        %3872 = vmatpush1.msra.mxu0 0.0
        %3873 = vmatprep.subr.mxu0 0.0
        %3874 = vmatpush1.msra.mxu0 0.0
        %3875 = vmatprep.subr.mxu0 0.0
        %3876 = vmatpush1.msra.mxu0 0.0
        %3877 = vmatprep.subr.mxu0 0.0
        %3878 = vmatpush1.msra.mxu0 0.0
        %3879 = vmatprep.subr.mxu0 0.0
        %3880 = vmatpush1.msra.mxu0 0.0
        %3881 = vmatprep.subr.mxu0 0.0
        %3882 = vmatpush1.msra.mxu0 0.0
        %3883 = vmatprep.subr.mxu0 0.0
        %3884 = vmatpush1.msra.mxu0 0.0
        %3885 = vmatprep.subr.mxu0 0.0
        %3886 = vmatpush1.msra.mxu0 0.0
        %3887 = vmatprep.subr.mxu0 0.0
        %3888 = vmatpush1.msra.mxu0 0.0
        %3889 = vmatprep.subr.mxu0 0.0
        %3890 = vmatpush1.msra.mxu0 0.0
        %3891 = vmatprep.subr.mxu0 0.0
        %3892 = vmatpush1.msra.mxu0 0.0
        %3893 = vmatprep.subr.mxu0 0.0
        %3894 = vmatpush1.msra.mxu0 0.0
        %3895 = vmatprep.subr.mxu0 0.0
        %3896 = vmatpush1.msra.mxu0 0.0
        %3897 = vmatprep.subr.mxu0 0.0
        %3898 = vmatpush1.msra.mxu0 0.0
        %3899 = vmatprep.subr.mxu0 0.0
        %3900 = vmatpush1.msra.mxu0 0.0
        %3901 = vmatprep.subr.mxu0 0.0
        %3902 = vmatpush1.msra.mxu0 0.0
        %3903 = vmatprep.subr.mxu0 0.0
        %3904 = vmatpush1.msra.mxu0 0.0
        %3905 = vmatprep.subr.mxu0 0.0
        %3906 = vmatpush1.msra.mxu0 0.0
        %3907 = vmatprep.subr.mxu0 0.0
        %3908 = vmatpush1.msra.mxu0 0.0
        %3909 = vmatprep.subr.mxu0 0.0
        %3910 = vmatpush1.msra.mxu0 0.0
        %3911 = vmatprep.subr.mxu0 0.0
        %3912 = vmatpush1.msra.mxu0 0.0
        %3913 = vmatprep.subr.mxu0 0.0
        %3914 = vmatpush1.msra.mxu0 0.0
        %3915 = vmatprep.subr.mxu0 0.0
        %3916 = vmatpush1.msra.mxu0 0.0
        %3917 = vmatprep.subr.mxu0 0.0
        %3918 = vmatpush1.msra.mxu0 0.0
        %3919 = vmatprep.subr.mxu0 0.0
        %3920 = vmatpush1.msra.mxu0 0.0
        %3921 = vmatprep.subr.mxu0 0.0
        %3922 = vmatpush1.msra.mxu0 0.0
        %3923 = vmatprep.subr.mxu0 0.0
        %3924 = vmatpush1.msra.mxu0 0.0
        %3925 = vmatprep.subr.mxu0 0.0
        %3926 = vmatpush1.msra.mxu0 0.0
        %3927 = vmatprep.mubr.f32.mxu0 0.0
        %3928 = vmatmul.mubr.f32.gmra.mrb[0].mxu0 %v3618
        %v3929 = vpop.f32.mrb[0].mxu0
        %v3930 = vadd.f32 0.0, %v3929
        %v3931 = vpop.f32.mrb[0].mxu0
        %v3932 = vadd.f32 0.0, %v3931
        %3933 = vdwg.mxu0
        %3934 = vmatprep.subr.mxu0 %v3648
        %3935 = vmatpush1.msra.mxu0 %v3645
        %3936 = vmatprep.subr.mxu0 0.0
        %3937 = vmatpush1.msra.mxu0 0.0
        %3938 = vmatprep.subr.mxu0 0.0
        %3939 = vmatpush1.msra.mxu0 0.0
        %3940 = vmatprep.subr.mxu0 0.0
        %3941 = vmatpush1.msra.mxu0 0.0
        %3942 = vmatprep.subr.mxu0 0.0
        %3943 = vmatpush1.msra.mxu0 0.0
        %3944 = vmatprep.subr.mxu0 0.0
        %3945 = vmatpush1.msra.mxu0 0.0
        %3946 = vmatprep.subr.mxu0 0.0
        %3947 = vmatpush1.msra.mxu0 0.0
        %3948 = vmatprep.subr.mxu0 0.0
        %3949 = vmatpush1.msra.mxu0 0.0
        %3950 = vmatprep.subr.mxu0 0.0
        %3951 = vmatpush1.msra.mxu0 0.0
        %3952 = vmatprep.subr.mxu0 0.0
        %3953 = vmatpush1.msra.mxu0 0.0
        %3954 = vmatprep.subr.mxu0 0.0
        %3955 = vmatpush1.msra.mxu0 0.0
        %3956 = vmatprep.subr.mxu0 0.0
        %3957 = vmatpush1.msra.mxu0 0.0
        %3958 = vmatprep.subr.mxu0 0.0
        %3959 = vmatpush1.msra.mxu0 0.0
        %3960 = vmatprep.subr.mxu0 0.0
        %3961 = vmatpush1.msra.mxu0 0.0
        %3962 = vmatprep.subr.mxu0 0.0
        %3963 = vmatpush1.msra.mxu0 0.0
        %3964 = vmatprep.subr.mxu0 0.0
        %3965 = vmatpush1.msra.mxu0 0.0
        %3966 = vmatprep.subr.mxu0 0.0
        %3967 = vmatpush1.msra.mxu0 0.0
        %3968 = vmatprep.subr.mxu0 0.0
        %3969 = vmatpush1.msra.mxu0 0.0
        %3970 = vmatprep.subr.mxu0 0.0
        %3971 = vmatpush1.msra.mxu0 0.0
        %3972 = vmatprep.subr.mxu0 0.0
        %3973 = vmatpush1.msra.mxu0 0.0
        %3974 = vmatprep.subr.mxu0 0.0
        %3975 = vmatpush1.msra.mxu0 0.0
        %3976 = vmatprep.subr.mxu0 0.0
        %3977 = vmatpush1.msra.mxu0 0.0
        %3978 = vmatprep.subr.mxu0 0.0
        %3979 = vmatpush1.msra.mxu0 0.0
        %3980 = vmatprep.subr.mxu0 0.0
        %3981 = vmatpush1.msra.mxu0 0.0
        %3982 = vmatprep.subr.mxu0 0.0
        %3983 = vmatpush1.msra.mxu0 0.0
        %3984 = vmatprep.subr.mxu0 0.0
        %3985 = vmatpush1.msra.mxu0 0.0
        %3986 = vmatprep.subr.mxu0 0.0
        %3987 = vmatpush1.msra.mxu0 0.0
        %3988 = vmatprep.subr.mxu0 0.0
        %3989 = vmatpush1.msra.mxu0 0.0
        %3990 = vmatprep.subr.mxu0 0.0
        %3991 = vmatpush1.msra.mxu0 0.0
        %3992 = vmatprep.subr.mxu0 0.0
        %3993 = vmatpush1.msra.mxu0 0.0
        %3994 = vmatprep.subr.mxu0 0.0
        %3995 = vmatpush1.msra.mxu0 0.0
        %3996 = vmatprep.subr.mxu0 0.0
        %3997 = vmatpush1.msra.mxu0 0.0
        %3998 = vmatprep.mubr.f32.mxu0 0.0
        %3999 = vmatmul.mubr.f32.gmra.mrb[0].mxu0 %v3618
        %v4000 = vpop.f32.mrb[0].mxu0
        %v4001 = vadd.f32 0.0, %v4000
        %v4002 = vpop.f32.mrb[0].mxu0
        %v4003 = vadd.f32 0.0, %v4002
        %4004 = vdwg.mxu0
        %v4005 = vadd.f32 %v3574, %v3717
        %v4006 = vadd.f32 %v3575, %v3719
        %v4007 = vadd.f32 %v3576, %v3788
        %v4008 = vadd.f32 %v3577, %v3790
        %v4009 = vadd.f32 %v3578, %v3859
        %v4010 = vadd.f32 %v3579, %v3861
        %v4011 = vadd.f32 %v3580, %v3930
        %v4012 = vadd.f32 %v3581, %v3932
        %v4013 = vadd.f32 %v3582, %v4001
        %v4014 = vadd.f32 %v3583, %v4003
        %v4015 = vld [vmem:[%s2] sm:$0xff]
        %4017 = vset.pattern.permute.xlu0 0
        %4018 = vperm.xlu0 %4017, %v4015
        %v4019 = vpop.permute.xlu0 %4018
        %v4021 = vadd.f32 %v4005, %v4019
        %v4022 = vadd.f32 %v4006, %v4019
        %v4023 = vadd.f32 %v4007, %v4019
        %v4024 = vadd.f32 %v4008, %v4019
        %v4025 = vadd.f32 %v4009, %v4019
        %v4026 = vadd.f32 %v4010, %v4019
        %v4027 = vadd.f32 %v4011, %v4019
        %v4028 = vadd.f32 %v4012, %v4019
        %v4029 = vadd.f32 %v4013, %v4019
        %v4030 = vadd.f32 %v4014, %v4019
        %v4031 = vmax.f32 %v4021, 0.0
        %v4032 = vmax.f32 %v4022, 0.0
        %v4033 = vmax.f32 %v4023, 0.0
        %v4034 = vmax.f32 %v4024, 0.0
        %v4035 = vmax.f32 %v4025, 0.0
        %v4036 = vmax.f32 %v4026, 0.0
        %v4037 = vmax.f32 %v4027, 0.0
        %v4038 = vmax.f32 %v4028, 0.0
        %v4039 = vmax.f32 %v4029, 0.0
        %v4040 = vmax.f32 %v4030, 0.0
        %4041 = vst [vmem:[%s163] sm:$0xff] %v4031
        %4042 = vst [vmem:[%s163 + $0x8] sm:$0xff] %v4032
        %4043 = vst [vmem:[%s163 + $0x10] sm:$0xff] %v4033
        %4044 = vst [vmem:[%s163 + $0x18] sm:$0xff] %v4034
        %4045 = vst [vmem:[%s163 + $0x20] sm:$0xff] %v4035
        %4046 = vst [vmem:[%s163 + $0x28] sm:$0xff] %v4036
        %4047 = vst [vmem:[%s163 + $0x30] sm:$0xff] %v4037
        %4048 = vst [vmem:[%s163 + $0x38] sm:$0xff] %v4038
        %4049 = vst [vmem:[%s163 + $0x40] sm:$0xff] %v4039
        %4050 = vst [vmem:[%s163 + $0x48] sm:$0xff] %v4040
        %s4051 = sand.u32 %s93, 1
        %s4052 = scalar_lea.sflag [#allocation3], %s4051
        %s4053 = sand.u32 %s93, 1
        %s4054 = smul.addr %s4053, 80
        %s4055 = scalar_lea.vmem [#allocation2], %s4054
        // Predicated region
        $region33: #{tpu_custom_call.1} parent=31 // pred_check
          %p4056 = pneg %p103
        $region34: #{tpu_custom_call.1} parent=31 // pred_check_branch
          %4058 = sbr.rel (%p4056) target = $region36
        $region35: #{tpu_custom_call.1} parent=31 // pred_region
          %s4060 = ssub.s32 1280, 1280
          %4061 = vsyncadd %s4052, %s4060
          %s4062 = smul.addr %s17, 10
          %s4063 = smul.addr %s4062, 128
          %s4064 = scalar_lea.hbm %s3, %s4063
          %s4066 = sshll.u32 %s4055, 4
          %s4067 = int_to_ptr.vmem [resolvable:$true] %s4066
          %4069 = dma.vmem_to_hbm [thread:$0]  %s4067, 1280, %s4064, %s4052
        $region36: #{tpu_custom_call.1} parent=31 // pred_fallthru
          _
      $region32: #{tpu_custom_call.1} parent=5 // pred_fallthru
        _
      %p4070 = scmp.le.s32.totalorder 2, %s12
      // Predicated region
      $region37: #{tpu_custom_call.1} parent=5 // pred_check
        %p4071 = pneg %p4070
      $region38: #{tpu_custom_call.1} parent=5 // pred_check_branch
        %4073 = sbr.rel (%p4071) target = $region40
      $region39: #{tpu_custom_call.1} parent=5 // pred_region
        %s4074 = ssub.s32 %s12, 2
        // Predicated region
        $region41: #{tpu_custom_call.1} parent=39 // pred_check
          %p4075 = pneg %p109
        $region42: #{tpu_custom_call.1} parent=39 // pred_check_branch
          %4077 = sbr.rel (%p4075) target = $region44
        $region43: #{tpu_custom_call.1} parent=39 // pred_region
          %s4078 = sand.u32 %s94, 1
          %s4079 = scalar_lea.sflag [#allocation3], %s4078
          %s4080 = sand.u32 %s94, 1
          %s4081 = smul.addr %s4080, 80
          %s4082 = scalar_lea.vmem [#allocation2], %s4081
          %4083 = dma.done %s4079, 1280
        $region44: #{tpu_custom_call.1} parent=39 // pred_fallthru
          _
      $region40: #{tpu_custom_call.1} parent=5 // pred_fallthru
        _
    $region6: #{tpu_custom_call.1} parent=1 // loop_footer
      %s16 = sadd.s32 1, %s12
    $region7: #{tpu_custom_call.1} parent=1 // loop_footer_branch
      %11 = sbr.rel target = $region3
    $region8: #{tpu_custom_call.1} parent=1 // loop_exit
      _
    %4084 = vsyncpa [#allocation3], 1
    %s4085 = scalar_lea.sflag [#allocation3], 1
    %4086 = vsyncpa %s4085, 1

</llo_original>
